<compile_context>
chip_gen: v7x
topology: tpu7x:2x2x1
jax: 0.10.0
libtpu: 0.0.40
codegen_flags: <defaults>
</compile_context>

<pallas_src>
import functools

import jax
import jax.numpy as jnp
from jax.experimental import pallas as pl
from jax.experimental.pallas import tpu as pltpu

NEG_SLOPE = 0.2          # GATConv default negative_slope
MASK_VAL = -1e30         # additive mask for non-edges (exactly representable in bf16)
LANE = 128               # TPU lane width -> pad per-head feature dim to this


def _round_up(x, m):
    return ((x + m - 1) // m) * m


def _gat_cluster_kernel(xw_ref, asrc_ref, adst_ref, bias_ref, e_ref, out_ref,
                        m_sc, l_sc, acc_sc, *, heads):
    """One (dst tile, src tile) grid step with per-head online softmax.

    xw_ref   : [Ts, H*Fp]  bf16  projected node features (src-tiled, heads lane-padded)
    asrc_ref : [H, Ts]     f32   per-source-node attention term (x @ (W_h att_src_h))
    adst_ref : [T, H]      f32   per-dest-node attention term   (x @ (W_h att_dst_h))
    bias_ref : [1, Fp]     f32
    e_ref    : [H, T, Ts]  bf16  pre-combined per-head edge score, -1e30 on non-edges
    out_ref  : [T, Fp]     f32
    m_sc/l_sc: [H, T, 1]   f32   online-softmax running max / denominator
    acc_sc   : [H, T, Fp]  f32   per-head weighted-sum accumulator
    """
    Fp = out_ref.shape[-1]
    j = pl.program_id(1)

    @pl.when(j == 0)
    def _init():
        m_sc[...] = jnp.full_like(m_sc, -jnp.inf)
        l_sc[...] = jnp.zeros_like(l_sc)
        acc_sc[...] = jnp.zeros_like(acc_sc)

    a_dst = adst_ref[...]                                   # [T, H]
    a_src = asrc_ref[...]                                   # [H, Ts]

    for h in range(heads):                                  # static unroll (H=4)
        # logits for this head; mask is already folded into e (non-edges ~ -1e30)
        alpha = (a_dst[:, h:h + 1]
                 + a_src[h:h + 1, :]
                 + e_ref[h].astype(jnp.float32))            # [T, Ts]
        alpha = jnp.where(alpha >= 0, alpha, NEG_SLOPE * alpha)   # LeakyReLU(0.2)

        # online softmax over source clusters (lane axis)
        m_prev = m_sc[h]                                    # [T, 1]
        m_new = jnp.maximum(m_prev, jnp.max(alpha, axis=-1, keepdims=True))
        corr = jnp.exp(m_prev - m_new)                      # [T, 1]
        p = jnp.exp(alpha - m_new)                          # [T, Ts]

        l_sc[h] = corr * l_sc[h] + jnp.sum(p, axis=-1, keepdims=True)

        # aggregation: bf16 MXU matmul with f32 accumulation, 128-aligned head slice
        xw_h = xw_ref[:, h * Fp:(h + 1) * Fp]               # [Ts, Fp] bf16
        acc_sc[h] = corr * acc_sc[h] + jnp.dot(
            p.astype(jnp.bfloat16), xw_h, preferred_element_type=jnp.float32)
        m_sc[h] = m_new

    @pl.when(j == pl.num_programs(1) - 1)
    def _finalize():
        # concat=False -> mean over heads, then bias.
        # Padded dst rows have all-masked logits -> uniform softmax; they are
        # sliced off by the wrapper and never feed anything downstream.
        total = jnp.zeros(out_ref.shape, jnp.float32)
        for h in range(heads):
            total = total + acc_sc[h] * pl.reciprocal(l_sc[h], approx=True)
        out_ref[...] = total * (1.0 / heads) + bias_ref[...]


def _edge_scores_dense(c_dst, c_src, C, edge_index, edge_attr, v_edge):
    """Dense per-head edge attention scores [H, c_dst, c_src] (bf16) with the
    additive -1e30 non-edge mask folded in.  Mimics GATConv's
    remove_self_loops + add_self_loops(fill_value='mean')."""
    src, dst = edge_index[0], edge_index[1]
    H = v_edge.shape[0]
    ea = edge_attr.astype(jnp.float32)                      # [E, D]

    # per-edge, per-head scalar score: att_edge_h . (lin_edge_h @ edge_attr_e)
    scores = ea @ v_edge.T                                  # [E, H]

    # self-loop edge attr = mean of incoming edge attrs per destination cluster
    sums = jax.ops.segment_sum(ea, dst, num_segments=C)
    cnts = jax.ops.segment_sum(jnp.ones((ea.shape[0], 1), jnp.float32),
                               dst, num_segments=C)
    loop_scores = (sums / jnp.maximum(cnts, 1.0)) @ v_edge.T          # [C, H]

    dense = jnp.full((c_dst, c_src, H), MASK_VAL, jnp.float32)
    dense = dense.at[dst, src].set(scores)                  # NOTE: duplicates keep last
    idx = jnp.arange(C)
    dense = dense.at[idx, idx].set(loop_scores)
    # bf16 storage halves the HBM traffic of the dominant [H, C, C] stream
    return jnp.transpose(dense, (2, 0, 1)).astype(jnp.bfloat16)       # [H, c_dst, c_src]


def init_params(key, in_channels, out_channels, heads, edge_dim):
    def glorot(k, shape, fan_in, fan_out):
        lim = (6.0 / (fan_in + fan_out)) ** 0.5
        return jax.random.uniform(k, shape, jnp.float32, -lim, lim)

    ks = jax.random.split(key, 5)
    hf = heads * out_channels
    return dict(
        w=glorot(ks[0], (in_channels, hf), in_channels, hf),          # lin.weight.T
        we_t=glorot(ks[1], (hf, edge_dim), edge_dim, hf),             # lin_edge.weight
        att_src=glorot(ks[2], (heads, out_channels), out_channels, 1),
        att_dst=glorot(ks[3], (heads, out_channels), out_channels, 1),
        att_edge=glorot(ks[4], (heads, out_channels), out_channels, 1),
        bias=jnp.zeros((1, out_channels), jnp.float32),               # GATConv bias (concat=False)
    )


def global_gat_over_clusters(params, cluster_embeddings, cluster_edge_index,
                             cluster_edge_attr, *, tile_dst=256, tile_src=512):
    """Forward pass equivalent of GlobalGATOverClusters.forward."""
    x = cluster_embeddings.astype(jnp.float32)
    C, Fin = x.shape
    H, F_out = params["att_src"].shape

    Fp = _round_up(F_out, LANE)                            # lane-dense features / output

    # tile sizes: dst tile multiple of 16 (bf16 sublane granule), src tile multiple of 128 (lanes)
    T = min(_round_up(tile_dst, 16), _round_up(C, 16))
    Ts = min(_round_up(tile_src, LANE), _round_up(C, LANE))
    c_dst = _round_up(C, T)
    c_src = _round_up(C, Ts)
    g_dst, g_src = c_dst // T, c_src // Ts

    # ---- parameter re-layout (tiny, done once in XLA) ----
    w_r = params["w"].reshape(Fin, H, F_out)
    w_pad = (jnp.zeros((Fin, H, Fp), jnp.float32)
             .at[:, :, :F_out].set(w_r).reshape(Fin, H * Fp))
    w_asrc = jnp.einsum("ihf,hf->ih", w_r, params["att_src"])         # [Fin, H]
    w_adst = jnp.einsum("ihf,hf->ih", w_r, params["att_dst"])         # [Fin, H]
    we_r = params["we_t"].reshape(H, F_out, -1)
    v_edge = jnp.einsum("hf,hfd->hd", params["att_edge"], we_r)       # [H, D]
    bias_pad = jnp.zeros((1, Fp), jnp.float32).at[:, :F_out].set(params["bias"])

    # ---- grid-invariant node quantities, computed once in XLA (not per tile) ----
    x_src = jnp.zeros((c_src, Fin), jnp.float32).at[:C].set(x)
    x_dst = jnp.zeros((c_dst, Fin), jnp.float32).at[:C].set(x)
    xw = (x_src @ w_pad).astype(jnp.bfloat16)                         # [c_src, H*Fp]
    a_src = (x_src @ w_asrc).T                                        # [H, c_src] f32
    a_dst = x_dst @ w_adst                                            # [c_dst, H] f32

    # ---- pre-combined, masked, bf16 per-head edge scores (dominant HBM stream) ----
    e_pre = _edge_scores_dense(c_dst, c_src, C, cluster_edge_index,
                               cluster_edge_attr, v_edge)             # [H, c_dst, c_src]

    cost = pl.CostEstimate(
        flops=2 * c_dst * c_src * H * Fp + 10 * c_dst * c_src * H,
        transcendentals=c_dst * c_src * H + g_dst * g_src * H * T + g_dst * H * T,
        bytes_accessed=(H * c_dst * c_src * 2                         # edge-score stream
                        + g_dst * (c_src * H * Fp * 2 + H * c_src * 4)
                        + c_dst * H * 4 + c_dst * Fp * 4),
    )

    # actual per-step footprint (double-buffered pipeline copies + scratch)
    vmem_bytes = 2 * (H * T * Ts * 2 + Ts * H * Fp * 2 + H * Ts * 4
                      + T * H * 4 + Fp * 4 + T * Fp * 4)
    vmem_bytes += H * T * (Fp + 2) * 4
    vmem_limit = int(min(128 * 1024 * 1024, max(32 * 1024 * 1024, 2 * vmem_bytes)))

    out_pad = pl.pallas_call(
        functools.partial(_gat_cluster_kernel, heads=H),
        out_shape=jax.ShapeDtypeStruct((c_dst, Fp), jnp.float32),
        grid=(g_dst, g_src),
        in_specs=[
            pl.BlockSpec((Ts, H * Fp), lambda i, j: (j, 0)),      # xw (bf16), src tile
            pl.BlockSpec((H, Ts), lambda i, j: (0, j)),           # a_src, src tile
            pl.BlockSpec((T, H), lambda i, j: (i, 0)),            # a_dst, dst tile
            pl.BlockSpec((1, Fp), lambda i, j: (0, 0)),           # bias
            pl.BlockSpec((H, T, Ts), lambda i, j: (0, i, j)),     # edge scores (bf16)
        ],
        out_specs=pl.BlockSpec((T, Fp), lambda i, j: (i, 0)),
        scratch_shapes=[
            pltpu.VMEM((H, T, 1), jnp.float32),                   # m (running max)
            pltpu.VMEM((H, T, 1), jnp.float32),                   # l (denominator)
            pltpu.VMEM((H, T, Fp), jnp.float32),                  # acc
        ],
        compiler_params=pltpu.CompilerParams(
            dimension_semantics=("parallel", "arbitrary"),
            vmem_limit_bytes=vmem_limit,
        ),
        cost_estimate=cost,
    )(xw, a_src, a_dst, bias_pad, e_pre)

    return out_pad[:C, :F_out]


def _reference(params, x, edge_index, edge_attr):
    """Pure-JAX dense reference (PyG-style math, f32 softmax/aggregation).
    Shares only the bf16 storage of the pre-combined per-head edge score with
    the kernel (a deliberate quantization choice of the kernel)."""
    C = x.shape[0]
    H, F_out = params["att_src"].shape
    we_r = params["we_t"].reshape(H, F_out, -1)
    v_edge = jnp.einsum("hf,hfd->hd", params["att_edge"], we_r)        # [H, D]

    e_pre = _edge_scores_dense(C, C, C, edge_index, edge_attr, v_edge) # [H, C, C] bf16
    a_edge = jnp.transpose(e_pre.astype(jnp.float32), (1, 2, 0))       # [dst, src, H]
    adj = a_edge > (0.5 * MASK_VAL)                                    # recover edge mask

    xw = (x @ params["w"]).reshape(C, H, F_out)
    a_src = (xw * params["att_src"][None]).sum(-1)                     # [C, H]
    a_dst = (xw * params["att_dst"][None]).sum(-1)                     # [C, H]

    alpha = a_dst[:, None, :] + a_src[None, :, :] + jnp.where(adj, a_edge, 0.0)
    alpha = jnp.where(alpha >= 0, alpha, NEG_SLOPE * alpha)            # LeakyReLU
    alpha = jnp.where(adj, alpha, MASK_VAL)                            # mask (PyG order)
    alpha = alpha - alpha.max(axis=1, keepdims=True)
    p = jnp.where(adj, jnp.exp(alpha), 0.0)
    attn = p / (p.sum(axis=1, keepdims=True) + 1e-16)
    out = jnp.einsum("ijh,jhf->ihf", attn, xw).mean(axis=1)
    return out + params["bias"]


if __name__ == "__main__":
    key = jax.random.PRNGKey(0)
    C, in_channels, out_channels, heads, edge_dim = 160, 16, 8, 4, 6   # num_heads = 4

    k_x, k_e, k_p = jax.random.split(key, 3)
    x = jax.random.normal(k_x, (C, in_channels), jnp.float32)

    # deterministic inter-cluster edge list (src -> dst), no self-loops / duplicates
    src, dst = [], []
    for i in range(C):
        for off in (1, 2, 5, 11):
            src.append(i)
            dst.append((i + off) % C)
    edge_index = jnp.array([src, dst], dtype=jnp.int32)                # [2, E]
    E = edge_index.shape[1]
    edge_attr = jax.random.normal(k_e, (E, edge_dim), jnp.float32)

    params = init_params(k_p, in_channels, out_channels, heads, edge_dim)

    # tile_dst=64, tile_src=128 at C=160 -> grid (3, 2): exercises both the
    # dst-parallel pipeline and the online-softmax accumulation over src tiles.
    out = global_gat_over_clusters(params, x, edge_index, edge_attr,
                                   tile_dst=64, tile_src=128)
    out = jax.block_until_ready(out)

    ref = _reference(params, x, edge_index, edge_attr)
    assert out.shape == (C, out_channels)
    err = float(jnp.max(jnp.abs(out - ref)))
    # tolerance covers bf16 MXU operands, EUP approx reciprocal and fused-weight
    # fp re-association
    assert jnp.allclose(out, ref, atol=2e-2, rtol=2e-2), err
    print("KERNEL_OK")
</pallas_src>

<mosaic_0001>
module attributes {stable_mosaic.version = 11 : i64} {
  func.func @_gat_cluster_kernel(%arg0: i32, %arg1: i32, %arg2: memref<128x512xbf16, #tpu.memory_space<vmem>>, %arg3: memref<4x128xf32, #tpu.memory_space<vmem>>, %arg4: memref<64x4xf32, #tpu.memory_space<vmem>>, %arg5: memref<1x128xf32, #tpu.memory_space<vmem>>, %arg6: memref<4x64x128xbf16, #tpu.memory_space<vmem>>, %arg7: memref<64x128xf32, #tpu.memory_space<vmem>>, %arg8: memref<4x64x1xf32, #tpu.memory_space<vmem>>, %arg9: memref<4x64x1xf32, #tpu.memory_space<vmem>>, %arg10: memref<4x64x128xf32, #tpu.memory_space<vmem>>) attributes {dimension_semantics = [#tpu.dimension_semantics<parallel>, #tpu.dimension_semantics<arbitrary>], iteration_bounds = array<i64: 3, 2>, scalar_prefetch = 0 : i64, scratch_operands = 3 : i64, tpu.core_type = #tpu.core_type<tc>, window_params = [{transform_indices = @transform_0, window_bounds = array<i64: 128, 512>}, {transform_indices = @transform_1, window_bounds = array<i64: 4, 128>}, {transform_indices = @transform_2, window_bounds = array<i64: 64, 4>}, {pipeline_mode = #tpu.pipeline_mode<synchronous>, transform_indices = @transform_3, window_bounds = array<i64: 1, 128>}, {transform_indices = @transform_4, window_bounds = array<i64: 4, 64, 128>}, {transform_indices = @transform_5, window_bounds = array<i64: 64, 128>}]} {
    %c0_i32 = arith.constant 0 : i32
    %0 = arith.cmpi eq, %arg1, %c0_i32 : i32
    %1 = arith.extui %0 : i1 to i32
    %c0_i32_0 = arith.constant 0 : i32
    %2 = arith.cmpi ne, %1, %c0_i32_0 : i32
    scf.if %2 {
      %cst_110 = arith.constant 0xFF800000 : f32
      %196 = vector.broadcast %cst_110 : f32 to vector<4x64x1xf32>
      %c0_111 = arith.constant 0 : index
      %c0_112 = arith.constant 0 : index
      %c0_113 = arith.constant 0 : index
      %197 = vector.load %arg8[%c0_111, %c0_112, %c0_113] : memref<4x64x1xf32, #tpu.memory_space<vmem>>, vector<4x64x1xf32>
      tpu.vector_store %arg8[%c0_111, %c0_112, %c0_113], %196 {strides = array<i32>} : memref<4x64x1xf32, #tpu.memory_space<vmem>>, vector<4x64x1xf32>,
      %cst_114 = arith.constant 0.000000e+00 : f32
      %198 = vector.broadcast %cst_114 : f32 to vector<4x64x1xf32>
      %c0_115 = arith.constant 0 : index
      %c0_116 = arith.constant 0 : index
      %c0_117 = arith.constant 0 : index
      %199 = vector.load %arg9[%c0_115, %c0_116, %c0_117] : memref<4x64x1xf32, #tpu.memory_space<vmem>>, vector<4x64x1xf32>
      tpu.vector_store %arg9[%c0_115, %c0_116, %c0_117], %198 {strides = array<i32>} : memref<4x64x1xf32, #tpu.memory_space<vmem>>, vector<4x64x1xf32>,
      %cst_118 = arith.constant 0.000000e+00 : f32
      %200 = vector.broadcast %cst_118 : f32 to vector<4x64x128xf32>
      %c0_119 = arith.constant 0 : index
      %c0_120 = arith.constant 0 : index
      %c0_121 = arith.constant 0 : index
      %201 = vector.load %arg10[%c0_119, %c0_120, %c0_121] : memref<4x64x128xf32, #tpu.memory_space<vmem>>, vector<4x64x128xf32>
      tpu.vector_store %arg10[%c0_119, %c0_120, %c0_121], %200 {strides = array<i32>} : memref<4x64x128xf32, #tpu.memory_space<vmem>>, vector<4x64x128xf32>,
    } else {
    }
    %c0 = arith.constant 0 : index
    %c0_1 = arith.constant 0 : index
    %3 = vector.load %arg4[%c0, %c0_1] : memref<64x4xf32, #tpu.memory_space<vmem>>, vector<64x4xf32>
    %c0_2 = arith.constant 0 : index
    %c0_3 = arith.constant 0 : index
    %4 = vector.load %arg3[%c0_2, %c0_3] : memref<4x128xf32, #tpu.memory_space<vmem>>, vector<4x128xf32>
    %5 = vector.extract_strided_slice %3 {offsets = [0, 0], sizes = [64, 1], strides = [1, 1]} : vector<64x4xf32> to vector<64x1xf32>
    %6 = vector.extract_strided_slice %4 {offsets = [0, 0], sizes = [1, 128], strides = [1, 1]} : vector<4x128xf32> to vector<1x128xf32>
    %7 = vector.broadcast %5 : vector<64x1xf32> to vector<64x128xf32>
    %8 = vector.broadcast %6 : vector<1x128xf32> to vector<64x128xf32>
    %9 = arith.addf %7, %8 : vector<64x128xf32>
    %c0_4 = arith.constant 0 : index
    %c0_5 = arith.constant 0 : index
    %c0_6 = arith.constant 0 : index
    %10 = vector.load %arg6[%c0_4, %c0_5, %c0_6] : memref<4x64x128xbf16, #tpu.memory_space<vmem>>, vector<1x64x128xbf16>
    %11 = vector.shape_cast %10 : vector<1x64x128xbf16> to vector<64x128xbf16>
    %12 = arith.extf %11 : vector<64x128xbf16> to vector<64x128xf32>
    %13 = arith.addf %9, %12 : vector<64x128xf32>
    %cst = arith.constant 0.000000e+00 : f32
    %14 = vector.broadcast %cst : f32 to vector<64x128xf32>
    %15 = arith.cmpf oge, %13, %14 : vector<64x128xf32>
    %cst_7 = arith.constant 2.000000e-01 : f32
    %16 = vector.broadcast %cst_7 : f32 to vector<64x128xf32>
    %17 = arith.mulf %16, %13 : vector<64x128xf32>
    %18 = arith.select %15, %13, %17 : vector<64x128xi1>, vector<64x128xf32>
    %c0_8 = arith.constant 0 : index
    %c0_9 = arith.constant 0 : index
    %c0_10 = arith.constant 0 : index
    %19 = vector.load %arg8[%c0_8, %c0_9, %c0_10] : memref<4x64x1xf32, #tpu.memory_space<vmem>>, vector<1x64x1xf32>
    %20 = vector.shape_cast %19 : vector<1x64x1xf32> to vector<64x1xf32>
    %cst_11 = arith.constant dense<0xFF800000> : vector<64xf32>
    %21 = vector.multi_reduction <maximumf>, %18, %cst_11 [1] : vector<64x128xf32> to vector<64xf32>
    %22 = vector.shape_cast %21 : vector<64xf32> to vector<64x1xf32>
    %23 = arith.maximumf %20, %22 : vector<64x1xf32>
    %24 = arith.subf %20, %23 : vector<64x1xf32>
    %25 = math.exp %24 : vector<64x1xf32>
    %26 = vector.broadcast %23 : vector<64x1xf32> to vector<64x128xf32>
    %27 = arith.subf %18, %26 : vector<64x128xf32>
    %28 = math.exp %27 : vector<64x128xf32>
    %c0_12 = arith.constant 0 : index
    %c0_13 = arith.constant 0 : index
    %c0_14 = arith.constant 0 : index
    %29 = vector.load %arg9[%c0_12, %c0_13, %c0_14] : memref<4x64x1xf32, #tpu.memory_space<vmem>>, vector<1x64x1xf32>
    %30 = vector.shape_cast %29 : vector<1x64x1xf32> to vector<64x1xf32>
    %31 = arith.mulf %25, %30 : vector<64x1xf32>
    %cst_15 = arith.constant dense<0.000000e+00> : vector<64xf32>
    %32 = vector.multi_reduction <add>, %28, %cst_15 [1] : vector<64x128xf32> to vector<64xf32>
    %33 = vector.shape_cast %32 : vector<64xf32> to vector<64x1xf32>
    %34 = arith.addf %31, %33 : vector<64x1xf32>
    %c0_16 = arith.constant 0 : index
    %c0_17 = arith.constant 0 : index
    %c0_18 = arith.constant 0 : index
    %35 = vector.load %arg9[%c0_16, %c0_17, %c0_18] : memref<4x64x1xf32, #tpu.memory_space<vmem>>, vector<1x64x1xf32>
    %36 = vector.shape_cast %35 : vector<1x64x1xf32> to vector<64x1xf32>
    %37 = vector.shape_cast %34 : vector<64x1xf32> to vector<1x64x1xf32>
    tpu.vector_store %arg9[%c0_16, %c0_17, %c0_18], %37 {strides = array<i32>} : memref<4x64x1xf32, #tpu.memory_space<vmem>>, vector<1x64x1xf32>,
    %c0_19 = arith.constant 0 : index
    %c0_20 = arith.constant 0 : index
    %38 = vector.load %arg2[%c0_19, %c0_20] : memref<128x512xbf16, #tpu.memory_space<vmem>>, vector<128x128xbf16>
    %c0_21 = arith.constant 0 : index
    %c0_22 = arith.constant 0 : index
    %c0_23 = arith.constant 0 : index
    %39 = vector.load %arg10[%c0_21, %c0_22, %c0_23] : memref<4x64x128xf32, #tpu.memory_space<vmem>>, vector<1x64x128xf32>
    %40 = vector.shape_cast %39 : vector<1x64x128xf32> to vector<64x128xf32>
    %41 = vector.broadcast %25 : vector<64x1xf32> to vector<64x128xf32>
    %42 = arith.mulf %41, %40 : vector<64x128xf32>
    %43 = arith.truncf %28 : vector<64x128xf32> to vector<64x128xbf16>
    %cst_24 = arith.constant dense<0.000000e+00> : vector<64x128xf32>
    %44 = tpu.matmul %43, %38, %cst_24 {dimension_numbers = #tpu.dot_dimension_numbers<[1], [0], [0], [1], [0, 0, 1, 1], [], []>} : vector<64x128xbf16>, vector<128x128xbf16>, vector<64x128xf32> -> vector<64x128xf32>
    %45 = arith.addf %42, %44 : vector<64x128xf32>
    %c0_25 = arith.constant 0 : index
    %c0_26 = arith.constant 0 : index
    %c0_27 = arith.constant 0 : index
    %46 = vector.load %arg10[%c0_25, %c0_26, %c0_27] : memref<4x64x128xf32, #tpu.memory_space<vmem>>, vector<1x64x128xf32>
    %47 = vector.shape_cast %46 : vector<1x64x128xf32> to vector<64x128xf32>
    %48 = vector.shape_cast %45 : vector<64x128xf32> to vector<1x64x128xf32>
    tpu.vector_store %arg10[%c0_25, %c0_26, %c0_27], %48 {strides = array<i32>} : memref<4x64x128xf32, #tpu.memory_space<vmem>>, vector<1x64x128xf32>,
    %c0_28 = arith.constant 0 : index
    %c0_29 = arith.constant 0 : index
    %c0_30 = arith.constant 0 : index
    %49 = vector.load %arg8[%c0_28, %c0_29, %c0_30] : memref<4x64x1xf32, #tpu.memory_space<vmem>>, vector<1x64x1xf32>
    %50 = vector.shape_cast %49 : vector<1x64x1xf32> to vector<64x1xf32>
    %51 = vector.shape_cast %23 : vector<64x1xf32> to vector<1x64x1xf32>
    tpu.vector_store %arg8[%c0_28, %c0_29, %c0_30], %51 {strides = array<i32>} : memref<4x64x1xf32, #tpu.memory_space<vmem>>, vector<1x64x1xf32>,
    %52 = vector.extract_strided_slice %3 {offsets = [0, 1], sizes = [64, 1], strides = [1, 1]} : vector<64x4xf32> to vector<64x1xf32>
    %53 = vector.extract_strided_slice %4 {offsets = [1, 0], sizes = [1, 128], strides = [1, 1]} : vector<4x128xf32> to vector<1x128xf32>
    %54 = vector.broadcast %52 : vector<64x1xf32> to vector<64x128xf32>
    %55 = vector.broadcast %53 : vector<1x128xf32> to vector<64x128xf32>
    %56 = arith.addf %54, %55 : vector<64x128xf32>
    %c1 = arith.constant 1 : index
    %c0_31 = arith.constant 0 : index
    %c0_32 = arith.constant 0 : index
    %57 = vector.load %arg6[%c1, %c0_31, %c0_32] : memref<4x64x128xbf16, #tpu.memory_space<vmem>>, vector<1x64x128xbf16>
    %58 = vector.shape_cast %57 : vector<1x64x128xbf16> to vector<64x128xbf16>
    %59 = arith.extf %58 : vector<64x128xbf16> to vector<64x128xf32>
    %60 = arith.addf %56, %59 : vector<64x128xf32>
    %cst_33 = arith.constant 0.000000e+00 : f32
    %61 = vector.broadcast %cst_33 : f32 to vector<64x128xf32>
    %62 = arith.cmpf oge, %60, %61 : vector<64x128xf32>
    %cst_34 = arith.constant 2.000000e-01 : f32
    %63 = vector.broadcast %cst_34 : f32 to vector<64x128xf32>
    %64 = arith.mulf %63, %60 : vector<64x128xf32>
    %65 = arith.select %62, %60, %64 : vector<64x128xi1>, vector<64x128xf32>
    %c1_35 = arith.constant 1 : index
    %c0_36 = arith.constant 0 : index
    %c0_37 = arith.constant 0 : index
    %66 = vector.load %arg8[%c1_35, %c0_36, %c0_37] : memref<4x64x1xf32, #tpu.memory_space<vmem>>, vector<1x64x1xf32>
    %67 = vector.shape_cast %66 : vector<1x64x1xf32> to vector<64x1xf32>
    %cst_38 = arith.constant dense<0xFF800000> : vector<64xf32>
    %68 = vector.multi_reduction <maximumf>, %65, %cst_38 [1] : vector<64x128xf32> to vector<64xf32>
    %69 = vector.shape_cast %68 : vector<64xf32> to vector<64x1xf32>
    %70 = arith.maximumf %67, %69 : vector<64x1xf32>
    %71 = arith.subf %67, %70 : vector<64x1xf32>
    %72 = math.exp %71 : vector<64x1xf32>
    %73 = vector.broadcast %70 : vector<64x1xf32> to vector<64x128xf32>
    %74 = arith.subf %65, %73 : vector<64x128xf32>
    %75 = math.exp %74 : vector<64x128xf32>
    %c1_39 = arith.constant 1 : index
    %c0_40 = arith.constant 0 : index
    %c0_41 = arith.constant 0 : index
    %76 = vector.load %arg9[%c1_39, %c0_40, %c0_41] : memref<4x64x1xf32, #tpu.memory_space<vmem>>, vector<1x64x1xf32>
    %77 = vector.shape_cast %76 : vector<1x64x1xf32> to vector<64x1xf32>
    %78 = arith.mulf %72, %77 : vector<64x1xf32>
    %cst_42 = arith.constant dense<0.000000e+00> : vector<64xf32>
    %79 = vector.multi_reduction <add>, %75, %cst_42 [1] : vector<64x128xf32> to vector<64xf32>
    %80 = vector.shape_cast %79 : vector<64xf32> to vector<64x1xf32>
    %81 = arith.addf %78, %80 : vector<64x1xf32>
    %c1_43 = arith.constant 1 : index
    %c0_44 = arith.constant 0 : index
    %c0_45 = arith.constant 0 : index
    %82 = vector.load %arg9[%c1_43, %c0_44, %c0_45] : memref<4x64x1xf32, #tpu.memory_space<vmem>>, vector<1x64x1xf32>
    %83 = vector.shape_cast %82 : vector<1x64x1xf32> to vector<64x1xf32>
    %84 = vector.shape_cast %81 : vector<64x1xf32> to vector<1x64x1xf32>
    tpu.vector_store %arg9[%c1_43, %c0_44, %c0_45], %84 {strides = array<i32>} : memref<4x64x1xf32, #tpu.memory_space<vmem>>, vector<1x64x1xf32>,
    %c0_46 = arith.constant 0 : index
    %c128 = arith.constant 128 : index
    %85 = vector.load %arg2[%c0_46, %c128] : memref<128x512xbf16, #tpu.memory_space<vmem>>, vector<128x128xbf16>
    %c1_47 = arith.constant 1 : index
    %c0_48 = arith.constant 0 : index
    %c0_49 = arith.constant 0 : index
    %86 = vector.load %arg10[%c1_47, %c0_48, %c0_49] : memref<4x64x128xf32, #tpu.memory_space<vmem>>, vector<1x64x128xf32>
    %87 = vector.shape_cast %86 : vector<1x64x128xf32> to vector<64x128xf32>
    %88 = vector.broadcast %72 : vector<64x1xf32> to vector<64x128xf32>
    %89 = arith.mulf %88, %87 : vector<64x128xf32>
    %90 = arith.truncf %75 : vector<64x128xf32> to vector<64x128xbf16>
    %cst_50 = arith.constant dense<0.000000e+00> : vector<64x128xf32>
    %91 = tpu.matmul %90, %85, %cst_50 {dimension_numbers = #tpu.dot_dimension_numbers<[1], [0], [0], [1], [0, 0, 1, 1], [], []>} : vector<64x128xbf16>, vector<128x128xbf16>, vector<64x128xf32> -> vector<64x128xf32>
    %92 = arith.addf %89, %91 : vector<64x128xf32>
    %c1_51 = arith.constant 1 : index
    %c0_52 = arith.constant 0 : index
    %c0_53 = arith.constant 0 : index
    %93 = vector.load %arg10[%c1_51, %c0_52, %c0_53] : memref<4x64x128xf32, #tpu.memory_space<vmem>>, vector<1x64x128xf32>
    %94 = vector.shape_cast %93 : vector<1x64x128xf32> to vector<64x128xf32>
    %95 = vector.shape_cast %92 : vector<64x128xf32> to vector<1x64x128xf32>
    tpu.vector_store %arg10[%c1_51, %c0_52, %c0_53], %95 {strides = array<i32>} : memref<4x64x128xf32, #tpu.memory_space<vmem>>, vector<1x64x128xf32>,
    %c1_54 = arith.constant 1 : index
    %c0_55 = arith.constant 0 : index
    %c0_56 = arith.constant 0 : index
    %96 = vector.load %arg8[%c1_54, %c0_55, %c0_56] : memref<4x64x1xf32, #tpu.memory_space<vmem>>, vector<1x64x1xf32>
    %97 = vector.shape_cast %96 : vector<1x64x1xf32> to vector<64x1xf32>
    %98 = vector.shape_cast %70 : vector<64x1xf32> to vector<1x64x1xf32>
    tpu.vector_store %arg8[%c1_54, %c0_55, %c0_56], %98 {strides = array<i32>} : memref<4x64x1xf32, #tpu.memory_space<vmem>>, vector<1x64x1xf32>,
    %99 = vector.extract_strided_slice %3 {offsets = [0, 2], sizes = [64, 1], strides = [1, 1]} : vector<64x4xf32> to vector<64x1xf32>
    %100 = vector.extract_strided_slice %4 {offsets = [2, 0], sizes = [1, 128], strides = [1, 1]} : vector<4x128xf32> to vector<1x128xf32>
    %101 = vector.broadcast %99 : vector<64x1xf32> to vector<64x128xf32>
    %102 = vector.broadcast %100 : vector<1x128xf32> to vector<64x128xf32>
    %103 = arith.addf %101, %102 : vector<64x128xf32>
    %c2 = arith.constant 2 : index
    %c0_57 = arith.constant 0 : index
    %c0_58 = arith.constant 0 : index
    %104 = vector.load %arg6[%c2, %c0_57, %c0_58] : memref<4x64x128xbf16, #tpu.memory_space<vmem>>, vector<1x64x128xbf16>
    %105 = vector.shape_cast %104 : vector<1x64x128xbf16> to vector<64x128xbf16>
    %106 = arith.extf %105 : vector<64x128xbf16> to vector<64x128xf32>
    %107 = arith.addf %103, %106 : vector<64x128xf32>
    %cst_59 = arith.constant 0.000000e+00 : f32
    %108 = vector.broadcast %cst_59 : f32 to vector<64x128xf32>
    %109 = arith.cmpf oge, %107, %108 : vector<64x128xf32>
    %cst_60 = arith.constant 2.000000e-01 : f32
    %110 = vector.broadcast %cst_60 : f32 to vector<64x128xf32>
    %111 = arith.mulf %110, %107 : vector<64x128xf32>
    %112 = arith.select %109, %107, %111 : vector<64x128xi1>, vector<64x128xf32>
    %c2_61 = arith.constant 2 : index
    %c0_62 = arith.constant 0 : index
    %c0_63 = arith.constant 0 : index
    %113 = vector.load %arg8[%c2_61, %c0_62, %c0_63] : memref<4x64x1xf32, #tpu.memory_space<vmem>>, vector<1x64x1xf32>
    %114 = vector.shape_cast %113 : vector<1x64x1xf32> to vector<64x1xf32>
    %cst_64 = arith.constant dense<0xFF800000> : vector<64xf32>
    %115 = vector.multi_reduction <maximumf>, %112, %cst_64 [1] : vector<64x128xf32> to vector<64xf32>
    %116 = vector.shape_cast %115 : vector<64xf32> to vector<64x1xf32>
    %117 = arith.maximumf %114, %116 : vector<64x1xf32>
    %118 = arith.subf %114, %117 : vector<64x1xf32>
    %119 = math.exp %118 : vector<64x1xf32>
    %120 = vector.broadcast %117 : vector<64x1xf32> to vector<64x128xf32>
    %121 = arith.subf %112, %120 : vector<64x128xf32>
    %122 = math.exp %121 : vector<64x128xf32>
    %c2_65 = arith.constant 2 : index
    %c0_66 = arith.constant 0 : index
    %c0_67 = arith.constant 0 : index
    %123 = vector.load %arg9[%c2_65, %c0_66, %c0_67] : memref<4x64x1xf32, #tpu.memory_space<vmem>>, vector<1x64x1xf32>
    %124 = vector.shape_cast %123 : vector<1x64x1xf32> to vector<64x1xf32>
    %125 = arith.mulf %119, %124 : vector<64x1xf32>
    %cst_68 = arith.constant dense<0.000000e+00> : vector<64xf32>
    %126 = vector.multi_reduction <add>, %122, %cst_68 [1] : vector<64x128xf32> to vector<64xf32>
    %127 = vector.shape_cast %126 : vector<64xf32> to vector<64x1xf32>
    %128 = arith.addf %125, %127 : vector<64x1xf32>
    %c2_69 = arith.constant 2 : index
    %c0_70 = arith.constant 0 : index
    %c0_71 = arith.constant 0 : index
    %129 = vector.load %arg9[%c2_69, %c0_70, %c0_71] : memref<4x64x1xf32, #tpu.memory_space<vmem>>, vector<1x64x1xf32>
    %130 = vector.shape_cast %129 : vector<1x64x1xf32> to vector<64x1xf32>
    %131 = vector.shape_cast %128 : vector<64x1xf32> to vector<1x64x1xf32>
    tpu.vector_store %arg9[%c2_69, %c0_70, %c0_71], %131 {strides = array<i32>} : memref<4x64x1xf32, #tpu.memory_space<vmem>>, vector<1x64x1xf32>,
    %c0_72 = arith.constant 0 : index
    %c256 = arith.constant 256 : index
    %132 = vector.load %arg2[%c0_72, %c256] : memref<128x512xbf16, #tpu.memory_space<vmem>>, vector<128x128xbf16>
    %c2_73 = arith.constant 2 : index
    %c0_74 = arith.constant 0 : index
    %c0_75 = arith.constant 0 : index
    %133 = vector.load %arg10[%c2_73, %c0_74, %c0_75] : memref<4x64x128xf32, #tpu.memory_space<vmem>>, vector<1x64x128xf32>
    %134 = vector.shape_cast %133 : vector<1x64x128xf32> to vector<64x128xf32>
    %135 = vector.broadcast %119 : vector<64x1xf32> to vector<64x128xf32>
    %136 = arith.mulf %135, %134 : vector<64x128xf32>
    %137 = arith.truncf %122 : vector<64x128xf32> to vector<64x128xbf16>
    %cst_76 = arith.constant dense<0.000000e+00> : vector<64x128xf32>
    %138 = tpu.matmul %137, %132, %cst_76 {dimension_numbers = #tpu.dot_dimension_numbers<[1], [0], [0], [1], [0, 0, 1, 1], [], []>} : vector<64x128xbf16>, vector<128x128xbf16>, vector<64x128xf32> -> vector<64x128xf32>
    %139 = arith.addf %136, %138 : vector<64x128xf32>
    %c2_77 = arith.constant 2 : index
    %c0_78 = arith.constant 0 : index
    %c0_79 = arith.constant 0 : index
    %140 = vector.load %arg10[%c2_77, %c0_78, %c0_79] : memref<4x64x128xf32, #tpu.memory_space<vmem>>, vector<1x64x128xf32>
    %141 = vector.shape_cast %140 : vector<1x64x128xf32> to vector<64x128xf32>
    %142 = vector.shape_cast %139 : vector<64x128xf32> to vector<1x64x128xf32>
    tpu.vector_store %arg10[%c2_77, %c0_78, %c0_79], %142 {strides = array<i32>} : memref<4x64x128xf32, #tpu.memory_space<vmem>>, vector<1x64x128xf32>,
    %c2_80 = arith.constant 2 : index
    %c0_81 = arith.constant 0 : index
    %c0_82 = arith.constant 0 : index
    %143 = vector.load %arg8[%c2_80, %c0_81, %c0_82] : memref<4x64x1xf32, #tpu.memory_space<vmem>>, vector<1x64x1xf32>
    %144 = vector.shape_cast %143 : vector<1x64x1xf32> to vector<64x1xf32>
    %145 = vector.shape_cast %117 : vector<64x1xf32> to vector<1x64x1xf32>
    tpu.vector_store %arg8[%c2_80, %c0_81, %c0_82], %145 {strides = array<i32>} : memref<4x64x1xf32, #tpu.memory_space<vmem>>, vector<1x64x1xf32>,
    %146 = vector.extract_strided_slice %3 {offsets = [0, 3], sizes = [64, 1], strides = [1, 1]} : vector<64x4xf32> to vector<64x1xf32>
    %147 = vector.extract_strided_slice %4 {offsets = [3, 0], sizes = [1, 128], strides = [1, 1]} : vector<4x128xf32> to vector<1x128xf32>
    %148 = vector.broadcast %146 : vector<64x1xf32> to vector<64x128xf32>
    %149 = vector.broadcast %147 : vector<1x128xf32> to vector<64x128xf32>
    %150 = arith.addf %148, %149 : vector<64x128xf32>
    %c3 = arith.constant 3 : index
    %c0_83 = arith.constant 0 : index
    %c0_84 = arith.constant 0 : index
    %151 = vector.load %arg6[%c3, %c0_83, %c0_84] : memref<4x64x128xbf16, #tpu.memory_space<vmem>>, vector<1x64x128xbf16>
    %152 = vector.shape_cast %151 : vector<1x64x128xbf16> to vector<64x128xbf16>
    %153 = arith.extf %152 : vector<64x128xbf16> to vector<64x128xf32>
    %154 = arith.addf %150, %153 : vector<64x128xf32>
    %cst_85 = arith.constant 0.000000e+00 : f32
    %155 = vector.broadcast %cst_85 : f32 to vector<64x128xf32>
    %156 = arith.cmpf oge, %154, %155 : vector<64x128xf32>
    %cst_86 = arith.constant 2.000000e-01 : f32
    %157 = vector.broadcast %cst_86 : f32 to vector<64x128xf32>
    %158 = arith.mulf %157, %154 : vector<64x128xf32>
    %159 = arith.select %156, %154, %158 : vector<64x128xi1>, vector<64x128xf32>
    %c3_87 = arith.constant 3 : index
    %c0_88 = arith.constant 0 : index
    %c0_89 = arith.constant 0 : index
    %160 = vector.load %arg8[%c3_87, %c0_88, %c0_89] : memref<4x64x1xf32, #tpu.memory_space<vmem>>, vector<1x64x1xf32>
    %161 = vector.shape_cast %160 : vector<1x64x1xf32> to vector<64x1xf32>
    %cst_90 = arith.constant dense<0xFF800000> : vector<64xf32>
    %162 = vector.multi_reduction <maximumf>, %159, %cst_90 [1] : vector<64x128xf32> to vector<64xf32>
    %163 = vector.shape_cast %162 : vector<64xf32> to vector<64x1xf32>
    %164 = arith.maximumf %161, %163 : vector<64x1xf32>
    %165 = arith.subf %161, %164 : vector<64x1xf32>
    %166 = math.exp %165 : vector<64x1xf32>
    %167 = vector.broadcast %164 : vector<64x1xf32> to vector<64x128xf32>
    %168 = arith.subf %159, %167 : vector<64x128xf32>
    %169 = math.exp %168 : vector<64x128xf32>
    %c3_91 = arith.constant 3 : index
    %c0_92 = arith.constant 0 : index
    %c0_93 = arith.constant 0 : index
    %170 = vector.load %arg9[%c3_91, %c0_92, %c0_93] : memref<4x64x1xf32, #tpu.memory_space<vmem>>, vector<1x64x1xf32>
    %171 = vector.shape_cast %170 : vector<1x64x1xf32> to vector<64x1xf32>
    %172 = arith.mulf %166, %171 : vector<64x1xf32>
    %cst_94 = arith.constant dense<0.000000e+00> : vector<64xf32>
    %173 = vector.multi_reduction <add>, %169, %cst_94 [1] : vector<64x128xf32> to vector<64xf32>
    %174 = vector.shape_cast %173 : vector<64xf32> to vector<64x1xf32>
    %175 = arith.addf %172, %174 : vector<64x1xf32>
    %c3_95 = arith.constant 3 : index
    %c0_96 = arith.constant 0 : index
    %c0_97 = arith.constant 0 : index
    %176 = vector.load %arg9[%c3_95, %c0_96, %c0_97] : memref<4x64x1xf32, #tpu.memory_space<vmem>>, vector<1x64x1xf32>
    %177 = vector.shape_cast %176 : vector<1x64x1xf32> to vector<64x1xf32>
    %178 = vector.shape_cast %175 : vector<64x1xf32> to vector<1x64x1xf32>
    tpu.vector_store %arg9[%c3_95, %c0_96, %c0_97], %178 {strides = array<i32>} : memref<4x64x1xf32, #tpu.memory_space<vmem>>, vector<1x64x1xf32>,
    %c0_98 = arith.constant 0 : index
    %c384 = arith.constant 384 : index
    %179 = vector.load %arg2[%c0_98, %c384] : memref<128x512xbf16, #tpu.memory_space<vmem>>, vector<128x128xbf16>
    %c3_99 = arith.constant 3 : index
    %c0_100 = arith.constant 0 : index
    %c0_101 = arith.constant 0 : index
    %180 = vector.load %arg10[%c3_99, %c0_100, %c0_101] : memref<4x64x128xf32, #tpu.memory_space<vmem>>, vector<1x64x128xf32>
    %181 = vector.shape_cast %180 : vector<1x64x128xf32> to vector<64x128xf32>
    %182 = vector.broadcast %166 : vector<64x1xf32> to vector<64x128xf32>
    %183 = arith.mulf %182, %181 : vector<64x128xf32>
    %184 = arith.truncf %169 : vector<64x128xf32> to vector<64x128xbf16>
    %cst_102 = arith.constant dense<0.000000e+00> : vector<64x128xf32>
    %185 = tpu.matmul %184, %179, %cst_102 {dimension_numbers = #tpu.dot_dimension_numbers<[1], [0], [0], [1], [0, 0, 1, 1], [], []>} : vector<64x128xbf16>, vector<128x128xbf16>, vector<64x128xf32> -> vector<64x128xf32>
    %186 = arith.addf %183, %185 : vector<64x128xf32>
    %c3_103 = arith.constant 3 : index
    %c0_104 = arith.constant 0 : index
    %c0_105 = arith.constant 0 : index
    %187 = vector.load %arg10[%c3_103, %c0_104, %c0_105] : memref<4x64x128xf32, #tpu.memory_space<vmem>>, vector<1x64x128xf32>
    %188 = vector.shape_cast %187 : vector<1x64x128xf32> to vector<64x128xf32>
    %189 = vector.shape_cast %186 : vector<64x128xf32> to vector<1x64x128xf32>
    tpu.vector_store %arg10[%c3_103, %c0_104, %c0_105], %189 {strides = array<i32>} : memref<4x64x128xf32, #tpu.memory_space<vmem>>, vector<1x64x128xf32>,
    %c3_106 = arith.constant 3 : index
    %c0_107 = arith.constant 0 : index
    %c0_108 = arith.constant 0 : index
    %190 = vector.load %arg8[%c3_106, %c0_107, %c0_108] : memref<4x64x1xf32, #tpu.memory_space<vmem>>, vector<1x64x1xf32>
    %191 = vector.shape_cast %190 : vector<1x64x1xf32> to vector<64x1xf32>
    %192 = vector.shape_cast %164 : vector<64x1xf32> to vector<1x64x1xf32>
    tpu.vector_store %arg8[%c3_106, %c0_107, %c0_108], %192 {strides = array<i32>} : memref<4x64x1xf32, #tpu.memory_space<vmem>>, vector<1x64x1xf32>,
    %c1_i32 = arith.constant 1 : i32
    %193 = arith.cmpi eq, %arg1, %c1_i32 : i32
    %194 = arith.extui %193 : i1 to i32
    %c0_i32_109 = arith.constant 0 : i32
    %195 = arith.cmpi ne, %194, %c0_i32_109 : i32
    scf.if %195 {
      %cst_110 = arith.constant 0.000000e+00 : f32
      %196 = vector.broadcast %cst_110 : f32 to vector<64x128xf32>
      %c0_111 = arith.constant 0 : index
      %c0_112 = arith.constant 0 : index
      %c0_113 = arith.constant 0 : index
      %197 = vector.load %arg10[%c0_111, %c0_112, %c0_113] : memref<4x64x128xf32, #tpu.memory_space<vmem>>, vector<1x64x128xf32>
      %198 = vector.shape_cast %197 : vector<1x64x128xf32> to vector<64x128xf32>
      %c0_114 = arith.constant 0 : index
      %c0_115 = arith.constant 0 : index
      %c0_116 = arith.constant 0 : index
      %199 = vector.load %arg9[%c0_114, %c0_115, %c0_116] : memref<4x64x1xf32, #tpu.memory_space<vmem>>, vector<1x64x1xf32>
      %200 = vector.shape_cast %199 : vector<1x64x1xf32> to vector<64x1xf32>
      %201 = tpu.reciprocal %200 {approx = true} : vector<64x1xf32> -> vector<64x1xf32>
      %202 = vector.broadcast %201 : vector<64x1xf32> to vector<64x128xf32>
      %203 = arith.mulf %198, %202 : vector<64x128xf32>
      %204 = arith.addf %196, %203 : vector<64x128xf32>
      %c1_117 = arith.constant 1 : index
      %c0_118 = arith.constant 0 : index
      %c0_119 = arith.constant 0 : index
      %205 = vector.load %arg10[%c1_117, %c0_118, %c0_119] : memref<4x64x128xf32, #tpu.memory_space<vmem>>, vector<1x64x128xf32>
      %206 = vector.shape_cast %205 : vector<1x64x128xf32> to vector<64x128xf32>
      %c1_120 = arith.constant 1 : index
      %c0_121 = arith.constant 0 : index
      %c0_122 = arith.constant 0 : index
      %207 = vector.load %arg9[%c1_120, %c0_121, %c0_122] : memref<4x64x1xf32, #tpu.memory_space<vmem>>, vector<1x64x1xf32>
      %208 = vector.shape_cast %207 : vector<1x64x1xf32> to vector<64x1xf32>
      %209 = tpu.reciprocal %208 {approx = true} : vector<64x1xf32> -> vector<64x1xf32>
      %210 = vector.broadcast %209 : vector<64x1xf32> to vector<64x128xf32>
      %211 = arith.mulf %206, %210 : vector<64x128xf32>
      %212 = arith.addf %204, %211 : vector<64x128xf32>
      %c2_123 = arith.constant 2 : index
      %c0_124 = arith.constant 0 : index
      %c0_125 = arith.constant 0 : index
      %213 = vector.load %arg10[%c2_123, %c0_124, %c0_125] : memref<4x64x128xf32, #tpu.memory_space<vmem>>, vector<1x64x128xf32>
      %214 = vector.shape_cast %213 : vector<1x64x128xf32> to vector<64x128xf32>
      %c2_126 = arith.constant 2 : index
      %c0_127 = arith.constant 0 : index
      %c0_128 = arith.constant 0 : index
      %215 = vector.load %arg9[%c2_126, %c0_127, %c0_128] : memref<4x64x1xf32, #tpu.memory_space<vmem>>, vector<1x64x1xf32>
      %216 = vector.shape_cast %215 : vector<1x64x1xf32> to vector<64x1xf32>
      %217 = tpu.reciprocal %216 {approx = true} : vector<64x1xf32> -> vector<64x1xf32>
      %218 = vector.broadcast %217 : vector<64x1xf32> to vector<64x128xf32>
      %219 = arith.mulf %214, %218 : vector<64x128xf32>
      %220 = arith.addf %212, %219 : vector<64x128xf32>
      %c3_129 = arith.constant 3 : index
      %c0_130 = arith.constant 0 : index
      %c0_131 = arith.constant 0 : index
      %221 = vector.load %arg10[%c3_129, %c0_130, %c0_131] : memref<4x64x128xf32, #tpu.memory_space<vmem>>, vector<1x64x128xf32>
      %222 = vector.shape_cast %221 : vector<1x64x128xf32> to vector<64x128xf32>
      %c3_132 = arith.constant 3 : index
      %c0_133 = arith.constant 0 : index
      %c0_134 = arith.constant 0 : index
      %223 = vector.load %arg9[%c3_132, %c0_133, %c0_134] : memref<4x64x1xf32, #tpu.memory_space<vmem>>, vector<1x64x1xf32>
      %224 = vector.shape_cast %223 : vector<1x64x1xf32> to vector<64x1xf32>
      %225 = tpu.reciprocal %224 {approx = true} : vector<64x1xf32> -> vector<64x1xf32>
      %226 = vector.broadcast %225 : vector<64x1xf32> to vector<64x128xf32>
      %227 = arith.mulf %222, %226 : vector<64x128xf32>
      %228 = arith.addf %220, %227 : vector<64x128xf32>
      %cst_135 = arith.constant 2.500000e-01 : f32
      %229 = vector.broadcast %cst_135 : f32 to vector<64x128xf32>
      %230 = arith.mulf %228, %229 : vector<64x128xf32>
      %c0_136 = arith.constant 0 : index
      %c0_137 = arith.constant 0 : index
      %231 = vector.load %arg5[%c0_136, %c0_137] : memref<1x128xf32, #tpu.memory_space<vmem>>, vector<1x128xf32>
      %232 = vector.broadcast %231 : vector<1x128xf32> to vector<64x128xf32>
      %233 = arith.addf %230, %232 : vector<64x128xf32>
      %c0_138 = arith.constant 0 : index
      %c0_139 = arith.constant 0 : index
      %234 = vector.load %arg7[%c0_138, %c0_139] : memref<64x128xf32, #tpu.memory_space<vmem>>, vector<64x128xf32>
      tpu.vector_store %arg7[%c0_138, %c0_139], %233 {strides = array<i32>} : memref<64x128xf32, #tpu.memory_space<vmem>>, vector<64x128xf32>,
    } else {
    }
    return
  }
  func.func @transform_0(%arg0: i32, %arg1: i32) -> (i32, i32) {
    %c0_i32 = arith.constant 0 : i32
    %c0_i32_0 = arith.constant 0 : i32
    return %arg1, %c0_i32 : i32, i32
  }
  func.func @transform_1(%arg0: i32, %arg1: i32) -> (i32, i32) {
    %c0_i32 = arith.constant 0 : i32
    %c0_i32_0 = arith.constant 0 : i32
    return %c0_i32, %arg1 : i32, i32
  }
  func.func @transform_2(%arg0: i32, %arg1: i32) -> (i32, i32) {
    %c0_i32 = arith.constant 0 : i32
    %c0_i32_0 = arith.constant 0 : i32
    return %arg0, %c0_i32 : i32, i32
  }
  func.func @transform_3(%arg0: i32, %arg1: i32) -> (i32, i32) {
    %c0_i32 = arith.constant 0 : i32
    %c0_i32_0 = arith.constant 0 : i32
    %c0_i32_1 = arith.constant 0 : i32
    return %c0_i32, %c0_i32_0 : i32, i32
  }
  func.func @transform_4(%arg0: i32, %arg1: i32) -> (i32, i32, i32) {
    %c0_i32 = arith.constant 0 : i32
    %c0_i32_0 = arith.constant 0 : i32
    return %c0_i32, %arg0, %arg1 : i32, i32, i32
  }
  func.func @transform_5(%arg0: i32, %arg1: i32) -> (i32, i32) {
    %c0_i32 = arith.constant 0 : i32
    %c0_i32_0 = arith.constant 0 : i32
    return %arg0, %c0_i32 : i32, i32
  }
}

</mosaic_0001>

<llo_original>
// kernel: tpu_custom_call.1
$region0: #{tpu_custom_call.1}
  #allocation0 [shape = 'u32[]', space=smem, size = 0x4, offset = 0x4, fixed_abs, tag = 'smem constant byte address 0x4 - core index']
  #allocation1 [shape = 'u32[144,128]{1,0:T(1,128)}', space=vmem, size = 0x12000, scoped, tag = 'internal scratch']
  #allocation2 [shape = 'f32[4,64,1]{2,1,0:T(8,128)}', space=vmem, size = 0x20000, scoped, tag = 'scratch operand']
  #allocation3 [shape = 'f32[4,64,1]{2,1,0:T(8,128)}', space=vmem, size = 0x20000, scoped, tag = 'scratch operand']
  #allocation4 [shape = 'f32[4,64,128]{2,1,0:T(8,128)}', space=vmem, size = 0x20000, scoped, tag = 'scratch operand']
  #allocation11 [shape = 's32[]', space=sflag, size = 0x4, offset = 0, fixed_abs, tag = 'sflag constant byte address 0x0 - dummy sync flag']
  %s0 = inlined_call_operand.hbm [shape: bf16[256,512], index: 0, kind: input, shape index: {}]
  %s1 = inlined_call_operand.vmem [shape: f32[4,256], index: 1, kind: input, shape index: {}]
  %s2 = inlined_call_operand.vmem [shape: f32[192,4], index: 2, kind: input, shape index: {}]
  %s3 = inlined_call_operand.vmem [shape: f32[1,128], index: 3, kind: input, shape index: {}]
  %s4 = inlined_call_operand.hbm [shape: bf16[4,192,256], index: 4, kind: input, shape index: {}]
  %s5 = inlined_call_operand.hbm [shape: f32[192,128], index: 5, kind: output, shape index: {}]
  %s6 = sld [smem:[#allocation0]]
  $region69: #{tpu_custom_call.1} parent=0
    _
  %s8 = ssub.s32 1, %s6
  %s9 = scalar_select 0, %s8, %s6
  $region1: #{tpu_custom_call.1} parent=0
    #allocation5 [shape = 'u8[262144]{0}', space=vmem, size = 0x40000, scoped, tag = 'input window, operand 0']
    #allocation6 [shape = 's32[2]{0}', space=sflag, size = 0x8, scoped, tag = 'scoped memory for tpu_custom_call.1']
    #allocation7 [shape = 's32[2]{0}', space=sflag, size = 0x8, scoped, tag = 'scoped memory for tpu_custom_call.1']
    #allocation8 [shape = 'u8[131072]{0}', space=vmem, size = 0x20000, scoped, tag = 'input window, operand 4']
    #allocation9 [shape = 's32[2]{0}', space=sflag, size = 0x8, scoped, tag = 'scoped memory for tpu_custom_call.1']
    #allocation10 [shape = 'u8[65536]{0}', space=vmem, size = 0x10000, scoped, tag = 'output window, operand 0']
    %10 = vsyncpa [#allocation6], 0
    %s11 = scalar_lea.sflag [#allocation6], 1
    %12 = vsyncpa %s11, 0
    %13 = vsyncpa [#allocation9], 0
    %s14 = scalar_lea.sflag [#allocation9], 1
    %15 = vsyncpa %s14, 0
    %16 = vsyncpa [#allocation7], 0
    %s17 = scalar_lea.sflag [#allocation7], 1
    %18 = vsyncpa %s17, 0
    loop: start=0, step=1, limit=8
    $region2: #{tpu_custom_call.1} parent=1 // loop_pre_header
      _
    $region3: #{tpu_custom_call.1} parent=1 // loop_header
      %s20 = sphi 0, %s24
      %p21 = scmp.ge.s32.totalorder %s20, 8
      %s27 = sphi 0, %s39
      %s28 = sphi 0, %s35
      %s29 = sphi 0, %s27
      %s30 = sphi 0, %s28
      %s31 = sphi 0, %s29
      %s32 = sphi 0, %s30
      %s42 = sphi 0, %s44
      %s45 = sphi 0, %s42
      %s46 = sphi 0, %s45
      %s62 = sphi 0, %s46
      %s68 = sphi 0, %s70
      %s71 = sphi 0, %s68
      %s72 = sphi 0, %s71
      %s88 = sphi 0, %s72
      %s94 = sphi 0, %s96
      %s97 = sphi 0, %s94
      %s98 = sphi 0, %s97
      %s114 = sphi 0, %s98
      %s118 = sphi 0, %s118
      %s120 = sphi 0, %s118
      %s121 = sphi 0, %s120
      %s135 = sphi 0, %s121
      %s143 = sphi 0, %s145
      %s146 = sphi 0, %s143
      %s147 = sphi 0, %s146
      %s163 = sphi 0, %s147
      %s169 = sphi 0, %s171
      %s172 = sphi 0, %s169
      %s173 = sphi 0, %s172
      %s189 = sphi 0, %s173
    $region4: #{tpu_custom_call.1} parent=1 // loop_header_branch
      %23 = sbr.rel (%p21) target = $region8
    $region5: #{tpu_custom_call.1} parent=1 // loop_body
      %s25 = ssub.s32 %s20, 1
      %s26 = ssub.s32 %s20, 2
      %s33 = sadd.s32 1, %s28
      %p34 = scmp.ge.s32.totalorder %s33, 2
      %s35 = scalar_select %p34, 0, %s33
      %s36 = sadd.s32 1, %s27
      %s37 = scalar_select %p34, %s36, %s27
      %p38 = scmp.ge.s32.totalorder %s37, 3
      %s39 = scalar_select %p38, 0, %s37
      %s40 = ssub.s32 %s28, %s35
      %p41 = scmp.eq.s32.totalorder %s40, 0
      %s43 = sadd.s32 %s42, 1
      %s44 = scalar_select %p41, %s42, %s43
      %p47 = pneg %p41
      %p48 = scmp.eq.s32.totalorder %s20, 5
      %p49 = por %p47, %p48
      %p50 = scmp.ne.s32.totalorder %s42, %s45
      %p51 = scmp.eq.s32.totalorder %s20, 0
      %p52 = por %p50, %p51
      %p53 = scmp.ne.s32.totalorder %s42, %s45
      %p54 = scmp.eq.s32.totalorder %s25, 5
      %p55 = por %p53, %p54
      %p56 = scmp.ne.s32.totalorder %s45, %s46
      %p57 = scmp.eq.s32.totalorder %s25, 0
      %p58 = por %p56, %p57
      %p59 = scmp.ne.s32.totalorder %s45, %s46
      %p60 = scmp.eq.s32.totalorder %s26, 5
      %p61 = por %p59, %p60
      %p63 = scmp.ne.s32.totalorder %s46, %s62
      %p64 = scmp.eq.s32.totalorder %s26, 0
      %p65 = por %p63, %p64
      %s66 = ssub.s32 %s28, %s35
      %p67 = scmp.eq.s32.totalorder %s66, 0
      %s69 = sadd.s32 %s68, 1
      %s70 = scalar_select %p67, %s68, %s69
      %p73 = pneg %p67
      %p74 = scmp.eq.s32.totalorder %s20, 5
      %p75 = por %p73, %p74
      %p76 = scmp.ne.s32.totalorder %s68, %s71
      %p77 = scmp.eq.s32.totalorder %s20, 0
      %p78 = por %p76, %p77
      %p79 = scmp.ne.s32.totalorder %s68, %s71
      %p80 = scmp.eq.s32.totalorder %s25, 5
      %p81 = por %p79, %p80
      %p82 = scmp.ne.s32.totalorder %s71, %s72
      %p83 = scmp.eq.s32.totalorder %s25, 0
      %p84 = por %p82, %p83
      %p85 = scmp.ne.s32.totalorder %s71, %s72
      %p86 = scmp.eq.s32.totalorder %s26, 5
      %p87 = por %p85, %p86
      %p89 = scmp.ne.s32.totalorder %s72, %s88
      %p90 = scmp.eq.s32.totalorder %s26, 0
      %p91 = por %p89, %p90
      %s92 = ssub.s32 %s27, %s39
      %p93 = scmp.eq.s32.totalorder %s92, 0
      %s95 = sadd.s32 %s94, 1
      %s96 = scalar_select %p93, %s94, %s95
      %p99 = pneg %p93
      %p100 = scmp.eq.s32.totalorder %s20, 5
      %p101 = por %p99, %p100
      %p102 = scmp.ne.s32.totalorder %s94, %s97
      %p103 = scmp.eq.s32.totalorder %s20, 0
      %p104 = por %p102, %p103
      %p105 = scmp.ne.s32.totalorder %s94, %s97
      %p106 = scmp.eq.s32.totalorder %s25, 5
      %p107 = por %p105, %p106
      %p108 = scmp.ne.s32.totalorder %s97, %s98
      %p109 = scmp.eq.s32.totalorder %s25, 0
      %p110 = por %p108, %p109
      %p111 = scmp.ne.s32.totalorder %s97, %s98
      %p112 = scmp.eq.s32.totalorder %s26, 5
      %p113 = por %p111, %p112
      %p115 = scmp.ne.s32.totalorder %s98, %s114
      %p116 = scmp.eq.s32.totalorder %s26, 0
      %p117 = por %p115, %p116
      %s119 = sadd.s32 %s118, 1
      %p122 = scmp.eq.s32.totalorder %s20, 5
      %p123 = scmp.ne.s32.totalorder %s118, %s120
      %p124 = scmp.eq.s32.totalorder %s20, 0
      %p125 = por %p123, %p124
      %p126 = scmp.ne.s32.totalorder %s118, %s120
      %p127 = scmp.eq.s32.totalorder %s25, 5
      %p128 = por %p126, %p127
      %p129 = scmp.ne.s32.totalorder %s120, %s121
      %p130 = scmp.eq.s32.totalorder %s25, 0
      %p131 = por %p129, %p130
      %p132 = scmp.ne.s32.totalorder %s120, %s121
      %p133 = scmp.eq.s32.totalorder %s26, 5
      %p134 = por %p132, %p133
      %p136 = scmp.ne.s32.totalorder %s121, %s135
      %p137 = scmp.eq.s32.totalorder %s26, 0
      %p138 = por %p136, %p137
      %s139 = ssub.s32 %s27, %s39
      %s140 = ssub.s32 %s28, %s35
      %s141 = sor.u32 %s139, %s140
      %p142 = scmp.eq.s32.totalorder %s141, 0
      %s144 = sadd.s32 %s143, 1
      %s145 = scalar_select %p142, %s143, %s144
      %p148 = pneg %p142
      %p149 = scmp.eq.s32.totalorder %s20, 5
      %p150 = por %p148, %p149
      %p151 = scmp.ne.s32.totalorder %s143, %s146
      %p152 = scmp.eq.s32.totalorder %s20, 0
      %p153 = por %p151, %p152
      %p154 = scmp.ne.s32.totalorder %s143, %s146
      %p155 = scmp.eq.s32.totalorder %s25, 5
      %p156 = por %p154, %p155
      %p157 = scmp.ne.s32.totalorder %s146, %s147
      %p158 = scmp.eq.s32.totalorder %s25, 0
      %p159 = por %p157, %p158
      %p160 = scmp.ne.s32.totalorder %s146, %s147
      %p161 = scmp.eq.s32.totalorder %s26, 5
      %p162 = por %p160, %p161
      %p164 = scmp.ne.s32.totalorder %s147, %s163
      %p165 = scmp.eq.s32.totalorder %s26, 0
      %p166 = por %p164, %p165
      %s167 = ssub.s32 %s27, %s39
      %p168 = scmp.eq.s32.totalorder %s167, 0
      %s170 = sadd.s32 %s169, 1
      %s171 = scalar_select %p168, %s169, %s170
      %p174 = pneg %p168
      %p175 = scmp.eq.s32.totalorder %s20, 5
      %p176 = por %p174, %p175
      %p177 = scmp.ne.s32.totalorder %s169, %s172
      %p178 = scmp.eq.s32.totalorder %s20, 0
      %p179 = por %p177, %p178
      %p180 = scmp.ne.s32.totalorder %s169, %s172
      %p181 = scmp.eq.s32.totalorder %s25, 5
      %p182 = por %p180, %p181
      %p183 = scmp.ne.s32.totalorder %s172, %s173
      %p184 = scmp.eq.s32.totalorder %s25, 0
      %p185 = por %p183, %p184
      %p186 = scmp.ne.s32.totalorder %s172, %s173
      %p187 = scmp.eq.s32.totalorder %s26, 5
      %p188 = por %p186, %p187
      %p190 = scmp.ne.s32.totalorder %s173, %s189
      %p191 = scmp.eq.s32.totalorder %s26, 0
      %p192 = por %p190, %p191
      %p193 = scmp.le.s32.totalorder 1, %s20
      %p194 = scmp.lt.s32.totalorder %s20, 7
      %p195 = pnand %p193, %p194
      %p196 = pneg %p195
      // Predicated region
      $region9: #{tpu_custom_call.1} parent=5 // pred_check
        _
      $region10: #{tpu_custom_call.1} parent=5 // pred_check_branch
        %198 = sbr.rel (%p195) target = $region12
      $region11: #{tpu_custom_call.1} parent=5 // pred_region
        %s199 = ssub.s32 %s20, 1
        // Predicated region
        $region13: #{tpu_custom_call.1} parent=11 // pred_check
          %p200 = pneg %p131
        $region14: #{tpu_custom_call.1} parent=11 // pred_check_branch
          %202 = sbr.rel (%p200) target = $region16
        $region15: #{tpu_custom_call.1} parent=11 // pred_region
          _
        $region16: #{tpu_custom_call.1} parent=11 // pred_fallthru
          _
      $region12: #{tpu_custom_call.1} parent=5 // pred_fallthru
        _
      %p203 = scmp.lt.s32.totalorder %s20, 6
      // Predicated region
      $region17: #{tpu_custom_call.1} parent=5 // pred_check
        %p204 = pneg %p203
      $region18: #{tpu_custom_call.1} parent=5 // pred_check_branch
        %206 = sbr.rel (%p204) target = $region20
      $region19: #{tpu_custom_call.1} parent=5 // pred_region
        // Predicated region
        $region21: #{tpu_custom_call.1} parent=19 // pred_check
          %p207 = pneg %p52
        $region22: #{tpu_custom_call.1} parent=19 // pred_check_branch
          %209 = sbr.rel (%p207) target = $region24
        $region23: #{tpu_custom_call.1} parent=19 // pred_region
          %s210 = sand.u32 %s42, 1
          %s211 = scalar_lea.sflag [#allocation6], %s210
          %s212 = sand.u32 %s42, 1
          %s213 = smul.addr %s212, 256
          %s214 = scalar_lea.vmem [#allocation5], %s213
          %s215 = smul.u32 16, %s28
          %s217 = ssub.s32 4096, 4096
          %218 = vsyncadd %s211, %s217
          %s219 = smul.addr %s215, 4
          %s220 = smul.addr %s219, 64
          %s221 = scalar_lea.hbm %s0, %s220
          %s222 = sshll.u32 %s214, 4
          %s223 = int_to_ptr.vmem [resolvable:$true] %s222
          %228 = dma.hbm_to_vmem [thread:$0]  %s221, 4096, %s223, %s211, 256, 256, 16
        $region24: #{tpu_custom_call.1} parent=19 // pred_fallthru
          _
        // Predicated region
        $region25: #{tpu_custom_call.1} parent=19 // pred_check
          %p229 = pneg %p78
        $region26: #{tpu_custom_call.1} parent=19 // pred_check_branch
          %231 = sbr.rel (%p229) target = $region28
        $region27: #{tpu_custom_call.1} parent=19 // pred_region
          %p232 = scmp.lt.s32.totalorder %s28, 1
          %s233 = scalar_select %p232, %s28, 1
          %s234 = smul.addr %s233, 4
          %s235 = scalar_lea.vmem %s1, %s234
        $region28: #{tpu_custom_call.1} parent=19 // pred_fallthru
          _
        // Predicated region
        $region29: #{tpu_custom_call.1} parent=19 // pred_check
          %p236 = pneg %p104
        $region30: #{tpu_custom_call.1} parent=19 // pred_check_branch
          %238 = sbr.rel (%p236) target = $region32
        $region31: #{tpu_custom_call.1} parent=19 // pred_region
          %s239 = smul.u32 8, %s27
          %p240 = scmp.lt.s32.totalorder %s239, 23
          %s241 = scalar_select %p240, %s239, 23
          %s242 = smul.addr %s241, 8
          %s243 = scalar_lea.vmem %s2, %s242
          %s244 = smul.u32 8, %s27
        $region32: #{tpu_custom_call.1} parent=19 // pred_fallthru
          _
        // Predicated region
        $region33: #{tpu_custom_call.1} parent=19 // pred_check
          %p245 = pneg %p153
        $region34: #{tpu_custom_call.1} parent=19 // pred_check_branch
          %247 = sbr.rel (%p245) target = $region36
        $region35: #{tpu_custom_call.1} parent=19 // pred_region
          #allocation12 [shape = 'u32[6]{0}', space=smem, size = 0x18, scoped, tag = 'DMA stride descriptor']
          %s248 = sand.u32 %s143, 1
          %s249 = scalar_lea.sflag [#allocation9], %s248
          %s250 = sand.u32 %s143, 1
          %s251 = smul.addr %s250, 128
          %s252 = scalar_lea.vmem [#allocation8], %s251
          %s253 = smul.u32 8, %s27
          %s255 = ssub.s32 2048, 2048
          %256 = vsyncadd %s249, %s255
          %s257 = smul.addr %s253, 2
          %s258 = sadd.s32 %s28, %s257
          %s259 = smul.addr %s258, 64
          %s260 = scalar_lea.hbm %s4, %s259
          %s262 = sshll.u32 1, 14
          %s263 = sxor.u32 4294967295, %s262
          %s265 = sld [smem:[#allocation0]]
          %s266 = sadd.s32 2, %s265
          %s268 = sshll.u32 7, 26
          %s269 = sxor.u32 4294967295, %s268
          %s270 = sand.u32 0, %s269
          %s271 = sshll.u32 %s266, 26
          %s272 = sor.u32 %s270, %s271
          %s273 = sshll.u32 %s252, 4
          %s274 = int_to_ptr.vmem [resolvable:$true] %s273
          %280 = sst [smem:[#allocation12]] 3072
          %s281 = scalar_lea.smem [#allocation12], 1
          %282 = sst [smem:[%s281]] 512
          %s283 = scalar_lea.smem [#allocation12], 2
          %284 = sst [smem:[%s283]] 8
          %s285 = scalar_lea.smem [#allocation12], 3
          %286 = sst [smem:[%s285]] 128
          %s287 = scalar_lea.smem [#allocation12], 4
          %288 = sst [smem:[%s287]] 64
          %s289 = scalar_lea.smem [#allocation12], 5
          %290 = sst [smem:[%s289]] 4
          %292 = dma.general %s260, 2048, %s274, %s249, [#allocation11], [#allocation12], %s272, 0
        $region36: #{tpu_custom_call.1} parent=19 // pred_fallthru
          _
      $region20: #{tpu_custom_call.1} parent=5 // pred_fallthru
        _
      %p293 = scmp.le.s32.totalorder 1, %s20
      %p294 = scmp.lt.s32.totalorder %s20, 7
      %p295 = pnand %p293, %p294
      %p296 = pneg %p295
      // Predicated region
      $region37: #{tpu_custom_call.1} parent=5 // pred_check
        _
      $region38: #{tpu_custom_call.1} parent=5 // pred_check_branch
        %298 = sbr.rel (%p295) target = $region40
      $region39: #{tpu_custom_call.1} parent=5 // pred_region
        %s299 = ssub.s32 %s20, 1
        %s300 = sand.u32 %s45, 1
        %s301 = scalar_lea.sflag [#allocation6], %s300
        %s302 = sand.u32 %s45, 1
        %s303 = smul.addr %s302, 256
        %s304 = scalar_lea.vmem [#allocation5], %s303
        // Predicated region
        $region41: #{tpu_custom_call.1} parent=39 // pred_check
          %p305 = pneg %p58
        $region42: #{tpu_custom_call.1} parent=39 // pred_check_branch
          %307 = sbr.rel (%p305) target = $region44
        $region43: #{tpu_custom_call.1} parent=39 // pred_region
          %308 = dma.done %s301, 4096
        $region44: #{tpu_custom_call.1} parent=39 // pred_fallthru
          _
        %s309 = sand.u32 %s146, 1
        %s310 = scalar_lea.sflag [#allocation9], %s309
        %s311 = sand.u32 %s146, 1
        %s312 = smul.addr %s311, 128
        %s313 = scalar_lea.vmem [#allocation8], %s312
        // Predicated region
        $region45: #{tpu_custom_call.1} parent=39 // pred_check
          %p314 = pneg %p159
        $region46: #{tpu_custom_call.1} parent=39 // pred_check_branch
          %316 = sbr.rel (%p314) target = $region48
        $region47: #{tpu_custom_call.1} parent=39 // pred_region
          %317 = dma.done %s310, 2048
        $region48: #{tpu_custom_call.1} parent=39 // pred_fallthru
          _
        %s318 = sand.u32 %s45, 1
        %s319 = scalar_lea.sflag [#allocation6], %s318
        %s320 = sand.u32 %s45, 1
        %s321 = smul.addr %s320, 256
        %s322 = scalar_lea.vmem [#allocation5], %s321
        %p323 = pneg %p58
        %p324 = pneg %p55
        %p325 = scmp.lt.s32.totalorder %s30, 1
        %s326 = scalar_select %p325, %s30, 1
        %s327 = smul.addr %s326, 4
        %s328 = scalar_lea.vmem %s1, %s327
        %p329 = pneg %p84
        %p330 = pneg %p81
        %s331 = smul.u32 8, %s29
        %p332 = scmp.lt.s32.totalorder %s331, 23
        %s333 = scalar_select %p332, %s331, 23
        %s334 = smul.addr %s333, 8
        %s335 = scalar_lea.vmem %s2, %s334
        %p336 = pneg %p110
        %p337 = pneg %p107
        %p338 = pneg %p131
        %p339 = pneg %p128
        %s340 = sand.u32 %s146, 1
        %s341 = scalar_lea.sflag [#allocation9], %s340
        %s342 = sand.u32 %s146, 1
        %s343 = smul.addr %s342, 128
        %s344 = scalar_lea.vmem [#allocation8], %s343
        %p345 = pneg %p159
        %p346 = pneg %p156
        %p347 = pneg %p185
        %p348 = pneg %p182
        %s349 = sand.u32 %s172, 1
        %s350 = scalar_lea.sflag [#allocation7], %s349
        %s351 = sand.u32 %s172, 1
        %s352 = smul.addr %s351, 64
        %s353 = scalar_lea.vmem [#allocation10], %s352
        %s354 = smul.u32 16, %s30
        %p355 = scmp.lt.s32.totalorder %s30, 1
        %s356 = scalar_select %p355, %s30, 1
        %s357 = smul.addr %s356, 4
        %s358 = scalar_lea.vmem %s1, %s357
        %s359 = smul.u32 8, %s29
        %p360 = scmp.lt.s32.totalorder %s359, 23
        %s361 = scalar_select %p360, %s359, 23
        %s362 = smul.addr %s361, 8
        %s363 = scalar_lea.vmem %s2, %s362
        %s364 = smul.u32 8, %s29
        %s365 = smul.u32 8, %s29
        %s366 = smul.u32 8, %s29
        %p368 = scmp.eq.s32.totalorder %s30, 0
        // Predicated region
        $region49: #{tpu_custom_call.1} parent=39 // pred_check
          %p369 = pneg %p368
        $region50: #{tpu_custom_call.1} parent=39 // pred_check_branch
          %371 = sbr.rel (%p369) target = $region52
        $region51: #{tpu_custom_call.1} parent=39 // pred_region
          %vm372 = vcmask 7168
          %373 = vst.msk [vmem:[#allocation2] sm:$0xff] %vm372, -inf
          %374 = vst.msk [vmem:[#allocation2 + $0x8] sm:$0xff] %vm372, -inf
          %375 = vst.msk [vmem:[#allocation2 + $0x10] sm:$0xff] %vm372, -inf
          %376 = vst.msk [vmem:[#allocation2 + $0x18] sm:$0xff] %vm372, -inf
          %377 = vst.msk [vmem:[#allocation2 + $0x20] sm:$0xff] %vm372, -inf
          %378 = vst.msk [vmem:[#allocation2 + $0x28] sm:$0xff] %vm372, -inf
          %379 = vst.msk [vmem:[#allocation2 + $0x30] sm:$0xff] %vm372, -inf
          %380 = vst.msk [vmem:[#allocation2 + $0x38] sm:$0xff] %vm372, -inf
          %381 = vst.msk [vmem:[#allocation2 + $0x40] sm:$0xff] %vm372, -inf
          %382 = vst.msk [vmem:[#allocation2 + $0x48] sm:$0xff] %vm372, -inf
          %383 = vst.msk [vmem:[#allocation2 + $0x50] sm:$0xff] %vm372, -inf
          %384 = vst.msk [vmem:[#allocation2 + $0x58] sm:$0xff] %vm372, -inf
          %385 = vst.msk [vmem:[#allocation2 + $0x60] sm:$0xff] %vm372, -inf
          %386 = vst.msk [vmem:[#allocation2 + $0x68] sm:$0xff] %vm372, -inf
          %387 = vst.msk [vmem:[#allocation2 + $0x70] sm:$0xff] %vm372, -inf
          %388 = vst.msk [vmem:[#allocation2 + $0x78] sm:$0xff] %vm372, -inf
          %389 = vst.msk [vmem:[#allocation2 + $0x80] sm:$0xff] %vm372, -inf
          %390 = vst.msk [vmem:[#allocation2 + $0x88] sm:$0xff] %vm372, -inf
          %391 = vst.msk [vmem:[#allocation2 + $0x90] sm:$0xff] %vm372, -inf
          %392 = vst.msk [vmem:[#allocation2 + $0x98] sm:$0xff] %vm372, -inf
          %393 = vst.msk [vmem:[#allocation2 + $0xa0] sm:$0xff] %vm372, -inf
          %394 = vst.msk [vmem:[#allocation2 + $0xa8] sm:$0xff] %vm372, -inf
          %395 = vst.msk [vmem:[#allocation2 + $0xb0] sm:$0xff] %vm372, -inf
          %396 = vst.msk [vmem:[#allocation2 + $0xb8] sm:$0xff] %vm372, -inf
          %397 = vst.msk [vmem:[#allocation2 + $0xc0] sm:$0xff] %vm372, -inf
          %398 = vst.msk [vmem:[#allocation2 + $0xc8] sm:$0xff] %vm372, -inf
          %399 = vst.msk [vmem:[#allocation2 + $0xd0] sm:$0xff] %vm372, -inf
          %400 = vst.msk [vmem:[#allocation2 + $0xd8] sm:$0xff] %vm372, -inf
          %401 = vst.msk [vmem:[#allocation2 + $0xe0] sm:$0xff] %vm372, -inf
          %402 = vst.msk [vmem:[#allocation2 + $0xe8] sm:$0xff] %vm372, -inf
          %403 = vst.msk [vmem:[#allocation2 + $0xf0] sm:$0xff] %vm372, -inf
          %404 = vst.msk [vmem:[#allocation2 + $0xf8] sm:$0xff] %vm372, -inf
          %405 = vst.msk [vmem:[#allocation3] sm:$0xff] %vm372, 0.0
          %406 = vst.msk [vmem:[#allocation3 + $0x8] sm:$0xff] %vm372, 0.0
          %407 = vst.msk [vmem:[#allocation3 + $0x10] sm:$0xff] %vm372, 0.0
          %408 = vst.msk [vmem:[#allocation3 + $0x18] sm:$0xff] %vm372, 0.0
          %409 = vst.msk [vmem:[#allocation3 + $0x20] sm:$0xff] %vm372, 0.0
          %410 = vst.msk [vmem:[#allocation3 + $0x28] sm:$0xff] %vm372, 0.0
          %411 = vst.msk [vmem:[#allocation3 + $0x30] sm:$0xff] %vm372, 0.0
          %412 = vst.msk [vmem:[#allocation3 + $0x38] sm:$0xff] %vm372, 0.0
          %413 = vst.msk [vmem:[#allocation3 + $0x40] sm:$0xff] %vm372, 0.0
          %414 = vst.msk [vmem:[#allocation3 + $0x48] sm:$0xff] %vm372, 0.0
          %415 = vst.msk [vmem:[#allocation3 + $0x50] sm:$0xff] %vm372, 0.0
          %416 = vst.msk [vmem:[#allocation3 + $0x58] sm:$0xff] %vm372, 0.0
          %417 = vst.msk [vmem:[#allocation3 + $0x60] sm:$0xff] %vm372, 0.0
          %418 = vst.msk [vmem:[#allocation3 + $0x68] sm:$0xff] %vm372, 0.0
          %419 = vst.msk [vmem:[#allocation3 + $0x70] sm:$0xff] %vm372, 0.0
          %420 = vst.msk [vmem:[#allocation3 + $0x78] sm:$0xff] %vm372, 0.0
          %421 = vst.msk [vmem:[#allocation3 + $0x80] sm:$0xff] %vm372, 0.0
          %422 = vst.msk [vmem:[#allocation3 + $0x88] sm:$0xff] %vm372, 0.0
          %423 = vst.msk [vmem:[#allocation3 + $0x90] sm:$0xff] %vm372, 0.0
          %424 = vst.msk [vmem:[#allocation3 + $0x98] sm:$0xff] %vm372, 0.0
          %425 = vst.msk [vmem:[#allocation3 + $0xa0] sm:$0xff] %vm372, 0.0
          %426 = vst.msk [vmem:[#allocation3 + $0xa8] sm:$0xff] %vm372, 0.0
          %427 = vst.msk [vmem:[#allocation3 + $0xb0] sm:$0xff] %vm372, 0.0
          %428 = vst.msk [vmem:[#allocation3 + $0xb8] sm:$0xff] %vm372, 0.0
          %429 = vst.msk [vmem:[#allocation3 + $0xc0] sm:$0xff] %vm372, 0.0
          %430 = vst.msk [vmem:[#allocation3 + $0xc8] sm:$0xff] %vm372, 0.0
          %431 = vst.msk [vmem:[#allocation3 + $0xd0] sm:$0xff] %vm372, 0.0
          %432 = vst.msk [vmem:[#allocation3 + $0xd8] sm:$0xff] %vm372, 0.0
          %433 = vst.msk [vmem:[#allocation3 + $0xe0] sm:$0xff] %vm372, 0.0
          %434 = vst.msk [vmem:[#allocation3 + $0xe8] sm:$0xff] %vm372, 0.0
          %435 = vst.msk [vmem:[#allocation3 + $0xf0] sm:$0xff] %vm372, 0.0
          %436 = vst.msk [vmem:[#allocation3 + $0xf8] sm:$0xff] %vm372, 0.0
          %437 = vst [vmem:[#allocation4] sm:$0xff] 0.0
          %438 = vst [vmem:[#allocation4 + $0x8] sm:$0xff] 0.0
          %439 = vst [vmem:[#allocation4 + $0x10] sm:$0xff] 0.0
          %440 = vst [vmem:[#allocation4 + $0x18] sm:$0xff] 0.0
          %441 = vst [vmem:[#allocation4 + $0x20] sm:$0xff] 0.0
          %442 = vst [vmem:[#allocation4 + $0x28] sm:$0xff] 0.0
          %443 = vst [vmem:[#allocation4 + $0x30] sm:$0xff] 0.0
          %444 = vst [vmem:[#allocation4 + $0x38] sm:$0xff] 0.0
          %445 = vst [vmem:[#allocation4 + $0x40] sm:$0xff] 0.0
          %446 = vst [vmem:[#allocation4 + $0x48] sm:$0xff] 0.0
          %447 = vst [vmem:[#allocation4 + $0x50] sm:$0xff] 0.0
          %448 = vst [vmem:[#allocation4 + $0x58] sm:$0xff] 0.0
          %449 = vst [vmem:[#allocation4 + $0x60] sm:$0xff] 0.0
          %450 = vst [vmem:[#allocation4 + $0x68] sm:$0xff] 0.0
          %451 = vst [vmem:[#allocation4 + $0x70] sm:$0xff] 0.0
          %452 = vst [vmem:[#allocation4 + $0x78] sm:$0xff] 0.0
          %453 = vst [vmem:[#allocation4 + $0x80] sm:$0xff] 0.0
          %454 = vst [vmem:[#allocation4 + $0x88] sm:$0xff] 0.0
          %455 = vst [vmem:[#allocation4 + $0x90] sm:$0xff] 0.0
          %456 = vst [vmem:[#allocation4 + $0x98] sm:$0xff] 0.0
          %457 = vst [vmem:[#allocation4 + $0xa0] sm:$0xff] 0.0
          %458 = vst [vmem:[#allocation4 + $0xa8] sm:$0xff] 0.0
          %459 = vst [vmem:[#allocation4 + $0xb0] sm:$0xff] 0.0
          %460 = vst [vmem:[#allocation4 + $0xb8] sm:$0xff] 0.0
          %461 = vst [vmem:[#allocation4 + $0xc0] sm:$0xff] 0.0
          %462 = vst [vmem:[#allocation4 + $0xc8] sm:$0xff] 0.0
          %463 = vst [vmem:[#allocation4 + $0xd0] sm:$0xff] 0.0
          %464 = vst [vmem:[#allocation4 + $0xd8] sm:$0xff] 0.0
          %465 = vst [vmem:[#allocation4 + $0xe0] sm:$0xff] 0.0
          %466 = vst [vmem:[#allocation4 + $0xe8] sm:$0xff] 0.0
          %467 = vst [vmem:[#allocation4 + $0xf0] sm:$0xff] 0.0
          %468 = vst [vmem:[#allocation4 + $0xf8] sm:$0xff] 0.0
        $region52: #{tpu_custom_call.1} parent=39 // pred_fallthru
          _
        %v469 = vld [vmem:[%s363] sm:$0xff]
        %v470 = vld [vmem:[%s363 + $0x8] sm:$0xff]
        %v471 = vld [vmem:[%s363 + $0x10] sm:$0xff]
        %v472 = vld [vmem:[%s363 + $0x18] sm:$0xff]
        %v473 = vld [vmem:[%s363 + $0x20] sm:$0xff]
        %v474 = vld [vmem:[%s363 + $0x28] sm:$0xff]
        %v475 = vld [vmem:[%s363 + $0x30] sm:$0xff]
        %v476 = vld [vmem:[%s363 + $0x38] sm:$0xff]
        %v477 = vld [vmem:[%s358] sm:$0xf]
        %479 = vset.pattern.permute.xlu0 0
        %480 = vperm.xlu0 %479, %v469
        %v481 = vpop.permute.xlu0 %480
        %484 = vset.pattern.permute.xlu0 0
        %485 = vperm.xlu0 %484, %v470
        %v486 = vpop.permute.xlu0 %485
        %489 = vset.pattern.permute.xlu0 0
        %490 = vperm.xlu0 %489, %v471
        %v491 = vpop.permute.xlu0 %490
        %494 = vset.pattern.permute.xlu0 0
        %495 = vperm.xlu0 %494, %v472
        %v496 = vpop.permute.xlu0 %495
        %499 = vset.pattern.permute.xlu0 0
        %500 = vperm.xlu0 %499, %v473
        %v501 = vpop.permute.xlu0 %500
        %504 = vset.pattern.permute.xlu0 0
        %505 = vperm.xlu0 %504, %v474
        %v506 = vpop.permute.xlu0 %505
        %509 = vset.pattern.permute.xlu0 0
        %510 = vperm.xlu0 %509, %v475
        %v511 = vpop.permute.xlu0 %510
        %514 = vset.pattern.permute.xlu0 0
        %515 = vperm.xlu0 %514, %v476
        %v516 = vpop.permute.xlu0 %515
        %v518 = vlaneseq
        %v519 = vshrl.u32 %v518, 7
        %v520 = vsub.s32 0, %v519
        %v521 = vrot.slane %v477, %v520
        %v522 = vadd.f32 %v481, %v521
        %v523 = vadd.f32 %v486, %v521
        %v524 = vadd.f32 %v491, %v521
        %v525 = vadd.f32 %v496, %v521
        %v526 = vadd.f32 %v501, %v521
        %v527 = vadd.f32 %v506, %v521
        %v528 = vadd.f32 %v511, %v521
        %v529 = vadd.f32 %v516, %v521
        %v530 = vld [vmem:[%s313] sm:$0xf]
        %v531 = vld [vmem:[%s313 + $0x4] sm:$0xf]
        %v532 = vld [vmem:[%s313 + $0x8] sm:$0xf]
        %v533 = vld [vmem:[%s313 + $0xc] sm:$0xf]
        %v534 = vld [vmem:[%s313 + $0x10] sm:$0xf]
        %v535 = vld [vmem:[%s313 + $0x14] sm:$0xf]
        %v536 = vld [vmem:[%s313 + $0x18] sm:$0xf]
        %v537 = vld [vmem:[%s313 + $0x1c] sm:$0xf]
        %v538 = vunpack.c.l.bf16 %v530
        %v539 = vunpack.c.l.bf16 %v531
        %v540 = vunpack.c.l.bf16 %v532
        %v541 = vunpack.c.l.bf16 %v533
        %v542 = vunpack.c.l.bf16 %v534
        %v543 = vunpack.c.l.bf16 %v535
        %v544 = vunpack.c.l.bf16 %v536
        %v545 = vunpack.c.l.bf16 %v537
        %v546 = vadd.f32 %v522, %v538
        %v547 = vadd.f32 %v523, %v539
        %v548 = vadd.f32 %v524, %v540
        %v549 = vadd.f32 %v525, %v541
        %v550 = vadd.f32 %v526, %v542
        %v551 = vadd.f32 %v527, %v543
        %v552 = vadd.f32 %v528, %v544
        %v553 = vadd.f32 %v529, %v545
        %vm554 = vcmp.ge.f32.partialorder %v546, 0.0
        %vm555 = vcmp.ge.f32.partialorder %v547, 0.0
        %vm556 = vcmp.ge.f32.partialorder %v548, 0.0
        %vm557 = vcmp.ge.f32.partialorder %v549, 0.0
        %vm558 = vcmp.ge.f32.partialorder %v550, 0.0
        %vm559 = vcmp.ge.f32.partialorder %v551, 0.0
        %vm560 = vcmp.ge.f32.partialorder %v552, 0.0
        %vm561 = vcmp.ge.f32.partialorder %v553, 0.0
        %v562 = vmul.f32 %v546, 0.2
        %v563 = vmul.f32 %v547, 0.2
        %v564 = vmul.f32 %v548, 0.2
        %v565 = vmul.f32 %v549, 0.2
        %v566 = vmul.f32 %v550, 0.2
        %v567 = vmul.f32 %v551, 0.2
        %v568 = vmul.f32 %v552, 0.2
        %v569 = vmul.f32 %v553, 0.2
        %v570 = vsel %vm554, %v546, %v562
        %v571 = vsel %vm555, %v547, %v563
        %v572 = vsel %vm556, %v548, %v564
        %v573 = vsel %vm557, %v549, %v565
        %v574 = vsel %vm558, %v550, %v566
        %v575 = vsel %vm559, %v551, %v567
        %v576 = vsel %vm560, %v552, %v568
        %v577 = vsel %vm561, %v553, %v569
        %v578 = vld [vmem:[#allocation2] sm:$0xff]
        %v579 = vld [vmem:[#allocation2 + $0x8] sm:$0xff]
        %v580 = vld [vmem:[#allocation2 + $0x10] sm:$0xff]
        %v581 = vld [vmem:[#allocation2 + $0x18] sm:$0xff]
        %v582 = vld [vmem:[#allocation2 + $0x20] sm:$0xff]
        %v583 = vld [vmem:[#allocation2 + $0x28] sm:$0xff]
        %v584 = vld [vmem:[#allocation2 + $0x30] sm:$0xff]
        %v585 = vld [vmem:[#allocation2 + $0x38] sm:$0xff]
        %586 = vmax.xlane.f32.xlu0 %v570
        %v587 = vpop.xlane.xlu0 %586
        %588 = vmax.xlane.f32.xlu0 %v571
        %v589 = vpop.xlane.xlu0 %588
        %590 = vmax.xlane.f32.xlu0 %v572
        %v591 = vpop.xlane.xlu0 %590
        %592 = vmax.xlane.f32.xlu0 %v573
        %v593 = vpop.xlane.xlu0 %592
        %594 = vmax.xlane.f32.xlu0 %v574
        %v595 = vpop.xlane.xlu0 %594
        %596 = vmax.xlane.f32.xlu0 %v575
        %v597 = vpop.xlane.xlu0 %596
        %598 = vmax.xlane.f32.xlu0 %v576
        %v599 = vpop.xlane.xlu0 %598
        %600 = vmax.xlane.f32.xlu0 %v577
        %v601 = vpop.xlane.xlu0 %600
        %v602 = vmax.f32 %v578, %v587
        %v603 = vmax.f32 %v579, %v589
        %v604 = vmax.f32 %v580, %v591
        %v605 = vmax.f32 %v581, %v593
        %v606 = vmax.f32 %v582, %v595
        %v607 = vmax.f32 %v583, %v597
        %v608 = vmax.f32 %v584, %v599
        %v609 = vmax.f32 %v585, %v601
        %v610 = vsub.f32 %v578, %v602
        %v611 = vsub.f32 %v579, %v603
        %v612 = vsub.f32 %v580, %v604
        %v613 = vsub.f32 %v581, %v605
        %v614 = vsub.f32 %v582, %v606
        %v615 = vsub.f32 %v583, %v607
        %v616 = vsub.f32 %v584, %v608
        %v617 = vsub.f32 %v585, %v609
        %v618 = vmul.f32 %v610, 1.442695
        %v619 = vpow.pop %v618
        %v620 = vmul.f32 %v611, 1.442695
        %v621 = vpow.pop %v620
        %v622 = vmul.f32 %v612, 1.442695
        %v623 = vpow.pop %v622
        %v624 = vmul.f32 %v613, 1.442695
        %v625 = vpow.pop %v624
        %v626 = vmul.f32 %v614, 1.442695
        %v627 = vpow.pop %v626
        %v628 = vmul.f32 %v615, 1.442695
        %v629 = vpow.pop %v628
        %v630 = vmul.f32 %v616, 1.442695
        %v631 = vpow.pop %v630
        %v632 = vmul.f32 %v617, 1.442695
        %v633 = vpow.pop %v632
        %635 = vset.pattern.permute.xlu0 0
        %636 = vperm.xlu0 %635, %v602
        %v637 = vpop.permute.xlu0 %636
        %640 = vset.pattern.permute.xlu0 0
        %641 = vperm.xlu0 %640, %v603
        %v642 = vpop.permute.xlu0 %641
        %645 = vset.pattern.permute.xlu0 0
        %646 = vperm.xlu0 %645, %v604
        %v647 = vpop.permute.xlu0 %646
        %650 = vset.pattern.permute.xlu0 0
        %651 = vperm.xlu0 %650, %v605
        %v652 = vpop.permute.xlu0 %651
        %655 = vset.pattern.permute.xlu0 0
        %656 = vperm.xlu0 %655, %v606
        %v657 = vpop.permute.xlu0 %656
        %660 = vset.pattern.permute.xlu0 0
        %661 = vperm.xlu0 %660, %v607
        %v662 = vpop.permute.xlu0 %661
        %665 = vset.pattern.permute.xlu0 0
        %666 = vperm.xlu0 %665, %v608
        %v667 = vpop.permute.xlu0 %666
        %670 = vset.pattern.permute.xlu0 0
        %671 = vperm.xlu0 %670, %v609
        %v672 = vpop.permute.xlu0 %671
        %v674 = vsub.f32 %v570, %v637
        %v675 = vsub.f32 %v571, %v642
        %v676 = vsub.f32 %v572, %v647
        %v677 = vsub.f32 %v573, %v652
        %v678 = vsub.f32 %v574, %v657
        %v679 = vsub.f32 %v575, %v662
        %v680 = vsub.f32 %v576, %v667
        %v681 = vsub.f32 %v577, %v672
        %v682 = vmul.f32 %v674, 1.442695
        %v683 = vpow.pop %v682
        %v684 = vmul.f32 %v675, 1.442695
        %v685 = vpow.pop %v684
        %v686 = vmul.f32 %v676, 1.442695
        %v687 = vpow.pop %v686
        %v688 = vmul.f32 %v677, 1.442695
        %v689 = vpow.pop %v688
        %v690 = vmul.f32 %v678, 1.442695
        %v691 = vpow.pop %v690
        %v692 = vmul.f32 %v679, 1.442695
        %v693 = vpow.pop %v692
        %v694 = vmul.f32 %v680, 1.442695
        %v695 = vpow.pop %v694
        %v696 = vmul.f32 %v681, 1.442695
        %v697 = vpow.pop %v696
        %v698 = vld [vmem:[#allocation3] sm:$0xff]
        %v699 = vld [vmem:[#allocation3 + $0x8] sm:$0xff]
        %v700 = vld [vmem:[#allocation3 + $0x10] sm:$0xff]
        %v701 = vld [vmem:[#allocation3 + $0x18] sm:$0xff]
        %v702 = vld [vmem:[#allocation3 + $0x20] sm:$0xff]
        %v703 = vld [vmem:[#allocation3 + $0x28] sm:$0xff]
        %v704 = vld [vmem:[#allocation3 + $0x30] sm:$0xff]
        %v705 = vld [vmem:[#allocation3 + $0x38] sm:$0xff]
        %v706 = vmul.f32 %v619, %v698
        %v707 = vmul.f32 %v621, %v699
        %v708 = vmul.f32 %v623, %v700
        %v709 = vmul.f32 %v625, %v701
        %v710 = vmul.f32 %v627, %v702
        %v711 = vmul.f32 %v629, %v703
        %v712 = vmul.f32 %v631, %v704
        %v713 = vmul.f32 %v633, %v705
        %714 = vadd.xlane.f32.xlu0 %v683
        %v715 = vpop.xlane.xlu0 %714
        %716 = vadd.xlane.f32.xlu0 %v685
        %v717 = vpop.xlane.xlu0 %716
        %718 = vadd.xlane.f32.xlu0 %v687
        %v719 = vpop.xlane.xlu0 %718
        %720 = vadd.xlane.f32.xlu0 %v689
        %v721 = vpop.xlane.xlu0 %720
        %722 = vadd.xlane.f32.xlu0 %v691
        %v723 = vpop.xlane.xlu0 %722
        %724 = vadd.xlane.f32.xlu0 %v693
        %v725 = vpop.xlane.xlu0 %724
        %726 = vadd.xlane.f32.xlu0 %v695
        %v727 = vpop.xlane.xlu0 %726
        %728 = vadd.xlane.f32.xlu0 %v697
        %v729 = vpop.xlane.xlu0 %728
        %v730 = vadd.f32 %v706, %v715
        %v731 = vadd.f32 %v707, %v717
        %v732 = vadd.f32 %v708, %v719
        %v733 = vadd.f32 %v709, %v721
        %v734 = vadd.f32 %v710, %v723
        %v735 = vadd.f32 %v711, %v725
        %v736 = vadd.f32 %v712, %v727
        %v737 = vadd.f32 %v713, %v729
        %vm738 = vcmask 7168
        %739 = vst.msk [vmem:[#allocation3] sm:$0xff] %vm738, %v730
        %740 = vst.msk [vmem:[#allocation3 + $0x8] sm:$0xff] %vm738, %v731
        %741 = vst.msk [vmem:[#allocation3 + $0x10] sm:$0xff] %vm738, %v732
        %742 = vst.msk [vmem:[#allocation3 + $0x18] sm:$0xff] %vm738, %v733
        %743 = vst.msk [vmem:[#allocation3 + $0x20] sm:$0xff] %vm738, %v734
        %744 = vst.msk [vmem:[#allocation3 + $0x28] sm:$0xff] %vm738, %v735
        %745 = vst.msk [vmem:[#allocation3 + $0x30] sm:$0xff] %vm738, %v736
        %746 = vst.msk [vmem:[#allocation3 + $0x38] sm:$0xff] %vm738, %v737
        %v747 = vld [vmem:[%s304] sm:$0xf]
        %v748 = vld [vmem:[%s304 + $0x10] sm:$0xf]
        %v749 = vld [vmem:[%s304 + $0x20] sm:$0xf]
        %v750 = vld [vmem:[%s304 + $0x30] sm:$0xf]
        %v751 = vld [vmem:[%s304 + $0x40] sm:$0xf]
        %v752 = vld [vmem:[%s304 + $0x50] sm:$0xf]
        %v753 = vld [vmem:[%s304 + $0x60] sm:$0xf]
        %v754 = vld [vmem:[%s304 + $0x70] sm:$0xf]
        %v755 = vld [vmem:[%s304 + $0x80] sm:$0xf]
        %v756 = vld [vmem:[%s304 + $0x90] sm:$0xf]
        %v757 = vld [vmem:[%s304 + $0xa0] sm:$0xf]
        %v758 = vld [vmem:[%s304 + $0xb0] sm:$0xf]
        %v759 = vld [vmem:[%s304 + $0xc0] sm:$0xf]
        %v760 = vld [vmem:[%s304 + $0xd0] sm:$0xf]
        %v761 = vld [vmem:[%s304 + $0xe0] sm:$0xf]
        %v762 = vld [vmem:[%s304 + $0xf0] sm:$0xf]
        %v763 = vld [vmem:[#allocation4] sm:$0xff]
        %v764 = vld [vmem:[#allocation4 + $0x8] sm:$0xff]
        %v765 = vld [vmem:[#allocation4 + $0x10] sm:$0xff]
        %v766 = vld [vmem:[#allocation4 + $0x18] sm:$0xff]
        %v767 = vld [vmem:[#allocation4 + $0x20] sm:$0xff]
        %v768 = vld [vmem:[#allocation4 + $0x28] sm:$0xff]
        %v769 = vld [vmem:[#allocation4 + $0x30] sm:$0xff]
        %v770 = vld [vmem:[#allocation4 + $0x38] sm:$0xff]
        %772 = vset.pattern.permute.xlu0 0
        %773 = vperm.xlu0 %772, %v619
        %v774 = vpop.permute.xlu0 %773
        %777 = vset.pattern.permute.xlu0 0
        %778 = vperm.xlu0 %777, %v621
        %v779 = vpop.permute.xlu0 %778
        %782 = vset.pattern.permute.xlu0 0
        %783 = vperm.xlu0 %782, %v623
        %v784 = vpop.permute.xlu0 %783
        %787 = vset.pattern.permute.xlu0 0
        %788 = vperm.xlu0 %787, %v625
        %v789 = vpop.permute.xlu0 %788
        %792 = vset.pattern.permute.xlu0 0
        %793 = vperm.xlu0 %792, %v627
        %v794 = vpop.permute.xlu0 %793
        %797 = vset.pattern.permute.xlu0 0
        %798 = vperm.xlu0 %797, %v629
        %v799 = vpop.permute.xlu0 %798
        %802 = vset.pattern.permute.xlu0 0
        %803 = vperm.xlu0 %802, %v631
        %v804 = vpop.permute.xlu0 %803
        %807 = vset.pattern.permute.xlu0 0
        %808 = vperm.xlu0 %807, %v633
        %v809 = vpop.permute.xlu0 %808
        %v811 = vmul.f32 %v774, %v763
        %v812 = vmul.f32 %v779, %v764
        %v813 = vmul.f32 %v784, %v765
        %v814 = vmul.f32 %v789, %v766
        %v815 = vmul.f32 %v794, %v767
        %v816 = vmul.f32 %v799, %v768
        %v817 = vmul.f32 %v804, %v769
        %v818 = vmul.f32 %v809, %v770
        %v819 = vpack.c.bf16 %v685, %v683
        %v820 = vpack.c.bf16 %v689, %v687
        %v821 = vpack.c.bf16 %v693, %v691
        %v822 = vpack.c.bf16 %v697, %v695
        %v839 = vunpack.c.l.b16 %v747
        %v840 = vunpack.c.l.b16 %v748
        %v841 = vunpack.c.l.b16 %v749
        %v842 = vunpack.c.l.b16 %v750
        %v843 = vunpack.c.l.b16 %v751
        %v844 = vunpack.c.l.b16 %v752
        %v845 = vunpack.c.l.b16 %v753
        %v846 = vunpack.c.l.b16 %v754
        %v847 = vunpack.c.l.b16 %v755
        %v848 = vunpack.c.l.b16 %v756
        %v849 = vunpack.c.l.b16 %v757
        %v850 = vunpack.c.l.b16 %v758
        %v851 = vunpack.c.l.b16 %v759
        %v852 = vunpack.c.l.b16 %v760
        %v853 = vunpack.c.l.b16 %v761
        %v854 = vunpack.c.l.b16 %v762
        %v855 = vpack.c.b16 %v840, %v839
        %v856 = vpack.c.b16 %v842, %v841
        %v857 = vpack.c.b16 %v844, %v843
        %v858 = vpack.c.b16 %v846, %v845
        %v859 = vpack.c.b16 %v848, %v847
        %v860 = vpack.c.b16 %v850, %v849
        %v861 = vpack.c.b16 %v852, %v851
        %v862 = vpack.c.b16 %v854, %v853
        %871 = vmatprep.subr.bf16.mxu0 0
        %872 = vmatpush1.bf16.msra.mxu0 %v855
        %873 = vmatprep.subr.bf16.mxu0 0
        %874 = vmatpush1.bf16.msra.mxu0 %v856
        %875 = vmatprep.subr.bf16.mxu0 0
        %876 = vmatpush1.bf16.msra.mxu0 %v857
        %877 = vmatprep.subr.bf16.mxu0 0
        %878 = vmatpush1.bf16.msra.mxu0 %v858
        %879 = vmatprep.subr.bf16.mxu0 0
        %880 = vmatpush1.bf16.msra.mxu0 %v859
        %881 = vmatprep.subr.bf16.mxu0 0
        %882 = vmatpush1.bf16.msra.mxu0 %v860
        %883 = vmatprep.subr.bf16.mxu0 0
        %884 = vmatpush1.bf16.msra.mxu0 %v861
        %885 = vmatprep.subr.bf16.mxu0 0
        %886 = vmatpush1.bf16.msra.mxu0 %v862
        %887 = vmatprep.subr.bf16.mxu0 0
        %888 = vmatpush1.bf16.msra.mxu0 0
        %889 = vmatprep.subr.bf16.mxu0 0
        %890 = vmatpush1.bf16.msra.mxu0 0
        %891 = vmatprep.subr.bf16.mxu0 0
        %892 = vmatpush1.bf16.msra.mxu0 0
        %893 = vmatprep.subr.bf16.mxu0 0
        %894 = vmatpush1.bf16.msra.mxu0 0
        %895 = vmatprep.subr.bf16.mxu0 0
        %896 = vmatpush1.bf16.msra.mxu0 0
        %897 = vmatprep.subr.bf16.mxu0 0
        %898 = vmatpush1.bf16.msra.mxu0 0
        %899 = vmatprep.subr.bf16.mxu0 0
        %900 = vmatpush1.bf16.msra.mxu0 0
        %901 = vmatprep.subr.bf16.mxu0 0
        %902 = vmatpush1.bf16.msra.mxu0 0
        %903 = vmatprep.mubr.bf16.mxu0 0
        %904 = vmatmul.mubr.bf16.gmra.mrb[0].mxu0 %v819
        %v905 = vpop.f32.mrb[0].mxu0
        %v906 = vadd.f32 0.0, %v905
        %v907 = vpop.f32.mrb[0].mxu0
        %v908 = vpop.f32.mrb[0].mxu0
        %v909 = vadd.f32 0.0, %v908
        %v910 = vpop.f32.mrb[0].mxu0
        %911 = vmatprep.mubr.bf16.mxu0 0
        %912 = vmatmul.mubr.bf16.gmra.mrb[0].mxu0 %v820
        %v913 = vpop.f32.mrb[0].mxu0
        %v914 = vadd.f32 0.0, %v913
        %v915 = vpop.f32.mrb[0].mxu0
        %v916 = vpop.f32.mrb[0].mxu0
        %v917 = vadd.f32 0.0, %v916
        %v918 = vpop.f32.mrb[0].mxu0
        %919 = vmatprep.mubr.bf16.mxu0 0
        %920 = vmatmul.mubr.bf16.gmra.mrb[0].mxu0 %v821
        %v921 = vpop.f32.mrb[0].mxu0
        %v922 = vadd.f32 0.0, %v921
        %v923 = vpop.f32.mrb[0].mxu0
        %v924 = vpop.f32.mrb[0].mxu0
        %v925 = vadd.f32 0.0, %v924
        %v926 = vpop.f32.mrb[0].mxu0
        %927 = vmatprep.mubr.bf16.mxu0 0
        %928 = vmatmul.mubr.bf16.gmra.mrb[0].mxu0 %v822
        %v929 = vpop.f32.mrb[0].mxu0
        %v930 = vadd.f32 0.0, %v929
        %v931 = vpop.f32.mrb[0].mxu0
        %v932 = vpop.f32.mrb[0].mxu0
        %v933 = vadd.f32 0.0, %v932
        %v934 = vpop.f32.mrb[0].mxu0
        %935 = vdwg.mxu0
        %v936 = vadd.f32 %v811, %v906
        %v937 = vadd.f32 %v812, %v909
        %v938 = vadd.f32 %v813, %v914
        %v939 = vadd.f32 %v814, %v917
        %v940 = vadd.f32 %v815, %v922
        %v941 = vadd.f32 %v816, %v925
        %v942 = vadd.f32 %v817, %v930
        %v943 = vadd.f32 %v818, %v933
        %944 = vst [vmem:[#allocation4] sm:$0xff] %v936
        %945 = vst [vmem:[#allocation4 + $0x8] sm:$0xff] %v937
        %946 = vst [vmem:[#allocation4 + $0x10] sm:$0xff] %v938
        %947 = vst [vmem:[#allocation4 + $0x18] sm:$0xff] %v939
        %948 = vst [vmem:[#allocation4 + $0x20] sm:$0xff] %v940
        %949 = vst [vmem:[#allocation4 + $0x28] sm:$0xff] %v941
        %950 = vst [vmem:[#allocation4 + $0x30] sm:$0xff] %v942
        %951 = vst [vmem:[#allocation4 + $0x38] sm:$0xff] %v943
        %952 = vst.msk [vmem:[#allocation2] sm:$0xff] %vm738, %v602
        %953 = vst.msk [vmem:[#allocation2 + $0x8] sm:$0xff] %vm738, %v603
        %954 = vst.msk [vmem:[#allocation2 + $0x10] sm:$0xff] %vm738, %v604
        %955 = vst.msk [vmem:[#allocation2 + $0x18] sm:$0xff] %vm738, %v605
        %956 = vst.msk [vmem:[#allocation2 + $0x20] sm:$0xff] %vm738, %v606
        %957 = vst.msk [vmem:[#allocation2 + $0x28] sm:$0xff] %vm738, %v607
        %958 = vst.msk [vmem:[#allocation2 + $0x30] sm:$0xff] %vm738, %v608
        %959 = vst.msk [vmem:[#allocation2 + $0x38] sm:$0xff] %vm738, %v609
        %960 = vset.pattern.permute.xlu0 1
        %961 = vperm.xlu0 %960, %v469
        %v962 = vpop.permute.xlu0 %961
        %964 = vset.pattern.permute.xlu0 1
        %965 = vperm.xlu0 %964, %v470
        %v966 = vpop.permute.xlu0 %965
        %968 = vset.pattern.permute.xlu0 1
        %969 = vperm.xlu0 %968, %v471
        %v970 = vpop.permute.xlu0 %969
        %972 = vset.pattern.permute.xlu0 1
        %973 = vperm.xlu0 %972, %v472
        %v974 = vpop.permute.xlu0 %973
        %976 = vset.pattern.permute.xlu0 1
        %977 = vperm.xlu0 %976, %v473
        %v978 = vpop.permute.xlu0 %977
        %980 = vset.pattern.permute.xlu0 1
        %981 = vperm.xlu0 %980, %v474
        %v982 = vpop.permute.xlu0 %981
        %984 = vset.pattern.permute.xlu0 1
        %985 = vperm.xlu0 %984, %v475
        %v986 = vpop.permute.xlu0 %985
        %988 = vset.pattern.permute.xlu0 1
        %989 = vperm.xlu0 %988, %v476
        %v990 = vpop.permute.xlu0 %989
        %v992 = vlaneseq
        %v993 = vshrl.u32 %v992, 7
        %v994 = vsub.s32 1, %v993
        %v995 = vrot.slane %v477, %v994
        %v996 = vadd.f32 %v962, %v995
        %v997 = vadd.f32 %v966, %v995
        %v998 = vadd.f32 %v970, %v995
        %v999 = vadd.f32 %v974, %v995
        %v1000 = vadd.f32 %v978, %v995
        %v1001 = vadd.f32 %v982, %v995
        %v1002 = vadd.f32 %v986, %v995
        %v1003 = vadd.f32 %v990, %v995
        %s1004 = scalar_lea.vmem %s313, 32 [#allocation8]
        %v1005 = vld [vmem:[%s1004] sm:$0xf]
        %v1006 = vld [vmem:[%s1004 + $0x4] sm:$0xf]
        %v1007 = vld [vmem:[%s1004 + $0x8] sm:$0xf]
        %v1008 = vld [vmem:[%s1004 + $0xc] sm:$0xf]
        %v1009 = vld [vmem:[%s1004 + $0x10] sm:$0xf]
        %v1010 = vld [vmem:[%s1004 + $0x14] sm:$0xf]
        %v1011 = vld [vmem:[%s1004 + $0x18] sm:$0xf]
        %v1012 = vld [vmem:[%s1004 + $0x1c] sm:$0xf]
        %v1013 = vunpack.c.l.bf16 %v1005
        %v1014 = vunpack.c.l.bf16 %v1006
        %v1015 = vunpack.c.l.bf16 %v1007
        %v1016 = vunpack.c.l.bf16 %v1008
        %v1017 = vunpack.c.l.bf16 %v1009
        %v1018 = vunpack.c.l.bf16 %v1010
        %v1019 = vunpack.c.l.bf16 %v1011
        %v1020 = vunpack.c.l.bf16 %v1012
        %v1021 = vadd.f32 %v996, %v1013
        %v1022 = vadd.f32 %v997, %v1014
        %v1023 = vadd.f32 %v998, %v1015
        %v1024 = vadd.f32 %v999, %v1016
        %v1025 = vadd.f32 %v1000, %v1017
        %v1026 = vadd.f32 %v1001, %v1018
        %v1027 = vadd.f32 %v1002, %v1019
        %v1028 = vadd.f32 %v1003, %v1020
        %vm1029 = vcmp.ge.f32.partialorder %v1021, 0.0
        %vm1030 = vcmp.ge.f32.partialorder %v1022, 0.0
        %vm1031 = vcmp.ge.f32.partialorder %v1023, 0.0
        %vm1032 = vcmp.ge.f32.partialorder %v1024, 0.0
        %vm1033 = vcmp.ge.f32.partialorder %v1025, 0.0
        %vm1034 = vcmp.ge.f32.partialorder %v1026, 0.0
        %vm1035 = vcmp.ge.f32.partialorder %v1027, 0.0
        %vm1036 = vcmp.ge.f32.partialorder %v1028, 0.0
        %v1037 = vmul.f32 %v1021, 0.2
        %v1038 = vmul.f32 %v1022, 0.2
        %v1039 = vmul.f32 %v1023, 0.2
        %v1040 = vmul.f32 %v1024, 0.2
        %v1041 = vmul.f32 %v1025, 0.2
        %v1042 = vmul.f32 %v1026, 0.2
        %v1043 = vmul.f32 %v1027, 0.2
        %v1044 = vmul.f32 %v1028, 0.2
        %v1045 = vsel %vm1029, %v1021, %v1037
        %v1046 = vsel %vm1030, %v1022, %v1038
        %v1047 = vsel %vm1031, %v1023, %v1039
        %v1048 = vsel %vm1032, %v1024, %v1040
        %v1049 = vsel %vm1033, %v1025, %v1041
        %v1050 = vsel %vm1034, %v1026, %v1042
        %v1051 = vsel %vm1035, %v1027, %v1043
        %v1052 = vsel %vm1036, %v1028, %v1044
        %s1053 = scalar_lea.vmem [#allocation2], 64
        %v1054 = vld [vmem:[%s1053] sm:$0xff]
        %v1055 = vld [vmem:[%s1053 + $0x8] sm:$0xff]
        %v1056 = vld [vmem:[%s1053 + $0x10] sm:$0xff]
        %v1057 = vld [vmem:[%s1053 + $0x18] sm:$0xff]
        %v1058 = vld [vmem:[%s1053 + $0x20] sm:$0xff]
        %v1059 = vld [vmem:[%s1053 + $0x28] sm:$0xff]
        %v1060 = vld [vmem:[%s1053 + $0x30] sm:$0xff]
        %v1061 = vld [vmem:[%s1053 + $0x38] sm:$0xff]
        %1062 = vmax.xlane.f32.xlu0 %v1045
        %v1063 = vpop.xlane.xlu0 %1062
        %1064 = vmax.xlane.f32.xlu0 %v1046
        %v1065 = vpop.xlane.xlu0 %1064
        %1066 = vmax.xlane.f32.xlu0 %v1047
        %v1067 = vpop.xlane.xlu0 %1066
        %1068 = vmax.xlane.f32.xlu0 %v1048
        %v1069 = vpop.xlane.xlu0 %1068
        %1070 = vmax.xlane.f32.xlu0 %v1049
        %v1071 = vpop.xlane.xlu0 %1070
        %1072 = vmax.xlane.f32.xlu0 %v1050
        %v1073 = vpop.xlane.xlu0 %1072
        %1074 = vmax.xlane.f32.xlu0 %v1051
        %v1075 = vpop.xlane.xlu0 %1074
        %1076 = vmax.xlane.f32.xlu0 %v1052
        %v1077 = vpop.xlane.xlu0 %1076
        %v1078 = vmax.f32 %v1054, %v1063
        %v1079 = vmax.f32 %v1055, %v1065
        %v1080 = vmax.f32 %v1056, %v1067
        %v1081 = vmax.f32 %v1057, %v1069
        %v1082 = vmax.f32 %v1058, %v1071
        %v1083 = vmax.f32 %v1059, %v1073
        %v1084 = vmax.f32 %v1060, %v1075
        %v1085 = vmax.f32 %v1061, %v1077
        %v1086 = vsub.f32 %v1054, %v1078
        %v1087 = vsub.f32 %v1055, %v1079
        %v1088 = vsub.f32 %v1056, %v1080
        %v1089 = vsub.f32 %v1057, %v1081
        %v1090 = vsub.f32 %v1058, %v1082
        %v1091 = vsub.f32 %v1059, %v1083
        %v1092 = vsub.f32 %v1060, %v1084
        %v1093 = vsub.f32 %v1061, %v1085
        %v1094 = vmul.f32 %v1086, 1.442695
        %v1095 = vpow.pop %v1094
        %v1096 = vmul.f32 %v1087, 1.442695
        %v1097 = vpow.pop %v1096
        %v1098 = vmul.f32 %v1088, 1.442695
        %v1099 = vpow.pop %v1098
        %v1100 = vmul.f32 %v1089, 1.442695
        %v1101 = vpow.pop %v1100
        %v1102 = vmul.f32 %v1090, 1.442695
        %v1103 = vpow.pop %v1102
        %v1104 = vmul.f32 %v1091, 1.442695
        %v1105 = vpow.pop %v1104
        %v1106 = vmul.f32 %v1092, 1.442695
        %v1107 = vpow.pop %v1106
        %v1108 = vmul.f32 %v1093, 1.442695
        %v1109 = vpow.pop %v1108
        %1111 = vset.pattern.permute.xlu0 0
        %1112 = vperm.xlu0 %1111, %v1078
        %v1113 = vpop.permute.xlu0 %1112
        %1116 = vset.pattern.permute.xlu0 0
        %1117 = vperm.xlu0 %1116, %v1079
        %v1118 = vpop.permute.xlu0 %1117
        %1121 = vset.pattern.permute.xlu0 0
        %1122 = vperm.xlu0 %1121, %v1080
        %v1123 = vpop.permute.xlu0 %1122
        %1126 = vset.pattern.permute.xlu0 0
        %1127 = vperm.xlu0 %1126, %v1081
        %v1128 = vpop.permute.xlu0 %1127
        %1131 = vset.pattern.permute.xlu0 0
        %1132 = vperm.xlu0 %1131, %v1082
        %v1133 = vpop.permute.xlu0 %1132
        %1136 = vset.pattern.permute.xlu0 0
        %1137 = vperm.xlu0 %1136, %v1083
        %v1138 = vpop.permute.xlu0 %1137
        %1141 = vset.pattern.permute.xlu0 0
        %1142 = vperm.xlu0 %1141, %v1084
        %v1143 = vpop.permute.xlu0 %1142
        %1146 = vset.pattern.permute.xlu0 0
        %1147 = vperm.xlu0 %1146, %v1085
        %v1148 = vpop.permute.xlu0 %1147
        %v1150 = vsub.f32 %v1045, %v1113
        %v1151 = vsub.f32 %v1046, %v1118
        %v1152 = vsub.f32 %v1047, %v1123
        %v1153 = vsub.f32 %v1048, %v1128
        %v1154 = vsub.f32 %v1049, %v1133
        %v1155 = vsub.f32 %v1050, %v1138
        %v1156 = vsub.f32 %v1051, %v1143
        %v1157 = vsub.f32 %v1052, %v1148
        %v1158 = vmul.f32 %v1150, 1.442695
        %v1159 = vpow.pop %v1158
        %v1160 = vmul.f32 %v1151, 1.442695
        %v1161 = vpow.pop %v1160
        %v1162 = vmul.f32 %v1152, 1.442695
        %v1163 = vpow.pop %v1162
        %v1164 = vmul.f32 %v1153, 1.442695
        %v1165 = vpow.pop %v1164
        %v1166 = vmul.f32 %v1154, 1.442695
        %v1167 = vpow.pop %v1166
        %v1168 = vmul.f32 %v1155, 1.442695
        %v1169 = vpow.pop %v1168
        %v1170 = vmul.f32 %v1156, 1.442695
        %v1171 = vpow.pop %v1170
        %v1172 = vmul.f32 %v1157, 1.442695
        %v1173 = vpow.pop %v1172
        %s1174 = scalar_lea.vmem [#allocation3], 64
        %v1175 = vld [vmem:[%s1174] sm:$0xff]
        %v1176 = vld [vmem:[%s1174 + $0x8] sm:$0xff]
        %v1177 = vld [vmem:[%s1174 + $0x10] sm:$0xff]
        %v1178 = vld [vmem:[%s1174 + $0x18] sm:$0xff]
        %v1179 = vld [vmem:[%s1174 + $0x20] sm:$0xff]
        %v1180 = vld [vmem:[%s1174 + $0x28] sm:$0xff]
        %v1181 = vld [vmem:[%s1174 + $0x30] sm:$0xff]
        %v1182 = vld [vmem:[%s1174 + $0x38] sm:$0xff]
        %v1183 = vmul.f32 %v1095, %v1175
        %v1184 = vmul.f32 %v1097, %v1176
        %v1185 = vmul.f32 %v1099, %v1177
        %v1186 = vmul.f32 %v1101, %v1178
        %v1187 = vmul.f32 %v1103, %v1179
        %v1188 = vmul.f32 %v1105, %v1180
        %v1189 = vmul.f32 %v1107, %v1181
        %v1190 = vmul.f32 %v1109, %v1182
        %1191 = vadd.xlane.f32.xlu0 %v1159
        %v1192 = vpop.xlane.xlu0 %1191
        %1193 = vadd.xlane.f32.xlu0 %v1161
        %v1194 = vpop.xlane.xlu0 %1193
        %1195 = vadd.xlane.f32.xlu0 %v1163
        %v1196 = vpop.xlane.xlu0 %1195
        %1197 = vadd.xlane.f32.xlu0 %v1165
        %v1198 = vpop.xlane.xlu0 %1197
        %1199 = vadd.xlane.f32.xlu0 %v1167
        %v1200 = vpop.xlane.xlu0 %1199
        %1201 = vadd.xlane.f32.xlu0 %v1169
        %v1202 = vpop.xlane.xlu0 %1201
        %1203 = vadd.xlane.f32.xlu0 %v1171
        %v1204 = vpop.xlane.xlu0 %1203
        %1205 = vadd.xlane.f32.xlu0 %v1173
        %v1206 = vpop.xlane.xlu0 %1205
        %v1207 = vadd.f32 %v1183, %v1192
        %v1208 = vadd.f32 %v1184, %v1194
        %v1209 = vadd.f32 %v1185, %v1196
        %v1210 = vadd.f32 %v1186, %v1198
        %v1211 = vadd.f32 %v1187, %v1200
        %v1212 = vadd.f32 %v1188, %v1202
        %v1213 = vadd.f32 %v1189, %v1204
        %v1214 = vadd.f32 %v1190, %v1206
        %1215 = vst.msk [vmem:[%s1174] sm:$0xff] %vm738, %v1207
        %1216 = vst.msk [vmem:[%s1174 + $0x8] sm:$0xff] %vm738, %v1208
        %1217 = vst.msk [vmem:[%s1174 + $0x10] sm:$0xff] %vm738, %v1209
        %1218 = vst.msk [vmem:[%s1174 + $0x18] sm:$0xff] %vm738, %v1210
        %1219 = vst.msk [vmem:[%s1174 + $0x20] sm:$0xff] %vm738, %v1211
        %1220 = vst.msk [vmem:[%s1174 + $0x28] sm:$0xff] %vm738, %v1212
        %1221 = vst.msk [vmem:[%s1174 + $0x30] sm:$0xff] %vm738, %v1213
        %1222 = vst.msk [vmem:[%s1174 + $0x38] sm:$0xff] %vm738, %v1214
        %v1223 = vld [vmem:[%s304 + $0x4] sm:$0xf]
        %v1224 = vld [vmem:[%s304 + $0x14] sm:$0xf]
        %v1225 = vld [vmem:[%s304 + $0x24] sm:$0xf]
        %v1226 = vld [vmem:[%s304 + $0x34] sm:$0xf]
        %v1227 = vld [vmem:[%s304 + $0x44] sm:$0xf]
        %v1228 = vld [vmem:[%s304 + $0x54] sm:$0xf]
        %v1229 = vld [vmem:[%s304 + $0x64] sm:$0xf]
        %v1230 = vld [vmem:[%s304 + $0x74] sm:$0xf]
        %v1231 = vld [vmem:[%s304 + $0x84] sm:$0xf]
        %v1232 = vld [vmem:[%s304 + $0x94] sm:$0xf]
        %v1233 = vld [vmem:[%s304 + $0xa4] sm:$0xf]
        %v1234 = vld [vmem:[%s304 + $0xb4] sm:$0xf]
        %v1235 = vld [vmem:[%s304 + $0xc4] sm:$0xf]
        %v1236 = vld [vmem:[%s304 + $0xd4] sm:$0xf]
        %v1237 = vld [vmem:[%s304 + $0xe4] sm:$0xf]
        %v1238 = vld [vmem:[%s304 + $0xf4] sm:$0xf]
        %s1239 = scalar_lea.vmem [#allocation4], 64
        %v1240 = vld [vmem:[%s1239] sm:$0xff]
        %v1241 = vld [vmem:[%s1239 + $0x8] sm:$0xff]
        %v1242 = vld [vmem:[%s1239 + $0x10] sm:$0xff]
        %v1243 = vld [vmem:[%s1239 + $0x18] sm:$0xff]
        %v1244 = vld [vmem:[%s1239 + $0x20] sm:$0xff]
        %v1245 = vld [vmem:[%s1239 + $0x28] sm:$0xff]
        %v1246 = vld [vmem:[%s1239 + $0x30] sm:$0xff]
        %v1247 = vld [vmem:[%s1239 + $0x38] sm:$0xff]
        %1249 = vset.pattern.permute.xlu0 0
        %1250 = vperm.xlu0 %1249, %v1095
        %v1251 = vpop.permute.xlu0 %1250
        %1254 = vset.pattern.permute.xlu0 0
        %1255 = vperm.xlu0 %1254, %v1097
        %v1256 = vpop.permute.xlu0 %1255
        %1259 = vset.pattern.permute.xlu0 0
        %1260 = vperm.xlu0 %1259, %v1099
        %v1261 = vpop.permute.xlu0 %1260
        %1264 = vset.pattern.permute.xlu0 0
        %1265 = vperm.xlu0 %1264, %v1101
        %v1266 = vpop.permute.xlu0 %1265
        %1269 = vset.pattern.permute.xlu0 0
        %1270 = vperm.xlu0 %1269, %v1103
        %v1271 = vpop.permute.xlu0 %1270
        %1274 = vset.pattern.permute.xlu0 0
        %1275 = vperm.xlu0 %1274, %v1105
        %v1276 = vpop.permute.xlu0 %1275
        %1279 = vset.pattern.permute.xlu0 0
        %1280 = vperm.xlu0 %1279, %v1107
        %v1281 = vpop.permute.xlu0 %1280
        %1284 = vset.pattern.permute.xlu0 0
        %1285 = vperm.xlu0 %1284, %v1109
        %v1286 = vpop.permute.xlu0 %1285
        %v1288 = vmul.f32 %v1251, %v1240
        %v1289 = vmul.f32 %v1256, %v1241
        %v1290 = vmul.f32 %v1261, %v1242
        %v1291 = vmul.f32 %v1266, %v1243
        %v1292 = vmul.f32 %v1271, %v1244
        %v1293 = vmul.f32 %v1276, %v1245
        %v1294 = vmul.f32 %v1281, %v1246
        %v1295 = vmul.f32 %v1286, %v1247
        %v1296 = vpack.c.bf16 %v1161, %v1159
        %v1297 = vpack.c.bf16 %v1165, %v1163
        %v1298 = vpack.c.bf16 %v1169, %v1167
        %v1299 = vpack.c.bf16 %v1173, %v1171
        %v1316 = vunpack.c.l.b16 %v1223
        %v1317 = vunpack.c.l.b16 %v1224
        %v1318 = vunpack.c.l.b16 %v1225
        %v1319 = vunpack.c.l.b16 %v1226
        %v1320 = vunpack.c.l.b16 %v1227
        %v1321 = vunpack.c.l.b16 %v1228
        %v1322 = vunpack.c.l.b16 %v1229
        %v1323 = vunpack.c.l.b16 %v1230
        %v1324 = vunpack.c.l.b16 %v1231
        %v1325 = vunpack.c.l.b16 %v1232
        %v1326 = vunpack.c.l.b16 %v1233
        %v1327 = vunpack.c.l.b16 %v1234
        %v1328 = vunpack.c.l.b16 %v1235
        %v1329 = vunpack.c.l.b16 %v1236
        %v1330 = vunpack.c.l.b16 %v1237
        %v1331 = vunpack.c.l.b16 %v1238
        %v1332 = vpack.c.b16 %v1317, %v1316
        %v1333 = vpack.c.b16 %v1319, %v1318
        %v1334 = vpack.c.b16 %v1321, %v1320
        %v1335 = vpack.c.b16 %v1323, %v1322
        %v1336 = vpack.c.b16 %v1325, %v1324
        %v1337 = vpack.c.b16 %v1327, %v1326
        %v1338 = vpack.c.b16 %v1329, %v1328
        %v1339 = vpack.c.b16 %v1331, %v1330
        %1348 = vmatprep.subr.bf16.mxu0 0
        %1349 = vmatpush1.bf16.msra.mxu0 %v1332
        %1350 = vmatprep.subr.bf16.mxu0 0
        %1351 = vmatpush1.bf16.msra.mxu0 %v1333
        %1352 = vmatprep.subr.bf16.mxu0 0
        %1353 = vmatpush1.bf16.msra.mxu0 %v1334
        %1354 = vmatprep.subr.bf16.mxu0 0
        %1355 = vmatpush1.bf16.msra.mxu0 %v1335
        %1356 = vmatprep.subr.bf16.mxu0 0
        %1357 = vmatpush1.bf16.msra.mxu0 %v1336
        %1358 = vmatprep.subr.bf16.mxu0 0
        %1359 = vmatpush1.bf16.msra.mxu0 %v1337
        %1360 = vmatprep.subr.bf16.mxu0 0
        %1361 = vmatpush1.bf16.msra.mxu0 %v1338
        %1362 = vmatprep.subr.bf16.mxu0 0
        %1363 = vmatpush1.bf16.msra.mxu0 %v1339
        %1364 = vmatprep.subr.bf16.mxu0 0
        %1365 = vmatpush1.bf16.msra.mxu0 0
        %1366 = vmatprep.subr.bf16.mxu0 0
        %1367 = vmatpush1.bf16.msra.mxu0 0
        %1368 = vmatprep.subr.bf16.mxu0 0
        %1369 = vmatpush1.bf16.msra.mxu0 0
        %1370 = vmatprep.subr.bf16.mxu0 0
        %1371 = vmatpush1.bf16.msra.mxu0 0
        %1372 = vmatprep.subr.bf16.mxu0 0
        %1373 = vmatpush1.bf16.msra.mxu0 0
        %1374 = vmatprep.subr.bf16.mxu0 0
        %1375 = vmatpush1.bf16.msra.mxu0 0
        %1376 = vmatprep.subr.bf16.mxu0 0
        %1377 = vmatpush1.bf16.msra.mxu0 0
        %1378 = vmatprep.subr.bf16.mxu0 0
        %1379 = vmatpush1.bf16.msra.mxu0 0
        %1380 = vmatprep.mubr.bf16.mxu0 0
        %1381 = vmatmul.mubr.bf16.gmra.mrb[0].mxu0 %v1296
        %v1382 = vpop.f32.mrb[0].mxu0
        %v1383 = vadd.f32 0.0, %v1382
        %v1384 = vpop.f32.mrb[0].mxu0
        %v1385 = vpop.f32.mrb[0].mxu0
        %v1386 = vadd.f32 0.0, %v1385
        %v1387 = vpop.f32.mrb[0].mxu0
        %1388 = vmatprep.mubr.bf16.mxu0 0
        %1389 = vmatmul.mubr.bf16.gmra.mrb[0].mxu0 %v1297
        %v1390 = vpop.f32.mrb[0].mxu0
        %v1391 = vadd.f32 0.0, %v1390
        %v1392 = vpop.f32.mrb[0].mxu0
        %v1393 = vpop.f32.mrb[0].mxu0
        %v1394 = vadd.f32 0.0, %v1393
        %v1395 = vpop.f32.mrb[0].mxu0
        %1396 = vmatprep.mubr.bf16.mxu0 0
        %1397 = vmatmul.mubr.bf16.gmra.mrb[0].mxu0 %v1298
        %v1398 = vpop.f32.mrb[0].mxu0
        %v1399 = vadd.f32 0.0, %v1398
        %v1400 = vpop.f32.mrb[0].mxu0
        %v1401 = vpop.f32.mrb[0].mxu0
        %v1402 = vadd.f32 0.0, %v1401
        %v1403 = vpop.f32.mrb[0].mxu0
        %1404 = vmatprep.mubr.bf16.mxu0 0
        %1405 = vmatmul.mubr.bf16.gmra.mrb[0].mxu0 %v1299
        %v1406 = vpop.f32.mrb[0].mxu0
        %v1407 = vadd.f32 0.0, %v1406
        %v1408 = vpop.f32.mrb[0].mxu0
        %v1409 = vpop.f32.mrb[0].mxu0
        %v1410 = vadd.f32 0.0, %v1409
        %v1411 = vpop.f32.mrb[0].mxu0
        %1412 = vdwg.mxu0
        %v1413 = vadd.f32 %v1288, %v1383
        %v1414 = vadd.f32 %v1289, %v1386
        %v1415 = vadd.f32 %v1290, %v1391
        %v1416 = vadd.f32 %v1291, %v1394
        %v1417 = vadd.f32 %v1292, %v1399
        %v1418 = vadd.f32 %v1293, %v1402
        %v1419 = vadd.f32 %v1294, %v1407
        %v1420 = vadd.f32 %v1295, %v1410
        %1421 = vst [vmem:[%s1239] sm:$0xff] %v1413
        %1422 = vst [vmem:[%s1239 + $0x8] sm:$0xff] %v1414
        %1423 = vst [vmem:[%s1239 + $0x10] sm:$0xff] %v1415
        %1424 = vst [vmem:[%s1239 + $0x18] sm:$0xff] %v1416
        %1425 = vst [vmem:[%s1239 + $0x20] sm:$0xff] %v1417
        %1426 = vst [vmem:[%s1239 + $0x28] sm:$0xff] %v1418
        %1427 = vst [vmem:[%s1239 + $0x30] sm:$0xff] %v1419
        %1428 = vst [vmem:[%s1239 + $0x38] sm:$0xff] %v1420
        %1429 = vst.msk [vmem:[%s1053] sm:$0xff] %vm738, %v1078
        %1430 = vst.msk [vmem:[%s1053 + $0x8] sm:$0xff] %vm738, %v1079
        %1431 = vst.msk [vmem:[%s1053 + $0x10] sm:$0xff] %vm738, %v1080
        %1432 = vst.msk [vmem:[%s1053 + $0x18] sm:$0xff] %vm738, %v1081
        %1433 = vst.msk [vmem:[%s1053 + $0x20] sm:$0xff] %vm738, %v1082
        %1434 = vst.msk [vmem:[%s1053 + $0x28] sm:$0xff] %vm738, %v1083
        %1435 = vst.msk [vmem:[%s1053 + $0x30] sm:$0xff] %vm738, %v1084
        %1436 = vst.msk [vmem:[%s1053 + $0x38] sm:$0xff] %vm738, %v1085
        %1437 = vset.pattern.permute.xlu0 2
        %1438 = vperm.xlu0 %1437, %v469
        %v1439 = vpop.permute.xlu0 %1438
        %1441 = vset.pattern.permute.xlu0 2
        %1442 = vperm.xlu0 %1441, %v470
        %v1443 = vpop.permute.xlu0 %1442
        %1445 = vset.pattern.permute.xlu0 2
        %1446 = vperm.xlu0 %1445, %v471
        %v1447 = vpop.permute.xlu0 %1446
        %1449 = vset.pattern.permute.xlu0 2
        %1450 = vperm.xlu0 %1449, %v472
        %v1451 = vpop.permute.xlu0 %1450
        %1453 = vset.pattern.permute.xlu0 2
        %1454 = vperm.xlu0 %1453, %v473
        %v1455 = vpop.permute.xlu0 %1454
        %1457 = vset.pattern.permute.xlu0 2
        %1458 = vperm.xlu0 %1457, %v474
        %v1459 = vpop.permute.xlu0 %1458
        %1461 = vset.pattern.permute.xlu0 2
        %1462 = vperm.xlu0 %1461, %v475
        %v1463 = vpop.permute.xlu0 %1462
        %1465 = vset.pattern.permute.xlu0 2
        %1466 = vperm.xlu0 %1465, %v476
        %v1467 = vpop.permute.xlu0 %1466
        %v1469 = vlaneseq
        %v1470 = vshrl.u32 %v1469, 7
        %v1471 = vsub.s32 2, %v1470
        %v1472 = vrot.slane %v477, %v1471
        %v1473 = vadd.f32 %v1439, %v1472
        %v1474 = vadd.f32 %v1443, %v1472
        %v1475 = vadd.f32 %v1447, %v1472
        %v1476 = vadd.f32 %v1451, %v1472
        %v1477 = vadd.f32 %v1455, %v1472
        %v1478 = vadd.f32 %v1459, %v1472
        %v1479 = vadd.f32 %v1463, %v1472
        %v1480 = vadd.f32 %v1467, %v1472
        %s1481 = scalar_lea.vmem %s313, 64 [#allocation8]
        %v1482 = vld [vmem:[%s1481] sm:$0xf]
        %v1483 = vld [vmem:[%s1481 + $0x4] sm:$0xf]
        %v1484 = vld [vmem:[%s1481 + $0x8] sm:$0xf]
        %v1485 = vld [vmem:[%s1481 + $0xc] sm:$0xf]
        %v1486 = vld [vmem:[%s1481 + $0x10] sm:$0xf]
        %v1487 = vld [vmem:[%s1481 + $0x14] sm:$0xf]
        %v1488 = vld [vmem:[%s1481 + $0x18] sm:$0xf]
        %v1489 = vld [vmem:[%s1481 + $0x1c] sm:$0xf]
        %v1490 = vunpack.c.l.bf16 %v1482
        %v1491 = vunpack.c.l.bf16 %v1483
        %v1492 = vunpack.c.l.bf16 %v1484
        %v1493 = vunpack.c.l.bf16 %v1485
        %v1494 = vunpack.c.l.bf16 %v1486
        %v1495 = vunpack.c.l.bf16 %v1487
        %v1496 = vunpack.c.l.bf16 %v1488
        %v1497 = vunpack.c.l.bf16 %v1489
        %v1498 = vadd.f32 %v1473, %v1490
        %v1499 = vadd.f32 %v1474, %v1491
        %v1500 = vadd.f32 %v1475, %v1492
        %v1501 = vadd.f32 %v1476, %v1493
        %v1502 = vadd.f32 %v1477, %v1494
        %v1503 = vadd.f32 %v1478, %v1495
        %v1504 = vadd.f32 %v1479, %v1496
        %v1505 = vadd.f32 %v1480, %v1497
        %vm1506 = vcmp.ge.f32.partialorder %v1498, 0.0
        %vm1507 = vcmp.ge.f32.partialorder %v1499, 0.0
        %vm1508 = vcmp.ge.f32.partialorder %v1500, 0.0
        %vm1509 = vcmp.ge.f32.partialorder %v1501, 0.0
        %vm1510 = vcmp.ge.f32.partialorder %v1502, 0.0
        %vm1511 = vcmp.ge.f32.partialorder %v1503, 0.0
        %vm1512 = vcmp.ge.f32.partialorder %v1504, 0.0
        %vm1513 = vcmp.ge.f32.partialorder %v1505, 0.0
        %v1514 = vmul.f32 %v1498, 0.2
        %v1515 = vmul.f32 %v1499, 0.2
        %v1516 = vmul.f32 %v1500, 0.2
        %v1517 = vmul.f32 %v1501, 0.2
        %v1518 = vmul.f32 %v1502, 0.2
        %v1519 = vmul.f32 %v1503, 0.2
        %v1520 = vmul.f32 %v1504, 0.2
        %v1521 = vmul.f32 %v1505, 0.2
        %v1522 = vsel %vm1506, %v1498, %v1514
        %v1523 = vsel %vm1507, %v1499, %v1515
        %v1524 = vsel %vm1508, %v1500, %v1516
        %v1525 = vsel %vm1509, %v1501, %v1517
        %v1526 = vsel %vm1510, %v1502, %v1518
        %v1527 = vsel %vm1511, %v1503, %v1519
        %v1528 = vsel %vm1512, %v1504, %v1520
        %v1529 = vsel %vm1513, %v1505, %v1521
        %s1530 = scalar_lea.vmem [#allocation2], 128
        %v1531 = vld [vmem:[%s1530] sm:$0xff]
        %v1532 = vld [vmem:[%s1530 + $0x8] sm:$0xff]
        %v1533 = vld [vmem:[%s1530 + $0x10] sm:$0xff]
        %v1534 = vld [vmem:[%s1530 + $0x18] sm:$0xff]
        %v1535 = vld [vmem:[%s1530 + $0x20] sm:$0xff]
        %v1536 = vld [vmem:[%s1530 + $0x28] sm:$0xff]
        %v1537 = vld [vmem:[%s1530 + $0x30] sm:$0xff]
        %v1538 = vld [vmem:[%s1530 + $0x38] sm:$0xff]
        %1539 = vmax.xlane.f32.xlu0 %v1522
        %v1540 = vpop.xlane.xlu0 %1539
        %1541 = vmax.xlane.f32.xlu0 %v1523
        %v1542 = vpop.xlane.xlu0 %1541
        %1543 = vmax.xlane.f32.xlu0 %v1524
        %v1544 = vpop.xlane.xlu0 %1543
        %1545 = vmax.xlane.f32.xlu0 %v1525
        %v1546 = vpop.xlane.xlu0 %1545
        %1547 = vmax.xlane.f32.xlu0 %v1526
        %v1548 = vpop.xlane.xlu0 %1547
        %1549 = vmax.xlane.f32.xlu0 %v1527
        %v1550 = vpop.xlane.xlu0 %1549
        %1551 = vmax.xlane.f32.xlu0 %v1528
        %v1552 = vpop.xlane.xlu0 %1551
        %1553 = vmax.xlane.f32.xlu0 %v1529
        %v1554 = vpop.xlane.xlu0 %1553
        %v1555 = vmax.f32 %v1531, %v1540
        %v1556 = vmax.f32 %v1532, %v1542
        %v1557 = vmax.f32 %v1533, %v1544
        %v1558 = vmax.f32 %v1534, %v1546
        %v1559 = vmax.f32 %v1535, %v1548
        %v1560 = vmax.f32 %v1536, %v1550
        %v1561 = vmax.f32 %v1537, %v1552
        %v1562 = vmax.f32 %v1538, %v1554
        %v1563 = vsub.f32 %v1531, %v1555
        %v1564 = vsub.f32 %v1532, %v1556
        %v1565 = vsub.f32 %v1533, %v1557
        %v1566 = vsub.f32 %v1534, %v1558
        %v1567 = vsub.f32 %v1535, %v1559
        %v1568 = vsub.f32 %v1536, %v1560
        %v1569 = vsub.f32 %v1537, %v1561
        %v1570 = vsub.f32 %v1538, %v1562
        %v1571 = vmul.f32 %v1563, 1.442695
        %v1572 = vpow.pop %v1571
        %v1573 = vmul.f32 %v1564, 1.442695
        %v1574 = vpow.pop %v1573
        %v1575 = vmul.f32 %v1565, 1.442695
        %v1576 = vpow.pop %v1575
        %v1577 = vmul.f32 %v1566, 1.442695
        %v1578 = vpow.pop %v1577
        %v1579 = vmul.f32 %v1567, 1.442695
        %v1580 = vpow.pop %v1579
        %v1581 = vmul.f32 %v1568, 1.442695
        %v1582 = vpow.pop %v1581
        %v1583 = vmul.f32 %v1569, 1.442695
        %v1584 = vpow.pop %v1583
        %v1585 = vmul.f32 %v1570, 1.442695
        %v1586 = vpow.pop %v1585
        %1588 = vset.pattern.permute.xlu0 0
        %1589 = vperm.xlu0 %1588, %v1555
        %v1590 = vpop.permute.xlu0 %1589
        %1593 = vset.pattern.permute.xlu0 0
        %1594 = vperm.xlu0 %1593, %v1556
        %v1595 = vpop.permute.xlu0 %1594
        %1598 = vset.pattern.permute.xlu0 0
        %1599 = vperm.xlu0 %1598, %v1557
        %v1600 = vpop.permute.xlu0 %1599
        %1603 = vset.pattern.permute.xlu0 0
        %1604 = vperm.xlu0 %1603, %v1558
        %v1605 = vpop.permute.xlu0 %1604
        %1608 = vset.pattern.permute.xlu0 0
        %1609 = vperm.xlu0 %1608, %v1559
        %v1610 = vpop.permute.xlu0 %1609
        %1613 = vset.pattern.permute.xlu0 0
        %1614 = vperm.xlu0 %1613, %v1560
        %v1615 = vpop.permute.xlu0 %1614
        %1618 = vset.pattern.permute.xlu0 0
        %1619 = vperm.xlu0 %1618, %v1561
        %v1620 = vpop.permute.xlu0 %1619
        %1623 = vset.pattern.permute.xlu0 0
        %1624 = vperm.xlu0 %1623, %v1562
        %v1625 = vpop.permute.xlu0 %1624
        %v1627 = vsub.f32 %v1522, %v1590
        %v1628 = vsub.f32 %v1523, %v1595
        %v1629 = vsub.f32 %v1524, %v1600
        %v1630 = vsub.f32 %v1525, %v1605
        %v1631 = vsub.f32 %v1526, %v1610
        %v1632 = vsub.f32 %v1527, %v1615
        %v1633 = vsub.f32 %v1528, %v1620
        %v1634 = vsub.f32 %v1529, %v1625
        %v1635 = vmul.f32 %v1627, 1.442695
        %v1636 = vpow.pop %v1635
        %v1637 = vmul.f32 %v1628, 1.442695
        %v1638 = vpow.pop %v1637
        %v1639 = vmul.f32 %v1629, 1.442695
        %v1640 = vpow.pop %v1639
        %v1641 = vmul.f32 %v1630, 1.442695
        %v1642 = vpow.pop %v1641
        %v1643 = vmul.f32 %v1631, 1.442695
        %v1644 = vpow.pop %v1643
        %v1645 = vmul.f32 %v1632, 1.442695
        %v1646 = vpow.pop %v1645
        %v1647 = vmul.f32 %v1633, 1.442695
        %v1648 = vpow.pop %v1647
        %v1649 = vmul.f32 %v1634, 1.442695
        %v1650 = vpow.pop %v1649
        %s1651 = scalar_lea.vmem [#allocation3], 128
        %v1652 = vld [vmem:[%s1651] sm:$0xff]
        %v1653 = vld [vmem:[%s1651 + $0x8] sm:$0xff]
        %v1654 = vld [vmem:[%s1651 + $0x10] sm:$0xff]
        %v1655 = vld [vmem:[%s1651 + $0x18] sm:$0xff]
        %v1656 = vld [vmem:[%s1651 + $0x20] sm:$0xff]
        %v1657 = vld [vmem:[%s1651 + $0x28] sm:$0xff]
        %v1658 = vld [vmem:[%s1651 + $0x30] sm:$0xff]
        %v1659 = vld [vmem:[%s1651 + $0x38] sm:$0xff]
        %v1660 = vmul.f32 %v1572, %v1652
        %v1661 = vmul.f32 %v1574, %v1653
        %v1662 = vmul.f32 %v1576, %v1654
        %v1663 = vmul.f32 %v1578, %v1655
        %v1664 = vmul.f32 %v1580, %v1656
        %v1665 = vmul.f32 %v1582, %v1657
        %v1666 = vmul.f32 %v1584, %v1658
        %v1667 = vmul.f32 %v1586, %v1659
        %1668 = vadd.xlane.f32.xlu0 %v1636
        %v1669 = vpop.xlane.xlu0 %1668
        %1670 = vadd.xlane.f32.xlu0 %v1638
        %v1671 = vpop.xlane.xlu0 %1670
        %1672 = vadd.xlane.f32.xlu0 %v1640
        %v1673 = vpop.xlane.xlu0 %1672
        %1674 = vadd.xlane.f32.xlu0 %v1642
        %v1675 = vpop.xlane.xlu0 %1674
        %1676 = vadd.xlane.f32.xlu0 %v1644
        %v1677 = vpop.xlane.xlu0 %1676
        %1678 = vadd.xlane.f32.xlu0 %v1646
        %v1679 = vpop.xlane.xlu0 %1678
        %1680 = vadd.xlane.f32.xlu0 %v1648
        %v1681 = vpop.xlane.xlu0 %1680
        %1682 = vadd.xlane.f32.xlu0 %v1650
        %v1683 = vpop.xlane.xlu0 %1682
        %v1684 = vadd.f32 %v1660, %v1669
        %v1685 = vadd.f32 %v1661, %v1671
        %v1686 = vadd.f32 %v1662, %v1673
        %v1687 = vadd.f32 %v1663, %v1675
        %v1688 = vadd.f32 %v1664, %v1677
        %v1689 = vadd.f32 %v1665, %v1679
        %v1690 = vadd.f32 %v1666, %v1681
        %v1691 = vadd.f32 %v1667, %v1683
        %1692 = vst.msk [vmem:[%s1651] sm:$0xff] %vm738, %v1684
        %1693 = vst.msk [vmem:[%s1651 + $0x8] sm:$0xff] %vm738, %v1685
        %1694 = vst.msk [vmem:[%s1651 + $0x10] sm:$0xff] %vm738, %v1686
        %1695 = vst.msk [vmem:[%s1651 + $0x18] sm:$0xff] %vm738, %v1687
        %1696 = vst.msk [vmem:[%s1651 + $0x20] sm:$0xff] %vm738, %v1688
        %1697 = vst.msk [vmem:[%s1651 + $0x28] sm:$0xff] %vm738, %v1689
        %1698 = vst.msk [vmem:[%s1651 + $0x30] sm:$0xff] %vm738, %v1690
        %1699 = vst.msk [vmem:[%s1651 + $0x38] sm:$0xff] %vm738, %v1691
        %v1700 = vld [vmem:[%s304 + $0x8] sm:$0xf]
        %v1701 = vld [vmem:[%s304 + $0x18] sm:$0xf]
        %v1702 = vld [vmem:[%s304 + $0x28] sm:$0xf]
        %v1703 = vld [vmem:[%s304 + $0x38] sm:$0xf]
        %v1704 = vld [vmem:[%s304 + $0x48] sm:$0xf]
        %v1705 = vld [vmem:[%s304 + $0x58] sm:$0xf]
        %v1706 = vld [vmem:[%s304 + $0x68] sm:$0xf]
        %v1707 = vld [vmem:[%s304 + $0x78] sm:$0xf]
        %v1708 = vld [vmem:[%s304 + $0x88] sm:$0xf]
        %v1709 = vld [vmem:[%s304 + $0x98] sm:$0xf]
        %v1710 = vld [vmem:[%s304 + $0xa8] sm:$0xf]
        %v1711 = vld [vmem:[%s304 + $0xb8] sm:$0xf]
        %v1712 = vld [vmem:[%s304 + $0xc8] sm:$0xf]
        %v1713 = vld [vmem:[%s304 + $0xd8] sm:$0xf]
        %v1714 = vld [vmem:[%s304 + $0xe8] sm:$0xf]
        %v1715 = vld [vmem:[%s304 + $0xf8] sm:$0xf]
        %s1716 = scalar_lea.vmem [#allocation4], 128
        %v1717 = vld [vmem:[%s1716] sm:$0xff]
        %v1718 = vld [vmem:[%s1716 + $0x8] sm:$0xff]
        %v1719 = vld [vmem:[%s1716 + $0x10] sm:$0xff]
        %v1720 = vld [vmem:[%s1716 + $0x18] sm:$0xff]
        %v1721 = vld [vmem:[%s1716 + $0x20] sm:$0xff]
        %v1722 = vld [vmem:[%s1716 + $0x28] sm:$0xff]
        %v1723 = vld [vmem:[%s1716 + $0x30] sm:$0xff]
        %v1724 = vld [vmem:[%s1716 + $0x38] sm:$0xff]
        %1726 = vset.pattern.permute.xlu0 0
        %1727 = vperm.xlu0 %1726, %v1572
        %v1728 = vpop.permute.xlu0 %1727
        %1731 = vset.pattern.permute.xlu0 0
        %1732 = vperm.xlu0 %1731, %v1574
        %v1733 = vpop.permute.xlu0 %1732
        %1736 = vset.pattern.permute.xlu0 0
        %1737 = vperm.xlu0 %1736, %v1576
        %v1738 = vpop.permute.xlu0 %1737
        %1741 = vset.pattern.permute.xlu0 0
        %1742 = vperm.xlu0 %1741, %v1578
        %v1743 = vpop.permute.xlu0 %1742
        %1746 = vset.pattern.permute.xlu0 0
        %1747 = vperm.xlu0 %1746, %v1580
        %v1748 = vpop.permute.xlu0 %1747
        %1751 = vset.pattern.permute.xlu0 0
        %1752 = vperm.xlu0 %1751, %v1582
        %v1753 = vpop.permute.xlu0 %1752
        %1756 = vset.pattern.permute.xlu0 0
        %1757 = vperm.xlu0 %1756, %v1584
        %v1758 = vpop.permute.xlu0 %1757
        %1761 = vset.pattern.permute.xlu0 0
        %1762 = vperm.xlu0 %1761, %v1586
        %v1763 = vpop.permute.xlu0 %1762
        %v1765 = vmul.f32 %v1728, %v1717
        %v1766 = vmul.f32 %v1733, %v1718
        %v1767 = vmul.f32 %v1738, %v1719
        %v1768 = vmul.f32 %v1743, %v1720
        %v1769 = vmul.f32 %v1748, %v1721
        %v1770 = vmul.f32 %v1753, %v1722
        %v1771 = vmul.f32 %v1758, %v1723
        %v1772 = vmul.f32 %v1763, %v1724
        %v1773 = vpack.c.bf16 %v1638, %v1636
        %v1774 = vpack.c.bf16 %v1642, %v1640
        %v1775 = vpack.c.bf16 %v1646, %v1644
        %v1776 = vpack.c.bf16 %v1650, %v1648
        %v1793 = vunpack.c.l.b16 %v1700
        %v1794 = vunpack.c.l.b16 %v1701
        %v1795 = vunpack.c.l.b16 %v1702
        %v1796 = vunpack.c.l.b16 %v1703
        %v1797 = vunpack.c.l.b16 %v1704
        %v1798 = vunpack.c.l.b16 %v1705
        %v1799 = vunpack.c.l.b16 %v1706
        %v1800 = vunpack.c.l.b16 %v1707
        %v1801 = vunpack.c.l.b16 %v1708
        %v1802 = vunpack.c.l.b16 %v1709
        %v1803 = vunpack.c.l.b16 %v1710
        %v1804 = vunpack.c.l.b16 %v1711
        %v1805 = vunpack.c.l.b16 %v1712
        %v1806 = vunpack.c.l.b16 %v1713
        %v1807 = vunpack.c.l.b16 %v1714
        %v1808 = vunpack.c.l.b16 %v1715
        %v1809 = vpack.c.b16 %v1794, %v1793
        %v1810 = vpack.c.b16 %v1796, %v1795
        %v1811 = vpack.c.b16 %v1798, %v1797
        %v1812 = vpack.c.b16 %v1800, %v1799
        %v1813 = vpack.c.b16 %v1802, %v1801
        %v1814 = vpack.c.b16 %v1804, %v1803
        %v1815 = vpack.c.b16 %v1806, %v1805
        %v1816 = vpack.c.b16 %v1808, %v1807
        %1825 = vmatprep.subr.bf16.mxu0 0
        %1826 = vmatpush1.bf16.msra.mxu0 %v1809
        %1827 = vmatprep.subr.bf16.mxu0 0
        %1828 = vmatpush1.bf16.msra.mxu0 %v1810
        %1829 = vmatprep.subr.bf16.mxu0 0
        %1830 = vmatpush1.bf16.msra.mxu0 %v1811
        %1831 = vmatprep.subr.bf16.mxu0 0
        %1832 = vmatpush1.bf16.msra.mxu0 %v1812
        %1833 = vmatprep.subr.bf16.mxu0 0
        %1834 = vmatpush1.bf16.msra.mxu0 %v1813
        %1835 = vmatprep.subr.bf16.mxu0 0
        %1836 = vmatpush1.bf16.msra.mxu0 %v1814
        %1837 = vmatprep.subr.bf16.mxu0 0
        %1838 = vmatpush1.bf16.msra.mxu0 %v1815
        %1839 = vmatprep.subr.bf16.mxu0 0
        %1840 = vmatpush1.bf16.msra.mxu0 %v1816
        %1841 = vmatprep.subr.bf16.mxu0 0
        %1842 = vmatpush1.bf16.msra.mxu0 0
        %1843 = vmatprep.subr.bf16.mxu0 0
        %1844 = vmatpush1.bf16.msra.mxu0 0
        %1845 = vmatprep.subr.bf16.mxu0 0
        %1846 = vmatpush1.bf16.msra.mxu0 0
        %1847 = vmatprep.subr.bf16.mxu0 0
        %1848 = vmatpush1.bf16.msra.mxu0 0
        %1849 = vmatprep.subr.bf16.mxu0 0
        %1850 = vmatpush1.bf16.msra.mxu0 0
        %1851 = vmatprep.subr.bf16.mxu0 0
        %1852 = vmatpush1.bf16.msra.mxu0 0
        %1853 = vmatprep.subr.bf16.mxu0 0
        %1854 = vmatpush1.bf16.msra.mxu0 0
        %1855 = vmatprep.subr.bf16.mxu0 0
        %1856 = vmatpush1.bf16.msra.mxu0 0
        %1857 = vmatprep.mubr.bf16.mxu0 0
        %1858 = vmatmul.mubr.bf16.gmra.mrb[0].mxu0 %v1773
        %v1859 = vpop.f32.mrb[0].mxu0
        %v1860 = vadd.f32 0.0, %v1859
        %v1861 = vpop.f32.mrb[0].mxu0
        %v1862 = vpop.f32.mrb[0].mxu0
        %v1863 = vadd.f32 0.0, %v1862
        %v1864 = vpop.f32.mrb[0].mxu0
        %1865 = vmatprep.mubr.bf16.mxu0 0
        %1866 = vmatmul.mubr.bf16.gmra.mrb[0].mxu0 %v1774
        %v1867 = vpop.f32.mrb[0].mxu0
        %v1868 = vadd.f32 0.0, %v1867
        %v1869 = vpop.f32.mrb[0].mxu0
        %v1870 = vpop.f32.mrb[0].mxu0
        %v1871 = vadd.f32 0.0, %v1870
        %v1872 = vpop.f32.mrb[0].mxu0
        %1873 = vmatprep.mubr.bf16.mxu0 0
        %1874 = vmatmul.mubr.bf16.gmra.mrb[0].mxu0 %v1775
        %v1875 = vpop.f32.mrb[0].mxu0
        %v1876 = vadd.f32 0.0, %v1875
        %v1877 = vpop.f32.mrb[0].mxu0
        %v1878 = vpop.f32.mrb[0].mxu0
        %v1879 = vadd.f32 0.0, %v1878
        %v1880 = vpop.f32.mrb[0].mxu0
        %1881 = vmatprep.mubr.bf16.mxu0 0
        %1882 = vmatmul.mubr.bf16.gmra.mrb[0].mxu0 %v1776
        %v1883 = vpop.f32.mrb[0].mxu0
        %v1884 = vadd.f32 0.0, %v1883
        %v1885 = vpop.f32.mrb[0].mxu0
        %v1886 = vpop.f32.mrb[0].mxu0
        %v1887 = vadd.f32 0.0, %v1886
        %v1888 = vpop.f32.mrb[0].mxu0
        %1889 = vdwg.mxu0
        %v1890 = vadd.f32 %v1765, %v1860
        %v1891 = vadd.f32 %v1766, %v1863
        %v1892 = vadd.f32 %v1767, %v1868
        %v1893 = vadd.f32 %v1768, %v1871
        %v1894 = vadd.f32 %v1769, %v1876
        %v1895 = vadd.f32 %v1770, %v1879
        %v1896 = vadd.f32 %v1771, %v1884
        %v1897 = vadd.f32 %v1772, %v1887
        %1898 = vst [vmem:[%s1716] sm:$0xff] %v1890
        %1899 = vst [vmem:[%s1716 + $0x8] sm:$0xff] %v1891
        %1900 = vst [vmem:[%s1716 + $0x10] sm:$0xff] %v1892
        %1901 = vst [vmem:[%s1716 + $0x18] sm:$0xff] %v1893
        %1902 = vst [vmem:[%s1716 + $0x20] sm:$0xff] %v1894
        %1903 = vst [vmem:[%s1716 + $0x28] sm:$0xff] %v1895
        %1904 = vst [vmem:[%s1716 + $0x30] sm:$0xff] %v1896
        %1905 = vst [vmem:[%s1716 + $0x38] sm:$0xff] %v1897
        %1906 = vst.msk [vmem:[%s1530] sm:$0xff] %vm738, %v1555
        %1907 = vst.msk [vmem:[%s1530 + $0x8] sm:$0xff] %vm738, %v1556
        %1908 = vst.msk [vmem:[%s1530 + $0x10] sm:$0xff] %vm738, %v1557
        %1909 = vst.msk [vmem:[%s1530 + $0x18] sm:$0xff] %vm738, %v1558
        %1910 = vst.msk [vmem:[%s1530 + $0x20] sm:$0xff] %vm738, %v1559
        %1911 = vst.msk [vmem:[%s1530 + $0x28] sm:$0xff] %vm738, %v1560
        %1912 = vst.msk [vmem:[%s1530 + $0x30] sm:$0xff] %vm738, %v1561
        %1913 = vst.msk [vmem:[%s1530 + $0x38] sm:$0xff] %vm738, %v1562
        %1914 = vset.pattern.permute.xlu0 3
        %1915 = vperm.xlu0 %1914, %v469
        %v1916 = vpop.permute.xlu0 %1915
        %1918 = vset.pattern.permute.xlu0 3
        %1919 = vperm.xlu0 %1918, %v470
        %v1920 = vpop.permute.xlu0 %1919
        %1922 = vset.pattern.permute.xlu0 3
        %1923 = vperm.xlu0 %1922, %v471
        %v1924 = vpop.permute.xlu0 %1923
        %1926 = vset.pattern.permute.xlu0 3
        %1927 = vperm.xlu0 %1926, %v472
        %v1928 = vpop.permute.xlu0 %1927
        %1930 = vset.pattern.permute.xlu0 3
        %1931 = vperm.xlu0 %1930, %v473
        %v1932 = vpop.permute.xlu0 %1931
        %1934 = vset.pattern.permute.xlu0 3
        %1935 = vperm.xlu0 %1934, %v474
        %v1936 = vpop.permute.xlu0 %1935
        %1938 = vset.pattern.permute.xlu0 3
        %1939 = vperm.xlu0 %1938, %v475
        %v1940 = vpop.permute.xlu0 %1939
        %1942 = vset.pattern.permute.xlu0 3
        %1943 = vperm.xlu0 %1942, %v476
        %v1944 = vpop.permute.xlu0 %1943
        %v1946 = vlaneseq
        %v1947 = vshrl.u32 %v1946, 7
        %v1948 = vsub.s32 3, %v1947
        %v1949 = vrot.slane %v477, %v1948
        %v1950 = vadd.f32 %v1916, %v1949
        %v1951 = vadd.f32 %v1920, %v1949
        %v1952 = vadd.f32 %v1924, %v1949
        %v1953 = vadd.f32 %v1928, %v1949
        %v1954 = vadd.f32 %v1932, %v1949
        %v1955 = vadd.f32 %v1936, %v1949
        %v1956 = vadd.f32 %v1940, %v1949
        %v1957 = vadd.f32 %v1944, %v1949
        %s1958 = scalar_lea.vmem %s313, 96 [#allocation8]
        %v1959 = vld [vmem:[%s1958] sm:$0xf]
        %v1960 = vld [vmem:[%s1958 + $0x4] sm:$0xf]
        %v1961 = vld [vmem:[%s1958 + $0x8] sm:$0xf]
        %v1962 = vld [vmem:[%s1958 + $0xc] sm:$0xf]
        %v1963 = vld [vmem:[%s1958 + $0x10] sm:$0xf]
        %v1964 = vld [vmem:[%s1958 + $0x14] sm:$0xf]
        %v1965 = vld [vmem:[%s1958 + $0x18] sm:$0xf]
        %v1966 = vld [vmem:[%s1958 + $0x1c] sm:$0xf]
        %v1967 = vunpack.c.l.bf16 %v1959
        %v1968 = vunpack.c.l.bf16 %v1960
        %v1969 = vunpack.c.l.bf16 %v1961
        %v1970 = vunpack.c.l.bf16 %v1962
        %v1971 = vunpack.c.l.bf16 %v1963
        %v1972 = vunpack.c.l.bf16 %v1964
        %v1973 = vunpack.c.l.bf16 %v1965
        %v1974 = vunpack.c.l.bf16 %v1966
        %v1975 = vadd.f32 %v1950, %v1967
        %v1976 = vadd.f32 %v1951, %v1968
        %v1977 = vadd.f32 %v1952, %v1969
        %v1978 = vadd.f32 %v1953, %v1970
        %v1979 = vadd.f32 %v1954, %v1971
        %v1980 = vadd.f32 %v1955, %v1972
        %v1981 = vadd.f32 %v1956, %v1973
        %v1982 = vadd.f32 %v1957, %v1974
        %vm1983 = vcmp.ge.f32.partialorder %v1975, 0.0
        %vm1984 = vcmp.ge.f32.partialorder %v1976, 0.0
        %vm1985 = vcmp.ge.f32.partialorder %v1977, 0.0
        %vm1986 = vcmp.ge.f32.partialorder %v1978, 0.0
        %vm1987 = vcmp.ge.f32.partialorder %v1979, 0.0
        %vm1988 = vcmp.ge.f32.partialorder %v1980, 0.0
        %vm1989 = vcmp.ge.f32.partialorder %v1981, 0.0
        %vm1990 = vcmp.ge.f32.partialorder %v1982, 0.0
        %v1991 = vmul.f32 %v1975, 0.2
        %v1992 = vmul.f32 %v1976, 0.2
        %v1993 = vmul.f32 %v1977, 0.2
        %v1994 = vmul.f32 %v1978, 0.2
        %v1995 = vmul.f32 %v1979, 0.2
        %v1996 = vmul.f32 %v1980, 0.2
        %v1997 = vmul.f32 %v1981, 0.2
        %v1998 = vmul.f32 %v1982, 0.2
        %v1999 = vsel %vm1983, %v1975, %v1991
        %v2000 = vsel %vm1984, %v1976, %v1992
        %v2001 = vsel %vm1985, %v1977, %v1993
        %v2002 = vsel %vm1986, %v1978, %v1994
        %v2003 = vsel %vm1987, %v1979, %v1995
        %v2004 = vsel %vm1988, %v1980, %v1996
        %v2005 = vsel %vm1989, %v1981, %v1997
        %v2006 = vsel %vm1990, %v1982, %v1998
        %s2007 = scalar_lea.vmem [#allocation2], 192
        %v2008 = vld [vmem:[%s2007] sm:$0xff]
        %v2009 = vld [vmem:[%s2007 + $0x8] sm:$0xff]
        %v2010 = vld [vmem:[%s2007 + $0x10] sm:$0xff]
        %v2011 = vld [vmem:[%s2007 + $0x18] sm:$0xff]
        %v2012 = vld [vmem:[%s2007 + $0x20] sm:$0xff]
        %v2013 = vld [vmem:[%s2007 + $0x28] sm:$0xff]
        %v2014 = vld [vmem:[%s2007 + $0x30] sm:$0xff]
        %v2015 = vld [vmem:[%s2007 + $0x38] sm:$0xff]
        %2016 = vmax.xlane.f32.xlu0 %v1999
        %v2017 = vpop.xlane.xlu0 %2016
        %2018 = vmax.xlane.f32.xlu0 %v2000
        %v2019 = vpop.xlane.xlu0 %2018
        %2020 = vmax.xlane.f32.xlu0 %v2001
        %v2021 = vpop.xlane.xlu0 %2020
        %2022 = vmax.xlane.f32.xlu0 %v2002
        %v2023 = vpop.xlane.xlu0 %2022
        %2024 = vmax.xlane.f32.xlu0 %v2003
        %v2025 = vpop.xlane.xlu0 %2024
        %2026 = vmax.xlane.f32.xlu0 %v2004
        %v2027 = vpop.xlane.xlu0 %2026
        %2028 = vmax.xlane.f32.xlu0 %v2005
        %v2029 = vpop.xlane.xlu0 %2028
        %2030 = vmax.xlane.f32.xlu0 %v2006
        %v2031 = vpop.xlane.xlu0 %2030
        %v2032 = vmax.f32 %v2008, %v2017
        %v2033 = vmax.f32 %v2009, %v2019
        %v2034 = vmax.f32 %v2010, %v2021
        %v2035 = vmax.f32 %v2011, %v2023
        %v2036 = vmax.f32 %v2012, %v2025
        %v2037 = vmax.f32 %v2013, %v2027
        %v2038 = vmax.f32 %v2014, %v2029
        %v2039 = vmax.f32 %v2015, %v2031
        %v2040 = vsub.f32 %v2008, %v2032
        %v2041 = vsub.f32 %v2009, %v2033
        %v2042 = vsub.f32 %v2010, %v2034
        %v2043 = vsub.f32 %v2011, %v2035
        %v2044 = vsub.f32 %v2012, %v2036
        %v2045 = vsub.f32 %v2013, %v2037
        %v2046 = vsub.f32 %v2014, %v2038
        %v2047 = vsub.f32 %v2015, %v2039
        %v2048 = vmul.f32 %v2040, 1.442695
        %v2049 = vpow.pop %v2048
        %v2050 = vmul.f32 %v2041, 1.442695
        %v2051 = vpow.pop %v2050
        %v2052 = vmul.f32 %v2042, 1.442695
        %v2053 = vpow.pop %v2052
        %v2054 = vmul.f32 %v2043, 1.442695
        %v2055 = vpow.pop %v2054
        %v2056 = vmul.f32 %v2044, 1.442695
        %v2057 = vpow.pop %v2056
        %v2058 = vmul.f32 %v2045, 1.442695
        %v2059 = vpow.pop %v2058
        %v2060 = vmul.f32 %v2046, 1.442695
        %v2061 = vpow.pop %v2060
        %v2062 = vmul.f32 %v2047, 1.442695
        %v2063 = vpow.pop %v2062
        %2065 = vset.pattern.permute.xlu0 0
        %2066 = vperm.xlu0 %2065, %v2032
        %v2067 = vpop.permute.xlu0 %2066
        %2070 = vset.pattern.permute.xlu0 0
        %2071 = vperm.xlu0 %2070, %v2033
        %v2072 = vpop.permute.xlu0 %2071
        %2075 = vset.pattern.permute.xlu0 0
        %2076 = vperm.xlu0 %2075, %v2034
        %v2077 = vpop.permute.xlu0 %2076
        %2080 = vset.pattern.permute.xlu0 0
        %2081 = vperm.xlu0 %2080, %v2035
        %v2082 = vpop.permute.xlu0 %2081
        %2085 = vset.pattern.permute.xlu0 0
        %2086 = vperm.xlu0 %2085, %v2036
        %v2087 = vpop.permute.xlu0 %2086
        %2090 = vset.pattern.permute.xlu0 0
        %2091 = vperm.xlu0 %2090, %v2037
        %v2092 = vpop.permute.xlu0 %2091
        %2095 = vset.pattern.permute.xlu0 0
        %2096 = vperm.xlu0 %2095, %v2038
        %v2097 = vpop.permute.xlu0 %2096
        %2100 = vset.pattern.permute.xlu0 0
        %2101 = vperm.xlu0 %2100, %v2039
        %v2102 = vpop.permute.xlu0 %2101
        %v2104 = vsub.f32 %v1999, %v2067
        %v2105 = vsub.f32 %v2000, %v2072
        %v2106 = vsub.f32 %v2001, %v2077
        %v2107 = vsub.f32 %v2002, %v2082
        %v2108 = vsub.f32 %v2003, %v2087
        %v2109 = vsub.f32 %v2004, %v2092
        %v2110 = vsub.f32 %v2005, %v2097
        %v2111 = vsub.f32 %v2006, %v2102
        %v2112 = vmul.f32 %v2104, 1.442695
        %v2113 = vpow.pop %v2112
        %v2114 = vmul.f32 %v2105, 1.442695
        %v2115 = vpow.pop %v2114
        %v2116 = vmul.f32 %v2106, 1.442695
        %v2117 = vpow.pop %v2116
        %v2118 = vmul.f32 %v2107, 1.442695
        %v2119 = vpow.pop %v2118
        %v2120 = vmul.f32 %v2108, 1.442695
        %v2121 = vpow.pop %v2120
        %v2122 = vmul.f32 %v2109, 1.442695
        %v2123 = vpow.pop %v2122
        %v2124 = vmul.f32 %v2110, 1.442695
        %v2125 = vpow.pop %v2124
        %v2126 = vmul.f32 %v2111, 1.442695
        %v2127 = vpow.pop %v2126
        %s2128 = scalar_lea.vmem [#allocation3], 192
        %v2129 = vld [vmem:[%s2128] sm:$0xff]
        %v2130 = vld [vmem:[%s2128 + $0x8] sm:$0xff]
        %v2131 = vld [vmem:[%s2128 + $0x10] sm:$0xff]
        %v2132 = vld [vmem:[%s2128 + $0x18] sm:$0xff]
        %v2133 = vld [vmem:[%s2128 + $0x20] sm:$0xff]
        %v2134 = vld [vmem:[%s2128 + $0x28] sm:$0xff]
        %v2135 = vld [vmem:[%s2128 + $0x30] sm:$0xff]
        %v2136 = vld [vmem:[%s2128 + $0x38] sm:$0xff]
        %v2137 = vmul.f32 %v2049, %v2129
        %v2138 = vmul.f32 %v2051, %v2130
        %v2139 = vmul.f32 %v2053, %v2131
        %v2140 = vmul.f32 %v2055, %v2132
        %v2141 = vmul.f32 %v2057, %v2133
        %v2142 = vmul.f32 %v2059, %v2134
        %v2143 = vmul.f32 %v2061, %v2135
        %v2144 = vmul.f32 %v2063, %v2136
        %2145 = vadd.xlane.f32.xlu0 %v2113
        %v2146 = vpop.xlane.xlu0 %2145
        %2147 = vadd.xlane.f32.xlu0 %v2115
        %v2148 = vpop.xlane.xlu0 %2147
        %2149 = vadd.xlane.f32.xlu0 %v2117
        %v2150 = vpop.xlane.xlu0 %2149
        %2151 = vadd.xlane.f32.xlu0 %v2119
        %v2152 = vpop.xlane.xlu0 %2151
        %2153 = vadd.xlane.f32.xlu0 %v2121
        %v2154 = vpop.xlane.xlu0 %2153
        %2155 = vadd.xlane.f32.xlu0 %v2123
        %v2156 = vpop.xlane.xlu0 %2155
        %2157 = vadd.xlane.f32.xlu0 %v2125
        %v2158 = vpop.xlane.xlu0 %2157
        %2159 = vadd.xlane.f32.xlu0 %v2127
        %v2160 = vpop.xlane.xlu0 %2159
        %v2161 = vadd.f32 %v2137, %v2146
        %v2162 = vadd.f32 %v2138, %v2148
        %v2163 = vadd.f32 %v2139, %v2150
        %v2164 = vadd.f32 %v2140, %v2152
        %v2165 = vadd.f32 %v2141, %v2154
        %v2166 = vadd.f32 %v2142, %v2156
        %v2167 = vadd.f32 %v2143, %v2158
        %v2168 = vadd.f32 %v2144, %v2160
        %2169 = vst.msk [vmem:[%s2128] sm:$0xff] %vm738, %v2161
        %2170 = vst.msk [vmem:[%s2128 + $0x8] sm:$0xff] %vm738, %v2162
        %2171 = vst.msk [vmem:[%s2128 + $0x10] sm:$0xff] %vm738, %v2163
        %2172 = vst.msk [vmem:[%s2128 + $0x18] sm:$0xff] %vm738, %v2164
        %2173 = vst.msk [vmem:[%s2128 + $0x20] sm:$0xff] %vm738, %v2165
        %2174 = vst.msk [vmem:[%s2128 + $0x28] sm:$0xff] %vm738, %v2166
        %2175 = vst.msk [vmem:[%s2128 + $0x30] sm:$0xff] %vm738, %v2167
        %2176 = vst.msk [vmem:[%s2128 + $0x38] sm:$0xff] %vm738, %v2168
        %v2177 = vld [vmem:[%s304 + $0xc] sm:$0xf]
        %v2178 = vld [vmem:[%s304 + $0x1c] sm:$0xf]
        %v2179 = vld [vmem:[%s304 + $0x2c] sm:$0xf]
        %v2180 = vld [vmem:[%s304 + $0x3c] sm:$0xf]
        %v2181 = vld [vmem:[%s304 + $0x4c] sm:$0xf]
        %v2182 = vld [vmem:[%s304 + $0x5c] sm:$0xf]
        %v2183 = vld [vmem:[%s304 + $0x6c] sm:$0xf]
        %v2184 = vld [vmem:[%s304 + $0x7c] sm:$0xf]
        %v2185 = vld [vmem:[%s304 + $0x8c] sm:$0xf]
        %v2186 = vld [vmem:[%s304 + $0x9c] sm:$0xf]
        %v2187 = vld [vmem:[%s304 + $0xac] sm:$0xf]
        %v2188 = vld [vmem:[%s304 + $0xbc] sm:$0xf]
        %v2189 = vld [vmem:[%s304 + $0xcc] sm:$0xf]
        %v2190 = vld [vmem:[%s304 + $0xdc] sm:$0xf]
        %v2191 = vld [vmem:[%s304 + $0xec] sm:$0xf]
        %v2192 = vld [vmem:[%s304 + $0xfc] sm:$0xf]
        %s2193 = scalar_lea.vmem [#allocation4], 192
        %v2194 = vld [vmem:[%s2193] sm:$0xff]
        %v2195 = vld [vmem:[%s2193 + $0x8] sm:$0xff]
        %v2196 = vld [vmem:[%s2193 + $0x10] sm:$0xff]
        %v2197 = vld [vmem:[%s2193 + $0x18] sm:$0xff]
        %v2198 = vld [vmem:[%s2193 + $0x20] sm:$0xff]
        %v2199 = vld [vmem:[%s2193 + $0x28] sm:$0xff]
        %v2200 = vld [vmem:[%s2193 + $0x30] sm:$0xff]
        %v2201 = vld [vmem:[%s2193 + $0x38] sm:$0xff]
        %2203 = vset.pattern.permute.xlu0 0
        %2204 = vperm.xlu0 %2203, %v2049
        %v2205 = vpop.permute.xlu0 %2204
        %2208 = vset.pattern.permute.xlu0 0
        %2209 = vperm.xlu0 %2208, %v2051
        %v2210 = vpop.permute.xlu0 %2209
        %2213 = vset.pattern.permute.xlu0 0
        %2214 = vperm.xlu0 %2213, %v2053
        %v2215 = vpop.permute.xlu0 %2214
        %2218 = vset.pattern.permute.xlu0 0
        %2219 = vperm.xlu0 %2218, %v2055
        %v2220 = vpop.permute.xlu0 %2219
        %2223 = vset.pattern.permute.xlu0 0
        %2224 = vperm.xlu0 %2223, %v2057
        %v2225 = vpop.permute.xlu0 %2224
        %2228 = vset.pattern.permute.xlu0 0
        %2229 = vperm.xlu0 %2228, %v2059
        %v2230 = vpop.permute.xlu0 %2229
        %2233 = vset.pattern.permute.xlu0 0
        %2234 = vperm.xlu0 %2233, %v2061
        %v2235 = vpop.permute.xlu0 %2234
        %2238 = vset.pattern.permute.xlu0 0
        %2239 = vperm.xlu0 %2238, %v2063
        %v2240 = vpop.permute.xlu0 %2239
        %v2242 = vmul.f32 %v2205, %v2194
        %v2243 = vmul.f32 %v2210, %v2195
        %v2244 = vmul.f32 %v2215, %v2196
        %v2245 = vmul.f32 %v2220, %v2197
        %v2246 = vmul.f32 %v2225, %v2198
        %v2247 = vmul.f32 %v2230, %v2199
        %v2248 = vmul.f32 %v2235, %v2200
        %v2249 = vmul.f32 %v2240, %v2201
        %v2250 = vpack.c.bf16 %v2115, %v2113
        %v2251 = vpack.c.bf16 %v2119, %v2117
        %v2252 = vpack.c.bf16 %v2123, %v2121
        %v2253 = vpack.c.bf16 %v2127, %v2125
        %v2270 = vunpack.c.l.b16 %v2177
        %v2271 = vunpack.c.l.b16 %v2178
        %v2272 = vunpack.c.l.b16 %v2179
        %v2273 = vunpack.c.l.b16 %v2180
        %v2274 = vunpack.c.l.b16 %v2181
        %v2275 = vunpack.c.l.b16 %v2182
        %v2276 = vunpack.c.l.b16 %v2183
        %v2277 = vunpack.c.l.b16 %v2184
        %v2278 = vunpack.c.l.b16 %v2185
        %v2279 = vunpack.c.l.b16 %v2186
        %v2280 = vunpack.c.l.b16 %v2187
        %v2281 = vunpack.c.l.b16 %v2188
        %v2282 = vunpack.c.l.b16 %v2189
        %v2283 = vunpack.c.l.b16 %v2190
        %v2284 = vunpack.c.l.b16 %v2191
        %v2285 = vunpack.c.l.b16 %v2192
        %v2286 = vpack.c.b16 %v2271, %v2270
        %v2287 = vpack.c.b16 %v2273, %v2272
        %v2288 = vpack.c.b16 %v2275, %v2274
        %v2289 = vpack.c.b16 %v2277, %v2276
        %v2290 = vpack.c.b16 %v2279, %v2278
        %v2291 = vpack.c.b16 %v2281, %v2280
        %v2292 = vpack.c.b16 %v2283, %v2282
        %v2293 = vpack.c.b16 %v2285, %v2284
        %2302 = vmatprep.subr.bf16.mxu0 0
        %2303 = vmatpush1.bf16.msra.mxu0 %v2286
        %2304 = vmatprep.subr.bf16.mxu0 0
        %2305 = vmatpush1.bf16.msra.mxu0 %v2287
        %2306 = vmatprep.subr.bf16.mxu0 0
        %2307 = vmatpush1.bf16.msra.mxu0 %v2288
        %2308 = vmatprep.subr.bf16.mxu0 0
        %2309 = vmatpush1.bf16.msra.mxu0 %v2289
        %2310 = vmatprep.subr.bf16.mxu0 0
        %2311 = vmatpush1.bf16.msra.mxu0 %v2290
        %2312 = vmatprep.subr.bf16.mxu0 0
        %2313 = vmatpush1.bf16.msra.mxu0 %v2291
        %2314 = vmatprep.subr.bf16.mxu0 0
        %2315 = vmatpush1.bf16.msra.mxu0 %v2292
        %2316 = vmatprep.subr.bf16.mxu0 0
        %2317 = vmatpush1.bf16.msra.mxu0 %v2293
        %2318 = vmatprep.subr.bf16.mxu0 0
        %2319 = vmatpush1.bf16.msra.mxu0 0
        %2320 = vmatprep.subr.bf16.mxu0 0
        %2321 = vmatpush1.bf16.msra.mxu0 0
        %2322 = vmatprep.subr.bf16.mxu0 0
        %2323 = vmatpush1.bf16.msra.mxu0 0
        %2324 = vmatprep.subr.bf16.mxu0 0
        %2325 = vmatpush1.bf16.msra.mxu0 0
        %2326 = vmatprep.subr.bf16.mxu0 0
        %2327 = vmatpush1.bf16.msra.mxu0 0
        %2328 = vmatprep.subr.bf16.mxu0 0
        %2329 = vmatpush1.bf16.msra.mxu0 0
        %2330 = vmatprep.subr.bf16.mxu0 0
        %2331 = vmatpush1.bf16.msra.mxu0 0
        %2332 = vmatprep.subr.bf16.mxu0 0
        %2333 = vmatpush1.bf16.msra.mxu0 0
        %2334 = vmatprep.mubr.bf16.mxu0 0
        %2335 = vmatmul.mubr.bf16.gmra.mrb[0].mxu0 %v2250
        %v2336 = vpop.f32.mrb[0].mxu0
        %v2337 = vadd.f32 0.0, %v2336
        %v2338 = vpop.f32.mrb[0].mxu0
        %v2339 = vpop.f32.mrb[0].mxu0
        %v2340 = vadd.f32 0.0, %v2339
        %v2341 = vpop.f32.mrb[0].mxu0
        %2342 = vmatprep.mubr.bf16.mxu0 0
        %2343 = vmatmul.mubr.bf16.gmra.mrb[0].mxu0 %v2251
        %v2344 = vpop.f32.mrb[0].mxu0
        %v2345 = vadd.f32 0.0, %v2344
        %v2346 = vpop.f32.mrb[0].mxu0
        %v2347 = vpop.f32.mrb[0].mxu0
        %v2348 = vadd.f32 0.0, %v2347
        %v2349 = vpop.f32.mrb[0].mxu0
        %2350 = vmatprep.mubr.bf16.mxu0 0
        %2351 = vmatmul.mubr.bf16.gmra.mrb[0].mxu0 %v2252
        %v2352 = vpop.f32.mrb[0].mxu0
        %v2353 = vadd.f32 0.0, %v2352
        %v2354 = vpop.f32.mrb[0].mxu0
        %v2355 = vpop.f32.mrb[0].mxu0
        %v2356 = vadd.f32 0.0, %v2355
        %v2357 = vpop.f32.mrb[0].mxu0
        %2358 = vmatprep.mubr.bf16.mxu0 0
        %2359 = vmatmul.mubr.bf16.gmra.mrb[0].mxu0 %v2253
        %v2360 = vpop.f32.mrb[0].mxu0
        %v2361 = vadd.f32 0.0, %v2360
        %v2362 = vpop.f32.mrb[0].mxu0
        %v2363 = vpop.f32.mrb[0].mxu0
        %v2364 = vadd.f32 0.0, %v2363
        %v2365 = vpop.f32.mrb[0].mxu0
        %2366 = vdwg.mxu0
        %v2367 = vadd.f32 %v2242, %v2337
        %v2368 = vadd.f32 %v2243, %v2340
        %v2369 = vadd.f32 %v2244, %v2345
        %v2370 = vadd.f32 %v2245, %v2348
        %v2371 = vadd.f32 %v2246, %v2353
        %v2372 = vadd.f32 %v2247, %v2356
        %v2373 = vadd.f32 %v2248, %v2361
        %v2374 = vadd.f32 %v2249, %v2364
        %2375 = vst [vmem:[%s2193] sm:$0xff] %v2367
        %2376 = vst [vmem:[%s2193 + $0x8] sm:$0xff] %v2368
        %2377 = vst [vmem:[%s2193 + $0x10] sm:$0xff] %v2369
        %2378 = vst [vmem:[%s2193 + $0x18] sm:$0xff] %v2370
        %2379 = vst [vmem:[%s2193 + $0x20] sm:$0xff] %v2371
        %2380 = vst [vmem:[%s2193 + $0x28] sm:$0xff] %v2372
        %2381 = vst [vmem:[%s2193 + $0x30] sm:$0xff] %v2373
        %2382 = vst [vmem:[%s2193 + $0x38] sm:$0xff] %v2374
        %2383 = vst.msk [vmem:[%s2007] sm:$0xff] %vm738, %v2032
        %2384 = vst.msk [vmem:[%s2007 + $0x8] sm:$0xff] %vm738, %v2033
        %2385 = vst.msk [vmem:[%s2007 + $0x10] sm:$0xff] %vm738, %v2034
        %2386 = vst.msk [vmem:[%s2007 + $0x18] sm:$0xff] %vm738, %v2035
        %2387 = vst.msk [vmem:[%s2007 + $0x20] sm:$0xff] %vm738, %v2036
        %2388 = vst.msk [vmem:[%s2007 + $0x28] sm:$0xff] %vm738, %v2037
        %2389 = vst.msk [vmem:[%s2007 + $0x30] sm:$0xff] %vm738, %v2038
        %2390 = vst.msk [vmem:[%s2007 + $0x38] sm:$0xff] %vm738, %v2039
        %p2391 = scmp.eq.s32.totalorder %s30, 1
        // Predicated region
        $region53: #{tpu_custom_call.1} parent=39 // pred_check
          %p2392 = pneg %p2391
        $region54: #{tpu_custom_call.1} parent=39 // pred_check_branch
          %2394 = sbr.rel (%p2392) target = $region56
        $region55: #{tpu_custom_call.1} parent=39 // pred_region
          %v2395 = vld [vmem:[#allocation4] sm:$0xff]
          %v2396 = vld [vmem:[#allocation4 + $0x8] sm:$0xff]
          %v2397 = vld [vmem:[#allocation4 + $0x10] sm:$0xff]
          %v2398 = vld [vmem:[#allocation4 + $0x18] sm:$0xff]
          %v2399 = vld [vmem:[#allocation4 + $0x20] sm:$0xff]
          %v2400 = vld [vmem:[#allocation4 + $0x28] sm:$0xff]
          %v2401 = vld [vmem:[#allocation4 + $0x30] sm:$0xff]
          %v2402 = vld [vmem:[#allocation4 + $0x38] sm:$0xff]
          %v2403 = vld [vmem:[#allocation3] sm:$0xff]
          %v2404 = vld [vmem:[#allocation3 + $0x8] sm:$0xff]
          %v2405 = vld [vmem:[#allocation3 + $0x10] sm:$0xff]
          %v2406 = vld [vmem:[#allocation3 + $0x18] sm:$0xff]
          %v2407 = vld [vmem:[#allocation3 + $0x20] sm:$0xff]
          %v2408 = vld [vmem:[#allocation3 + $0x28] sm:$0xff]
          %v2409 = vld [vmem:[#allocation3 + $0x30] sm:$0xff]
          %v2410 = vld [vmem:[#allocation3 + $0x38] sm:$0xff]
          %v2411 = vrcp.pop %v2403
          %v2412 = vrcp.pop %v2404
          %v2413 = vrcp.pop %v2405
          %v2414 = vrcp.pop %v2406
          %v2415 = vrcp.pop %v2407
          %v2416 = vrcp.pop %v2408
          %v2417 = vrcp.pop %v2409
          %v2418 = vrcp.pop %v2410
          %2420 = vset.pattern.permute.xlu0 0
          %2421 = vperm.xlu0 %2420, %v2411
          %v2422 = vpop.permute.xlu0 %2421
          %2425 = vset.pattern.permute.xlu0 0
          %2426 = vperm.xlu0 %2425, %v2412
          %v2427 = vpop.permute.xlu0 %2426
          %2430 = vset.pattern.permute.xlu0 0
          %2431 = vperm.xlu0 %2430, %v2413
          %v2432 = vpop.permute.xlu0 %2431
          %2435 = vset.pattern.permute.xlu0 0
          %2436 = vperm.xlu0 %2435, %v2414
          %v2437 = vpop.permute.xlu0 %2436
          %2440 = vset.pattern.permute.xlu0 0
          %2441 = vperm.xlu0 %2440, %v2415
          %v2442 = vpop.permute.xlu0 %2441
          %2445 = vset.pattern.permute.xlu0 0
          %2446 = vperm.xlu0 %2445, %v2416
          %v2447 = vpop.permute.xlu0 %2446
          %2450 = vset.pattern.permute.xlu0 0
          %2451 = vperm.xlu0 %2450, %v2417
          %v2452 = vpop.permute.xlu0 %2451
          %2455 = vset.pattern.permute.xlu0 0
          %2456 = vperm.xlu0 %2455, %v2418
          %v2457 = vpop.permute.xlu0 %2456
          %v2459 = vmul.f32 %v2395, %v2422
          %v2460 = vmul.f32 %v2396, %v2427
          %v2461 = vmul.f32 %v2397, %v2432
          %v2462 = vmul.f32 %v2398, %v2437
          %v2463 = vmul.f32 %v2399, %v2442
          %v2464 = vmul.f32 %v2400, %v2447
          %v2465 = vmul.f32 %v2401, %v2452
          %v2466 = vmul.f32 %v2402, %v2457
          %v2467 = vadd.f32 %v2459, 0.0
          %v2468 = vadd.f32 %v2460, 0.0
          %v2469 = vadd.f32 %v2461, 0.0
          %v2470 = vadd.f32 %v2462, 0.0
          %v2471 = vadd.f32 %v2463, 0.0
          %v2472 = vadd.f32 %v2464, 0.0
          %v2473 = vadd.f32 %v2465, 0.0
          %v2474 = vadd.f32 %v2466, 0.0
          %v2475 = vld [vmem:[%s1239] sm:$0xff]
          %v2476 = vld [vmem:[%s1239 + $0x8] sm:$0xff]
          %v2477 = vld [vmem:[%s1239 + $0x10] sm:$0xff]
          %v2478 = vld [vmem:[%s1239 + $0x18] sm:$0xff]
          %v2479 = vld [vmem:[%s1239 + $0x20] sm:$0xff]
          %v2480 = vld [vmem:[%s1239 + $0x28] sm:$0xff]
          %v2481 = vld [vmem:[%s1239 + $0x30] sm:$0xff]
          %v2482 = vld [vmem:[%s1239 + $0x38] sm:$0xff]
          %v2483 = vld [vmem:[%s1174] sm:$0xff]
          %v2484 = vld [vmem:[%s1174 + $0x8] sm:$0xff]
          %v2485 = vld [vmem:[%s1174 + $0x10] sm:$0xff]
          %v2486 = vld [vmem:[%s1174 + $0x18] sm:$0xff]
          %v2487 = vld [vmem:[%s1174 + $0x20] sm:$0xff]
          %v2488 = vld [vmem:[%s1174 + $0x28] sm:$0xff]
          %v2489 = vld [vmem:[%s1174 + $0x30] sm:$0xff]
          %v2490 = vld [vmem:[%s1174 + $0x38] sm:$0xff]
          %v2491 = vrcp.pop %v2483
          %v2492 = vrcp.pop %v2484
          %v2493 = vrcp.pop %v2485
          %v2494 = vrcp.pop %v2486
          %v2495 = vrcp.pop %v2487
          %v2496 = vrcp.pop %v2488
          %v2497 = vrcp.pop %v2489
          %v2498 = vrcp.pop %v2490
          %2500 = vset.pattern.permute.xlu0 0
          %2501 = vperm.xlu0 %2500, %v2491
          %v2502 = vpop.permute.xlu0 %2501
          %2505 = vset.pattern.permute.xlu0 0
          %2506 = vperm.xlu0 %2505, %v2492
          %v2507 = vpop.permute.xlu0 %2506
          %2510 = vset.pattern.permute.xlu0 0
          %2511 = vperm.xlu0 %2510, %v2493
          %v2512 = vpop.permute.xlu0 %2511
          %2515 = vset.pattern.permute.xlu0 0
          %2516 = vperm.xlu0 %2515, %v2494
          %v2517 = vpop.permute.xlu0 %2516
          %2520 = vset.pattern.permute.xlu0 0
          %2521 = vperm.xlu0 %2520, %v2495
          %v2522 = vpop.permute.xlu0 %2521
          %2525 = vset.pattern.permute.xlu0 0
          %2526 = vperm.xlu0 %2525, %v2496
          %v2527 = vpop.permute.xlu0 %2526
          %2530 = vset.pattern.permute.xlu0 0
          %2531 = vperm.xlu0 %2530, %v2497
          %v2532 = vpop.permute.xlu0 %2531
          %2535 = vset.pattern.permute.xlu0 0
          %2536 = vperm.xlu0 %2535, %v2498
          %v2537 = vpop.permute.xlu0 %2536
          %v2539 = vmul.f32 %v2475, %v2502
          %v2540 = vmul.f32 %v2476, %v2507
          %v2541 = vmul.f32 %v2477, %v2512
          %v2542 = vmul.f32 %v2478, %v2517
          %v2543 = vmul.f32 %v2479, %v2522
          %v2544 = vmul.f32 %v2480, %v2527
          %v2545 = vmul.f32 %v2481, %v2532
          %v2546 = vmul.f32 %v2482, %v2537
          %v2547 = vadd.f32 %v2467, %v2539
          %v2548 = vadd.f32 %v2468, %v2540
          %v2549 = vadd.f32 %v2469, %v2541
          %v2550 = vadd.f32 %v2470, %v2542
          %v2551 = vadd.f32 %v2471, %v2543
          %v2552 = vadd.f32 %v2472, %v2544
          %v2553 = vadd.f32 %v2473, %v2545
          %v2554 = vadd.f32 %v2474, %v2546
          %v2555 = vld [vmem:[%s1716] sm:$0xff]
          %v2556 = vld [vmem:[%s1716 + $0x8] sm:$0xff]
          %v2557 = vld [vmem:[%s1716 + $0x10] sm:$0xff]
          %v2558 = vld [vmem:[%s1716 + $0x18] sm:$0xff]
          %v2559 = vld [vmem:[%s1716 + $0x20] sm:$0xff]
          %v2560 = vld [vmem:[%s1716 + $0x28] sm:$0xff]
          %v2561 = vld [vmem:[%s1716 + $0x30] sm:$0xff]
          %v2562 = vld [vmem:[%s1716 + $0x38] sm:$0xff]
          %v2563 = vld [vmem:[%s1651] sm:$0xff]
          %v2564 = vld [vmem:[%s1651 + $0x8] sm:$0xff]
          %v2565 = vld [vmem:[%s1651 + $0x10] sm:$0xff]
          %v2566 = vld [vmem:[%s1651 + $0x18] sm:$0xff]
          %v2567 = vld [vmem:[%s1651 + $0x20] sm:$0xff]
          %v2568 = vld [vmem:[%s1651 + $0x28] sm:$0xff]
          %v2569 = vld [vmem:[%s1651 + $0x30] sm:$0xff]
          %v2570 = vld [vmem:[%s1651 + $0x38] sm:$0xff]
          %v2571 = vrcp.pop %v2563
          %v2572 = vrcp.pop %v2564
          %v2573 = vrcp.pop %v2565
          %v2574 = vrcp.pop %v2566
          %v2575 = vrcp.pop %v2567
          %v2576 = vrcp.pop %v2568
          %v2577 = vrcp.pop %v2569
          %v2578 = vrcp.pop %v2570
          %2580 = vset.pattern.permute.xlu0 0
          %2581 = vperm.xlu0 %2580, %v2571
          %v2582 = vpop.permute.xlu0 %2581
          %2585 = vset.pattern.permute.xlu0 0
          %2586 = vperm.xlu0 %2585, %v2572
          %v2587 = vpop.permute.xlu0 %2586
          %2590 = vset.pattern.permute.xlu0 0
          %2591 = vperm.xlu0 %2590, %v2573
          %v2592 = vpop.permute.xlu0 %2591
          %2595 = vset.pattern.permute.xlu0 0
          %2596 = vperm.xlu0 %2595, %v2574
          %v2597 = vpop.permute.xlu0 %2596
          %2600 = vset.pattern.permute.xlu0 0
          %2601 = vperm.xlu0 %2600, %v2575
          %v2602 = vpop.permute.xlu0 %2601
          %2605 = vset.pattern.permute.xlu0 0
          %2606 = vperm.xlu0 %2605, %v2576
          %v2607 = vpop.permute.xlu0 %2606
          %2610 = vset.pattern.permute.xlu0 0
          %2611 = vperm.xlu0 %2610, %v2577
          %v2612 = vpop.permute.xlu0 %2611
          %2615 = vset.pattern.permute.xlu0 0
          %2616 = vperm.xlu0 %2615, %v2578
          %v2617 = vpop.permute.xlu0 %2616
          %v2619 = vmul.f32 %v2555, %v2582
          %v2620 = vmul.f32 %v2556, %v2587
          %v2621 = vmul.f32 %v2557, %v2592
          %v2622 = vmul.f32 %v2558, %v2597
          %v2623 = vmul.f32 %v2559, %v2602
          %v2624 = vmul.f32 %v2560, %v2607
          %v2625 = vmul.f32 %v2561, %v2612
          %v2626 = vmul.f32 %v2562, %v2617
          %v2627 = vadd.f32 %v2547, %v2619
          %v2628 = vadd.f32 %v2548, %v2620
          %v2629 = vadd.f32 %v2549, %v2621
          %v2630 = vadd.f32 %v2550, %v2622
          %v2631 = vadd.f32 %v2551, %v2623
          %v2632 = vadd.f32 %v2552, %v2624
          %v2633 = vadd.f32 %v2553, %v2625
          %v2634 = vadd.f32 %v2554, %v2626
          %v2635 = vld [vmem:[%s2193] sm:$0xff]
          %v2636 = vld [vmem:[%s2193 + $0x8] sm:$0xff]
          %v2637 = vld [vmem:[%s2193 + $0x10] sm:$0xff]
          %v2638 = vld [vmem:[%s2193 + $0x18] sm:$0xff]
          %v2639 = vld [vmem:[%s2193 + $0x20] sm:$0xff]
          %v2640 = vld [vmem:[%s2193 + $0x28] sm:$0xff]
          %v2641 = vld [vmem:[%s2193 + $0x30] sm:$0xff]
          %v2642 = vld [vmem:[%s2193 + $0x38] sm:$0xff]
          %v2643 = vld [vmem:[%s2128] sm:$0xff]
          %v2644 = vld [vmem:[%s2128 + $0x8] sm:$0xff]
          %v2645 = vld [vmem:[%s2128 + $0x10] sm:$0xff]
          %v2646 = vld [vmem:[%s2128 + $0x18] sm:$0xff]
          %v2647 = vld [vmem:[%s2128 + $0x20] sm:$0xff]
          %v2648 = vld [vmem:[%s2128 + $0x28] sm:$0xff]
          %v2649 = vld [vmem:[%s2128 + $0x30] sm:$0xff]
          %v2650 = vld [vmem:[%s2128 + $0x38] sm:$0xff]
          %v2651 = vrcp.pop %v2643
          %v2652 = vrcp.pop %v2644
          %v2653 = vrcp.pop %v2645
          %v2654 = vrcp.pop %v2646
          %v2655 = vrcp.pop %v2647
          %v2656 = vrcp.pop %v2648
          %v2657 = vrcp.pop %v2649
          %v2658 = vrcp.pop %v2650
          %2660 = vset.pattern.permute.xlu0 0
          %2661 = vperm.xlu0 %2660, %v2651
          %v2662 = vpop.permute.xlu0 %2661
          %2665 = vset.pattern.permute.xlu0 0
          %2666 = vperm.xlu0 %2665, %v2652
          %v2667 = vpop.permute.xlu0 %2666
          %2670 = vset.pattern.permute.xlu0 0
          %2671 = vperm.xlu0 %2670, %v2653
          %v2672 = vpop.permute.xlu0 %2671
          %2675 = vset.pattern.permute.xlu0 0
          %2676 = vperm.xlu0 %2675, %v2654
          %v2677 = vpop.permute.xlu0 %2676
          %2680 = vset.pattern.permute.xlu0 0
          %2681 = vperm.xlu0 %2680, %v2655
          %v2682 = vpop.permute.xlu0 %2681
          %2685 = vset.pattern.permute.xlu0 0
          %2686 = vperm.xlu0 %2685, %v2656
          %v2687 = vpop.permute.xlu0 %2686
          %2690 = vset.pattern.permute.xlu0 0
          %2691 = vperm.xlu0 %2690, %v2657
          %v2692 = vpop.permute.xlu0 %2691
          %2695 = vset.pattern.permute.xlu0 0
          %2696 = vperm.xlu0 %2695, %v2658
          %v2697 = vpop.permute.xlu0 %2696
          %v2699 = vmul.f32 %v2635, %v2662
          %v2700 = vmul.f32 %v2636, %v2667
          %v2701 = vmul.f32 %v2637, %v2672
          %v2702 = vmul.f32 %v2638, %v2677
          %v2703 = vmul.f32 %v2639, %v2682
          %v2704 = vmul.f32 %v2640, %v2687
          %v2705 = vmul.f32 %v2641, %v2692
          %v2706 = vmul.f32 %v2642, %v2697
          %v2707 = vadd.f32 %v2627, %v2699
          %v2708 = vadd.f32 %v2628, %v2700
          %v2709 = vadd.f32 %v2629, %v2701
          %v2710 = vadd.f32 %v2630, %v2702
          %v2711 = vadd.f32 %v2631, %v2703
          %v2712 = vadd.f32 %v2632, %v2704
          %v2713 = vadd.f32 %v2633, %v2705
          %v2714 = vadd.f32 %v2634, %v2706
          %v2715 = vmul.f32 %v2707, 0.25
          %v2716 = vmul.f32 %v2708, 0.25
          %v2717 = vmul.f32 %v2709, 0.25
          %v2718 = vmul.f32 %v2710, 0.25
          %v2719 = vmul.f32 %v2711, 0.25
          %v2720 = vmul.f32 %v2712, 0.25
          %v2721 = vmul.f32 %v2713, 0.25
          %v2722 = vmul.f32 %v2714, 0.25
          %v2723 = vld [vmem:[%s3] sm:$0x1]
          %v2725 = vlaneseq
          %v2726 = vshrl.u32 %v2725, 7
          %v2727 = vsub.s32 0, %v2726
          %v2728 = vrot.slane %v2723, %v2727
          %v2730 = vadd.f32 %v2715, %v2728
          %v2731 = vadd.f32 %v2716, %v2728
          %v2732 = vadd.f32 %v2717, %v2728
          %v2733 = vadd.f32 %v2718, %v2728
          %v2734 = vadd.f32 %v2719, %v2728
          %v2735 = vadd.f32 %v2720, %v2728
          %v2736 = vadd.f32 %v2721, %v2728
          %v2737 = vadd.f32 %v2722, %v2728
          %2738 = vst [vmem:[%s353] sm:$0xff] %v2730
          %2739 = vst [vmem:[%s353 + $0x8] sm:$0xff] %v2731
          %2740 = vst [vmem:[%s353 + $0x10] sm:$0xff] %v2732
          %2741 = vst [vmem:[%s353 + $0x18] sm:$0xff] %v2733
          %2742 = vst [vmem:[%s353 + $0x20] sm:$0xff] %v2734
          %2743 = vst [vmem:[%s353 + $0x28] sm:$0xff] %v2735
          %2744 = vst [vmem:[%s353 + $0x30] sm:$0xff] %v2736
          %2745 = vst [vmem:[%s353 + $0x38] sm:$0xff] %v2737
        $region56: #{tpu_custom_call.1} parent=39 // pred_fallthru
          _
        %s2746 = sand.u32 %s172, 1
        %s2747 = scalar_lea.sflag [#allocation7], %s2746
        %s2748 = sand.u32 %s172, 1
        %s2749 = smul.addr %s2748, 64
        %s2750 = scalar_lea.vmem [#allocation10], %s2749
        // Predicated region
        $region57: #{tpu_custom_call.1} parent=39 // pred_check
          %p2751 = pneg %p182
        $region58: #{tpu_custom_call.1} parent=39 // pred_check_branch
          %2753 = sbr.rel (%p2751) target = $region60
        $region59: #{tpu_custom_call.1} parent=39 // pred_region
          %s2754 = smul.u32 8, %s29
          %s2756 = ssub.s32 1024, 1024
          %2757 = vsyncadd %s2747, %s2756
          %s2758 = smul.addr %s2754, 128
          %s2759 = scalar_lea.hbm %s5, %s2758
          %s2760 = sshll.u32 %s2750, 4
          %s2761 = int_to_ptr.vmem [resolvable:$true] %s2760
          %2766 = dma.vmem_to_hbm [thread:$0]  %s2761, 1024, %s2759, %s2747, 128, 128, 8
        $region60: #{tpu_custom_call.1} parent=39 // pred_fallthru
          _
      $region40: #{tpu_custom_call.1} parent=5 // pred_fallthru
        _
      %p2767 = scmp.le.s32.totalorder 2, %s20
      // Predicated region
      $region61: #{tpu_custom_call.1} parent=5 // pred_check
        %p2768 = pneg %p2767
      $region62: #{tpu_custom_call.1} parent=5 // pred_check_branch
        %2770 = sbr.rel (%p2768) target = $region64
      $region63: #{tpu_custom_call.1} parent=5 // pred_region
        %s2771 = ssub.s32 %s20, 2
        // Predicated region
        $region65: #{tpu_custom_call.1} parent=63 // pred_check
          %p2772 = pneg %p188
        $region66: #{tpu_custom_call.1} parent=63 // pred_check_branch
          %2774 = sbr.rel (%p2772) target = $region68
        $region67: #{tpu_custom_call.1} parent=63 // pred_region
          %s2775 = sand.u32 %s173, 1
          %s2776 = scalar_lea.sflag [#allocation7], %s2775
          %s2777 = sand.u32 %s173, 1
          %s2778 = smul.addr %s2777, 64
          %s2779 = scalar_lea.vmem [#allocation10], %s2778
          %2780 = dma.done %s2776, 1024
        $region68: #{tpu_custom_call.1} parent=63 // pred_fallthru
          _
      $region64: #{tpu_custom_call.1} parent=5 // pred_fallthru
        _
    $region6: #{tpu_custom_call.1} parent=1 // loop_footer
      %s24 = sadd.s32 1, %s20
    $region7: #{tpu_custom_call.1} parent=1 // loop_footer_branch
      %19 = sbr.rel target = $region3
    $region8: #{tpu_custom_call.1} parent=1 // loop_exit
      _
    %2781 = vsyncpa [#allocation6], 1
    %s2782 = scalar_lea.sflag [#allocation6], 1
    %2783 = vsyncpa %s2782, 1
    %2784 = vsyncpa [#allocation9], 1
    %s2785 = scalar_lea.sflag [#allocation9], 1
    %2786 = vsyncpa %s2785, 1
    %2787 = vsyncpa [#allocation7], 1
    %s2788 = scalar_lea.sflag [#allocation7], 1
    %2789 = vsyncpa %s2788, 1

</llo_original>
